<compile_context>
chip_gen: v5e
topology: v5e:2x2
jax: 0.10.0
libtpu: 0.0.40
codegen_flags: <defaults>
</compile_context>

<pallas_src>
import functools
import re

import jax
import jax.numpy as jnp
from jax import lax
from jax.experimental import pallas as pl
from jax.experimental.pallas import tpu as pltpu


# ----------------------------------------------------------------------------
# small helpers
# ----------------------------------------------------------------------------
def _rup(v, m):
    return ((v + m - 1) // m) * m


def _rup8(v):
    return _rup(v, 8)


def _cdiv(a, b):
    return -(-a // b)


def _fix_len(x, L):
    cur = x.shape[-1]
    if cur == L:
        return x
    if cur > L:
        return x[..., :L]
    return jnp.pad(x, ((0, 0), (0, 0), (0, L - cur)))


# ----------------------------------------------------------------------------
# generation-aware sizing (review: don't hard-code v7x numbers)
# ----------------------------------------------------------------------------
def _query_tpu():
    gen, vmem = None, None
    try:
        vmem = int(pltpu.get_tpu_info().vmem_capacity_bytes)
    except Exception:
        vmem = None
    try:
        kind = jax.devices()[0].device_kind
        m = re.search(r"(\d+)", kind)
        if m:
            gen = int(m.group(1))
    except Exception:
        gen = None
    if vmem is None:
        # v4/v5/v6 have 128 MiB VMEM; default conservatively to v7x's 64 MiB.
        vmem = 128 * 1024 * 1024 if (gen is not None and gen < 7) else 64 * 1024 * 1024
    return gen, vmem


_TPU_GEN, _VMEM_CAP = _query_tpu()
_VMEM_LIMIT = min(int(_VMEM_CAP * 3 // 4), 100 * 1024 * 1024)
_VMEM_TARGET = int(_VMEM_CAP * 3 // 10)
# bf16 VALUs exist on v6e/v7x; keep f32 elementwise on v5e / unknown chips.
_BF16_WINDOW = _TPU_GEN is not None and _TPU_GEN >= 6
_T_TILE_CAP = 4096


def _probe_single_buffer():
    """Feature-probe pl.Buffered(1) so weight single-buffering never breaks a run."""
    try:
        def _k(x_ref, o_ref):
            o_ref[...] = x_ref[...]
        spec = pl.BlockSpec((8, 128), lambda i: (0, 0),
                            pipeline_mode=pl.Buffered(buffer_count=1))
        fn = pl.pallas_call(
            _k, grid=(1,), in_specs=[spec],
            out_specs=pl.BlockSpec((8, 128), lambda i: (0, 0)),
            out_shape=jax.ShapeDtypeStruct((8, 128), jnp.float32))
        jax.block_until_ready(fn(jnp.zeros((8, 128), jnp.float32)))
        return True
    except Exception:
        return False


_SINGLE_BUFFER_WEIGHTS = _probe_single_buffer()


def _const_spec(shape):
    """Spec for a grid-invariant operand (weights/biases): single-buffered if possible."""
    idx = lambda *_: (0,) * len(shape)
    if _SINGLE_BUFFER_WEIGHTS:
        return pl.BlockSpec(shape, idx, pipeline_mode=pl.Buffered(buffer_count=1))
    return pl.BlockSpec(shape, idx)


def _choose_tt(t_out, cin, cout, kmax, mm_bytes, act_bytes, weight_bytes):
    """Largest 128-multiple time tile whose in-kernel working set fits the target."""
    target = max(_VMEM_TARGET - 2 * weight_bytes, 2 * 1024 * 1024)
    cmax = max(cin, cout)

    def est(tt):
        w = tt + 256
        return (2 * kmax * cmax * w * mm_bytes      # two stacked matmul operands
                + 2 * cmax * w * 4                  # f32 intermediate + carried window
                + cin * w * 4                       # (worst case f32) input window
                + 2 * (cin * w + 2 * cout * tt) * act_bytes)   # double-buffered blocks

    cap = _T_TILE_CAP
    while cap > 128 and est(cap) > target:
        cap //= 2
    tt = max(128, min(cap, _rup(t_out, 128)))
    nt = _cdiv(t_out, tt)
    return max(128, _rup(_cdiv(t_out, nt), 128))    # balance tiles without raising nt


# ----------------------------------------------------------------------------
# the fused conv kernel: plain Conv1d, or a whole ResBlock chain
# ----------------------------------------------------------------------------
def _conv_kernel(*refs, TT, t_true, plain, steps, pre_slope, has_extra,
                 out_scale, tanh_out, out_channels, mm_dtype, f32_window, precision):
    it = iter(refs)
    xl_ref, xm_ref, xr_ref = next(it), next(it), next(it)
    if plain is not None:
        w_ref, b_ref = next(it), next(it)
        step_refs = None
    else:
        step_refs = [(next(it), next(it), next(it), next(it)) for _ in steps]
    e_ref = next(it) if has_extra else None
    o_ref = next(it)

    t = pl.program_id(1)
    W = TT + 256

    # input window [t*TT - 128, t*TT + TT + 128); zero outside [0, t_true)
    x_win = jnp.concatenate([xl_ref[0], xm_ref[0], xr_ref[0]], axis=1)
    if f32_window or x_win.dtype == jnp.float32:
        x_win = x_win.astype(jnp.float32)
    g0 = t * TT - 128 + lax.broadcasted_iota(jnp.int32, (1, W), 1)
    x_win = jnp.where((g0 >= 0) & (g0 < t_true), x_win, jnp.zeros((), x_win.dtype))

    def dot(w_ref_, stacked):
        return jnp.dot(w_ref_[...], stacked, preferred_element_type=jnp.float32,
                       precision=precision)

    if plain is not None:
        K, d, padl = plain
        xa = x_win
        if pre_slope is not None:                    # fused leaky_relu (lrelu(0)==0: pad-safe)
            xa = jnp.where(xa >= 0, xa, xa * jnp.asarray(pre_slope, xa.dtype))
        xb = xa.astype(mm_dtype)
        off0 = 128 - padl
        stack = jnp.concatenate(
            [xb[:, off0 + k * d: off0 + k * d + TT] for k in range(K)], axis=0)
        acc = dot(w_ref, stack) + b_ref[...].astype(jnp.float32)
    else:
        # fused ResBlock chain: per step  x <- conv2(lrelu(conv1(lrelu(x)))) + x
        reach = [dd * (K - 1) // 2 + (K - 1) // 2 for (K, dd) in steps]
        S = len(steps)
        Rs = [0] * (S + 1)
        for m in range(S - 1, -1, -1):
            Rs[m] = Rs[m + 1] + reach[m]
        xcur = x_win[:, 128 - Rs[0]: 128 - Rs[0] + TT + 2 * Rs[0]]
        for m, (K, dd) in enumerate(steps):
            p2 = (K - 1) // 2
            Wn = TT + 2 * Rs[m + 1]
            W1 = Wn + 2 * p2
            w1_ref, b1_ref, w2_ref, b2_ref = step_refs[m]
            xa = jnp.where(xcur >= 0, xcur,
                           xcur * jnp.asarray(0.2, xcur.dtype)).astype(mm_dtype)
            stack1 = jnp.concatenate(
                [xa[:, k * dd: k * dd + W1] for k in range(K)], axis=0)
            xt = dot(w1_ref, stack1) + b1_ref[...].astype(jnp.float32)
            xt = jnp.where(xt >= 0, xt, 0.2 * xt)
            g1 = t * TT - Rs[m + 1] - p2 + lax.broadcasted_iota(jnp.int32, (1, W1), 1)
            xt = jnp.where((g1 >= 0) & (g1 < t_true), xt, 0.0).astype(mm_dtype)
            stack2 = jnp.concatenate([xt[:, k: k + Wn] for k in range(K)], axis=0)
            y = dot(w2_ref, stack2) + b2_ref[...].astype(jnp.float32)
            y = y + xcur[:, reach[m]: reach[m] + Wn].astype(jnp.float32)   # residual
            if m + 1 < S:                         # next conv's zero padding
                g2 = t * TT - Rs[m + 1] + lax.broadcasted_iota(jnp.int32, (1, Wn), 1)
                y = jnp.where((g2 >= 0) & (g2 < t_true), y, 0.0)
            xcur = y
        acc = xcur

    if has_extra:                                 # folded MRF xs accumulation
        acc = acc + e_ref[0].astype(jnp.float32)
    if out_scale is not None:                     # folded /num_kernels
        acc = acc * jnp.float32(out_scale)
    if out_channels is not None and out_channels < acc.shape[0]:
        acc = acc[:out_channels]                  # unpadded projection output
    if tanh_out:
        acc = jnp.tanh(acc)
    o_ref[0] = acc.astype(o_ref.dtype)


def fused_conv_call(x, t_in, *, t_out,
                    w1=None, b1=None, K1=None, d1=None, padl1=None, pre1=None,
                    chain=None,
                    extra=None, out_scale=None, tanh_out=False, out_channels=None,
                    out_dtype=jnp.bfloat16, mm_dtype=jnp.bfloat16):
    """One pallas_call over grid (B, n_time_tiles).

    plain mode : Conv1d (optional fused leaky_relu pre-act / tanh epilogue)
    chain mode : a whole ResBlock (list of steps {w1,b1,w2,b2,K,d}), with
                 `extra` (xs running sum) and `out_scale` folded into the epilogue.
    """
    B, C, L_in = x.shape
    mm_bytes = jnp.dtype(mm_dtype).itemsize
    act_bytes = jnp.dtype(x.dtype).itemsize

    if chain is None:
        Cout = w1.shape[0]
        kmax = K1
        weights = [(w1, b1)]
        left_reach = padl1
        right_reach = (K1 - 1) * d1 - padl1
        plain = (K1, d1, padl1)
        steps = None
    else:
        Cout = chain[-1]['w2'].shape[0]
        assert Cout == C, "ResBlock chain requires Cout == Cin"
        kmax = max(st['K'] for st in chain)
        weights = []
        for st in chain:
            weights.append((st['w1'], st['b1']))
            weights.append((st['w2'], st['b2']))
        reach_tot = sum(st['d'] * (st['K'] - 1) // 2 + (st['K'] - 1) // 2 for st in chain)
        left_reach = right_reach = reach_tot
        plain = None
        steps = tuple((st['K'], st['d']) for st in chain)
    assert 0 <= left_reach <= 128 and 0 <= right_reach <= 128

    wbytes = sum(int(w.size) * w.dtype.itemsize + int(b_.size) * 4 for (w, b_) in weights)
    TT = _choose_tt(t_out, C, Cout, kmax, mm_bytes, act_bytes, wbytes)
    nt = _cdiv(t_out, TT)
    L_req = nt * TT
    if L_in < L_req or (L_in % 128) != 0:
        x = _fix_len(x, max(L_req, _rup(L_in, 128)))
        L_in = x.shape[-1]
    r = TT // 128
    nblk = L_in // 128
    outC = Cout if out_channels is None else out_channels

    in_specs = [
        pl.BlockSpec((1, C, 128), lambda b, t: (b, 0, jnp.maximum(t * r - 1, 0))),
        pl.BlockSpec((1, C, TT), lambda b, t: (b, 0, t)),
        pl.BlockSpec((1, C, 128), lambda b, t: (b, 0, jnp.minimum((t + 1) * r, nblk - 1))),
    ]
    args = [x, x, x]
    for (w, b_) in weights:
        in_specs += [_const_spec(w.shape), _const_spec(b_.shape)]
        args += [w, b_]
    if extra is not None:
        if extra.shape[-1] != L_req:
            extra = _fix_len(extra, L_req)
        in_specs.append(pl.BlockSpec((1, Cout, TT), lambda b, t: (b, 0, t)))
        args.append(extra)

    precision = (lax.Precision.HIGHEST
                 if jnp.dtype(mm_dtype) == jnp.dtype(jnp.float32) else None)

    kern = functools.partial(
        _conv_kernel, TT=TT, t_true=int(t_in), plain=plain, steps=steps,
        pre_slope=None if pre1 is None else float(pre1),
        has_extra=extra is not None,
        out_scale=None if out_scale is None else float(out_scale),
        tanh_out=tanh_out, out_channels=outC, mm_dtype=mm_dtype,
        f32_window=not _BF16_WINDOW, precision=precision)

    conv_macs = sum(int(w.shape[0]) * int(w.shape[1]) for (w, _) in weights)
    flops = 2 * B * L_req * conv_macs
    bytes_accessed = (int(x.size) * act_bytes
                      + B * outC * L_req * jnp.dtype(out_dtype).itemsize + wbytes
                      + (int(extra.size) * extra.dtype.itemsize if extra is not None else 0))
    transcend = B * outC * L_req if tanh_out else 0

    out = pl.pallas_call(
        kern,
        grid=(B, nt),
        in_specs=in_specs,
        out_specs=pl.BlockSpec((1, outC, TT), lambda b, t: (b, 0, t)),
        out_shape=jax.ShapeDtypeStruct((B, outC, L_req), out_dtype),
        compiler_params=pltpu.CompilerParams(
            dimension_semantics=("parallel", "parallel"),
            vmem_limit_bytes=_VMEM_LIMIT),
        cost_estimate=pl.CostEstimate(flops=int(flops), transcendentals=int(transcend),
                                      bytes_accessed=int(bytes_accessed)),
    )(*args)
    return out, t_out


# ----------------------------------------------------------------------------
# weight preparation (torch layouts -> kernel-ready, channel-padded, K-merged)
# ----------------------------------------------------------------------------
def prep_conv_w(w, cin_p, cout_p, dtype=jnp.bfloat16):
    """torch Conv1d weight (Cout, Cin, K) -> (cout_p, K*cin_p)."""
    Cout, Cin, K = w.shape
    w = jnp.pad(w, ((0, cout_p - Cout), (0, cin_p - Cin), (0, 0)))
    return jnp.transpose(w, (0, 2, 1)).reshape(cout_p, K * cin_p).astype(dtype)


def prep_conv_b(b, cout_p):
    return jnp.pad(b, (0, cout_p - b.shape[0])).reshape(cout_p, 1).astype(jnp.float32)


def prep_convT_w(w, stride, cin_p, cout_p, dtype=jnp.bfloat16):
    """torch ConvTranspose1d weight (Cin, Cout, K) -> polyphase (stride*cout_p, Kp*cin_p)."""
    Cin, Cout, K = w.shape
    Kp = _cdiv(K, stride)
    w = jnp.pad(w, ((0, cin_p - Cin), (0, cout_p - Cout), (0, Kp * stride - K)))
    w = w.reshape(cin_p, cout_p, Kp, stride)
    w = jnp.flip(w, axis=2)
    w = jnp.transpose(w, (3, 1, 2, 0))                 # (s, cout_p, Kp, cin_p)
    return w.reshape(stride * cout_p, Kp * cin_p).astype(dtype)


def prep_convT_b(b, stride, cout_p):
    b = jnp.pad(b, (0, cout_p - b.shape[0]))
    return jnp.tile(b, stride).reshape(stride * cout_p, 1).astype(jnp.float32)


def upsample_call(x, tlen, w_poly, b_poly, stride, K, pad, pre_slope=0.2,
                  out_dtype=jnp.bfloat16, mm_dtype=jnp.bfloat16):
    """ConvTranspose1d as a polyphase forward conv (+ fused leaky_relu pre-act)."""
    Kp = _cdiv(K, stride)
    cout_p = b_poly.shape[0] // stride
    q = tlen + Kp - 1
    t_up = (tlen - 1) * stride - 2 * pad + K
    y, _ = fused_conv_call(x, tlen, t_out=q, w1=w_poly, b1=b_poly, K1=Kp, d1=1,
                           padl1=Kp - 1, pre1=pre_slope,
                           out_dtype=out_dtype, mm_dtype=mm_dtype)
    B = y.shape[0]
    # TODO(synk): fold this phase interleave + `pad` trim into the kernel epilogue
    # (in-register (s,cout,TT)->(cout,TT*s) relayout) to save one HBM round trip.
    z = y[:, :, :q].reshape(B, stride, cout_p, q)
    z = jnp.transpose(z, (0, 2, 3, 1)).reshape(B, cout_p, q * stride)
    return z[:, :, pad: pad + t_up], t_up


# ----------------------------------------------------------------------------
# Avocodo config / params / forward
# ----------------------------------------------------------------------------
CFG = dict(
    num_mels=80,
    upsample_initial_channel=64,     # AvocodoConfig default is 512; reduced for demo
    upsample_rates=[8, 8, 2, 2],
    upsample_kernel_sizes=[16, 16, 4, 4],
    resblock_kernel_sizes=[3, 7, 11],
    resblock_dilation_sizes=[[1, 3, 5], [1, 3, 5], [1, 3, 5]],
    projection_filters=[0, 1, 1, 1],
    projection_kernels=[0, 5, 7, 11],
)


def init_raw_params(key, cfg):
    """Effective (weight_norm'ed) weights, torch layouts, f32; weights ~ N(0, 0.01)."""
    C0 = cfg['upsample_initial_channel']
    rates, uks = cfg['upsample_rates'], cfg['upsample_kernel_sizes']
    rks, rds = cfg['resblock_kernel_sizes'], cfg['resblock_dilation_sizes']
    pfs, pks = cfg['projection_filters'], cfg['projection_kernels']
    keys = iter(jax.random.split(key, 256))

    def rnd(shape):
        return 0.01 * jax.random.normal(next(keys), shape, jnp.float32)

    raw = {'conv_pre': {'w': rnd((C0, cfg['num_mels'], 7)), 'b': rnd((C0,))},
           'ups': [], 'resblocks': [], 'conv_post': []}
    for i, (u, k) in enumerate(zip(rates, uks)):
        cin, cout = C0 // 2 ** i, C0 // 2 ** (i + 1)
        raw['ups'].append({'w': rnd((cin, cout, k)), 'b': rnd((cout,))})
        ch = cout
        stage = []
        for kk, dils in zip(rks, rds):
            stage.append({'c1': [{'w': rnd((ch, ch, kk)), 'b': rnd((ch,))} for _ in dils],
                          'c2': [{'w': rnd((ch, ch, kk)), 'b': rnd((ch,))} for _ in dils]})
        raw['resblocks'].append(stage)
        if pfs[i] != 0:
            raw['conv_post'].append({'w': rnd((pfs[i], ch, pks[i])), 'b': rnd((pfs[i],))})
        else:
            raw['conv_post'].append(None)                      # torch.nn.Identity
    return raw


def prep_params(raw, cfg, dtype=jnp.bfloat16):
    C0 = cfg['upsample_initial_channel']
    rates, uks = cfg['upsample_rates'], cfg['upsample_kernel_sizes']
    pfs = cfg['projection_filters']
    p = {'ups': [], 'resblocks': [], 'conv_post': []}
    p['conv_pre'] = {'w': prep_conv_w(raw['conv_pre']['w'], cfg['num_mels'], _rup8(C0), dtype),
                     'b': prep_conv_b(raw['conv_pre']['b'], _rup8(C0))}
    for i, (u, k) in enumerate(zip(rates, uks)):
        cin, cout = C0 // 2 ** i, C0 // 2 ** (i + 1)
        cin_p, cout_p = _rup8(cin), _rup8(cout)
        p['ups'].append({'w': prep_convT_w(raw['ups'][i]['w'], u, cin_p, cout_p, dtype),
                         'b': prep_convT_b(raw['ups'][i]['b'], u, cout_p)})
        ch_p = cout_p
        stage = []
        for rb_raw in raw['resblocks'][i]:
            stage.append({'c1': [{'w': prep_conv_w(c['w'], ch_p, ch_p, dtype),
                                  'b': prep_conv_b(c['b'], ch_p)} for c in rb_raw['c1']],
                          'c2': [{'w': prep_conv_w(c['w'], ch_p, ch_p, dtype),
                                  'b': prep_conv_b(c['b'], ch_p)} for c in rb_raw['c2']]})
        p['resblocks'].append(stage)
        if raw['conv_post'][i] is not None:
            p['conv_post'].append({'w': prep_conv_w(raw['conv_post'][i]['w'], ch_p,
                                                    _rup8(pfs[i]), dtype),
                                   'b': prep_conv_b(raw['conv_post'][i]['b'], _rup8(pfs[i]))})
        else:
            p['conv_post'].append(None)
    return p


def avocodo_forward(params, mel, cfg, act_dtype=jnp.bfloat16, mm_dtype=jnp.bfloat16):
    rates, uks = cfg['upsample_rates'], cfg['upsample_kernel_sizes']
    rks, rds = cfg['resblock_kernel_sizes'], cfg['resblock_dilation_sizes']
    pfs, pks = cfg['projection_filters'], cfg['projection_kernels']
    num_up, nk = len(rates), len(rks)

    B, _, T = mel.shape
    x, tlen = fused_conv_call(mel, T, t_out=T, w1=params['conv_pre']['w'],
                              b1=params['conv_pre']['b'], K1=7, d1=1, padl1=3,
                              out_dtype=act_dtype, mm_dtype=mm_dtype)
    outs = []
    for i in range(num_up):
        u, k = rates[i], uks[i]
        # leaky_relu(0.2) fused into the polyphase upsampler
        x, tlen = upsample_call(x, tlen, params['ups'][i]['w'], params['ups'][i]['b'],
                                u, k, (k - u) // 2, pre_slope=0.2,
                                out_dtype=act_dtype, mm_dtype=mm_dtype)

        # MRF: each branch's whole ResBlock (3 dilation steps = 6 convs) is ONE
        # pallas_call; the running xs-sum and /num_kernels fold into the epilogue.
        xs = None
        for j in range(nk):
            kk, dils = rks[j], rds[j]
            rb = params['resblocks'][i][j]
            chain = [dict(w1=rb['c1'][m]['w'], b1=rb['c1'][m]['b'],
                          w2=rb['c2'][m]['w'], b2=rb['c2'][m]['b'],
                          K=kk, d=dils[m]) for m in range(len(dils))]
            xs, _ = fused_conv_call(x, tlen, t_out=tlen, chain=chain,
                                    extra=xs if j > 0 else None,
                                    out_scale=(1.0 / nk) if j == nk - 1 else None,
                                    out_dtype=act_dtype, mm_dtype=mm_dtype)
        x = xs

        cp = params['conv_post'][i]
        if i >= num_up - 3:
            pk = pks[i]
            # tanh(conv_post(leaky_relu(x, 0.01))) fused; unpadded (B, 1, L) f32 output
            o, _ = fused_conv_call(x, tlen, t_out=tlen, w1=cp['w'], b1=cp['b'],
                                   K1=pk, d1=1, padl1=pk // 2, pre1=0.01,
                                   tanh_out=True, out_channels=pfs[i],
                                   out_dtype=jnp.float32, mm_dtype=mm_dtype)
            outs.append(o[:, :, :tlen])
        else:
            if cp is not None:
                pk = pks[i]
                x, _ = fused_conv_call(x, tlen, t_out=tlen, w1=cp['w'], b1=cp['b'],
                                       K1=pk, d1=1, padl1=pk // 2,
                                       out_dtype=act_dtype, mm_dtype=mm_dtype)
            # else torch.nn.Identity -> x unchanged
    return outs


# ----------------------------------------------------------------------------
# pure-lax reference (for validation)
# ----------------------------------------------------------------------------
def _lrelu(x, s):
    return jnp.where(x >= 0, x, s * x)


def _ref_conv(x, w, b, dilation=1):
    K = w.shape[-1]
    pad = dilation * (K - 1) // 2
    y = lax.conv_general_dilated(x, w, (1,), [(pad, pad)], rhs_dilation=(dilation,),
                                 dimension_numbers=('NCH', 'OIH', 'NCH'),
                                 precision=lax.Precision.HIGHEST)
    return y + b[None, :, None]


def _ref_convT(x, w, b, stride, pad):
    K = w.shape[-1]
    wc = jnp.flip(jnp.transpose(w, (1, 0, 2)), axis=2)
    y = lax.conv_general_dilated(x, wc, (1,), [(K - 1 - pad, K - 1 - pad)],
                                 lhs_dilation=(stride,),
                                 dimension_numbers=('NCH', 'OIH', 'NCH'),
                                 precision=lax.Precision.HIGHEST)
    return y + b[None, :, None]


def reference_forward(raw, mel, cfg):
    rates, uks = cfg['upsample_rates'], cfg['upsample_kernel_sizes']
    rks, rds = cfg['resblock_kernel_sizes'], cfg['resblock_dilation_sizes']
    num_up, nk = len(rates), len(rks)
    x = _ref_conv(mel, raw['conv_pre']['w'], raw['conv_pre']['b'])
    outs = []
    for i in range(num_up):
        x = _lrelu(x, 0.2)
        x = _ref_convT(x, raw['ups'][i]['w'], raw['ups'][i]['b'],
                       rates[i], (uks[i] - rates[i]) // 2)
        xs = None
        for j, (kk, dils) in enumerate(zip(rks, rds)):
            h = x
            rb = raw['resblocks'][i][j]
            for m, dd in enumerate(dils):
                xt = _ref_conv(_lrelu(h, 0.2), rb['c1'][m]['w'], rb['c1'][m]['b'], dd)
                xt = _ref_conv(_lrelu(xt, 0.2), rb['c2'][m]['w'], rb['c2'][m]['b'], 1)
                h = xt + h
            xs = h if xs is None else xs + h
        x = xs / nk
        cp = raw['conv_post'][i]
        if i >= num_up - 3:
            outs.append(jnp.tanh(_ref_conv(_lrelu(x, 0.01), cp['w'], cp['b'])))
        else:
            if cp is not None:
                x = _ref_conv(x, cp['w'], cp['b'])
    return outs


# ----------------------------------------------------------------------------
if __name__ == "__main__":
    key = jax.random.PRNGKey(0)
    pkey, xkey, k1, k2, k3, k4, k5, k6, k7, k8 = jax.random.split(key, 10)
    HI = lax.Precision.HIGHEST

    def lrelu(v, s):
        return jnp.where(v >= 0, v, s * v)

    def snr_db(ref, got):
        ref = ref.astype(jnp.float32)
        got = got.astype(jnp.float32)
        num = jnp.sum(ref ** 2)
        den = jnp.sum((got - ref) ** 2) + 1e-30
        return float(10.0 * jnp.log10(num / den + 1e-30))

    # --- check 1: plain dilated conv (multi-tile, fused leaky_relu) vs lax ---
    B, Cin, Cout, T = 2, 16, 8, 2500
    cx = jax.random.normal(k1, (B, Cin, T), jnp.float32)
    cw = 0.1 * jax.random.normal(k2, (Cout, Cin, 3), jnp.float32)
    cb = 0.1 * jax.random.normal(k3, (Cout,), jnp.float32)
    got, _ = fused_conv_call(cx, T, t_out=T, w1=prep_conv_w(cw, Cin, Cout, jnp.float32),
                             b1=prep_conv_b(cb, Cout), K1=3, d1=3, padl1=3, pre1=0.2,
                             out_dtype=jnp.float32, mm_dtype=jnp.float32)
    ref = lax.conv_general_dilated(lrelu(cx, 0.2), cw, (1,), [(3, 3)], rhs_dilation=(3,),
                                   dimension_numbers=('NCH', 'OIH', 'NCH'),
                                   precision=HI) + cb[None, :, None]
    assert bool(jnp.allclose(got[:, :Cout, :T], ref, atol=2e-3, rtol=2e-3)), "conv mismatch"

    # --- check 2: fused whole ResBlock (3 steps, 6 convs, residuals) vs lax ---
    C, kk, dils = 16, 11, (1, 3, 5)
    rx = jax.random.normal(k4, (B, C, T), jnp.float32)
    rkeys = jax.random.split(k5, 12)
    c1w = [0.1 * jax.random.normal(rkeys[m], (C, C, kk), jnp.float32) for m in range(3)]
    c2w = [0.1 * jax.random.normal(rkeys[3 + m], (C, C, kk), jnp.float32) for m in range(3)]
    c1b = [0.1 * jax.random.normal(rkeys[6 + m], (C,), jnp.float32) for m in range(3)]
    c2b = [0.1 * jax.random.normal(rkeys[9 + m], (C,), jnp.float32) for m in range(3)]
    chain = [dict(w1=prep_conv_w(c1w[m], C, C, jnp.float32), b1=prep_conv_b(c1b[m], C),
                  w2=prep_conv_w(c2w[m], C, C, jnp.float32), b2=prep_conv_b(c2b[m], C),
                  K=kk, d=dils[m]) for m in range(3)]
    got2, _ = fused_conv_call(rx, T, t_out=T, chain=chain,
                              out_dtype=jnp.float32, mm_dtype=jnp.float32)
    hh = rx
    for m, dd in enumerate(dils):
        xt = lax.conv_general_dilated(lrelu(hh, 0.2), c1w[m], (1,),
                                      [(dd * (kk - 1) // 2,) * 2], rhs_dilation=(dd,),
                                      dimension_numbers=('NCH', 'OIH', 'NCH'),
                                      precision=HI) + c1b[m][None, :, None]
        xt = lax.conv_general_dilated(lrelu(xt, 0.2), c2w[m], (1,),
                                      [((kk - 1) // 2,) * 2],
                                      dimension_numbers=('NCH', 'OIH', 'NCH'),
                                      precision=HI) + c2b[m][None, :, None]
        hh = xt + hh
    assert bool(jnp.allclose(got2[:, :, :T], hh, atol=3e-3, rtol=3e-3)), "resblock mismatch"

    # --- check 3: polyphase ConvTranspose1d vs lax (lhs_dilation reference) ---
    s, Kt, P, Tt = 8, 16, 4, 300
    tx = jax.random.normal(k7, (B, Cin, Tt), jnp.float32)
    tw = 0.1 * jax.random.normal(k8, (Cin, Cout, Kt), jnp.float32)   # torch ConvT layout
    tb = 0.1 * jax.random.normal(k6, (Cout,), jnp.float32)
    got3, t_up = upsample_call(tx, Tt, prep_convT_w(tw, s, Cin, Cout, jnp.float32),
                               prep_convT_b(tb, s, Cout), s, Kt, P, pre_slope=0.2,
                               out_dtype=jnp.float32, mm_dtype=jnp.float32)
    ref3 = _ref_convT(lrelu(tx, 0.2), tw, tb, s, P)
    assert t_up == ref3.shape[-1]
    assert bool(jnp.allclose(got3[:, :Cout, :], ref3, atol=2e-3, rtol=2e-3)), "convT mismatch"

    # --- full Avocodo forward: Pallas kernels vs pure-lax f32 reference ---
    raw = init_raw_params(pkey, CFG)
    B, T = 2, 8
    mel = jax.random.normal(xkey, (B, CFG['num_mels'], T), jnp.float32)
    outs_ref = [jax.block_until_ready(o) for o in reference_forward(raw, mel, CFG)]

    # f32 kernels: tight end-to-end check of the whole fused network
    params32 = prep_params(raw, CFG, jnp.float32)
    fwd32 = jax.jit(lambda p, m: avocodo_forward(p, m, CFG, jnp.float32, jnp.float32))
    outs32 = jax.block_until_ready(fwd32(params32, mel))
    # bf16 kernels (production path): loose SNR check of accumulated bf16 error
    params16 = prep_params(raw, CFG, jnp.bfloat16)
    fwd16 = jax.jit(lambda p, m: avocodo_forward(p, m, CFG))
    outs16 = jax.block_until_ready(fwd16(params16, mel))

    expected_T = [T * 64, T * 128, T * 256]   # cumulative upsampling 8*8, 8*8*2, 8*8*2*2
    assert len(outs_ref) == len(outs32) == len(outs16) == 3
    for o_ref, o32, o16, et in zip(outs_ref, outs32, outs16, expected_T):
        assert o_ref.shape == (B, 1, et) and o32.shape == (B, 1, et) and o16.shape == (B, 1, et)
        assert bool(jnp.all(jnp.isfinite(o32))) and bool(jnp.all(jnp.isfinite(o16)))
        assert snr_db(o_ref, o32) > 60.0, "f32 kernel path deviates from lax reference"
        assert snr_db(o_ref, o16) > 20.0, "bf16 kernel path: accumulated error too large"

    print("KERNEL_OK")
</pallas_src>

<mosaic_0001>
module attributes {stable_mosaic.version = 11 : i64} {
  func.func @_k(%arg0: i32, %arg1: memref<8x128xf32, #tpu.memory_space<vmem>>, %arg2: memref<8x128xf32, #tpu.memory_space<vmem>>) attributes {dimension_semantics = [#tpu.dimension_semantics<arbitrary>], iteration_bounds = array<i64: 1>, scalar_prefetch = 0 : i64, scratch_operands = 0 : i64, tpu.core_type = #tpu.core_type<tc>, window_params = [{pipeline_mode = #tpu.pipeline_mode<synchronous>, transform_indices = @transform_0, window_bounds = array<i64: 8, 128>}, {pipeline_mode = #tpu.pipeline_mode<synchronous>, transform_indices = @transform_1, window_bounds = array<i64: 8, 128>}]} {
    %c0 = arith.constant 0 : index
    %c0_0 = arith.constant 0 : index
    %0 = vector.load %arg1[%c0, %c0_0] : memref<8x128xf32, #tpu.memory_space<vmem>>, vector<8x128xf32>
    %c0_1 = arith.constant 0 : index
    %c0_2 = arith.constant 0 : index
    %1 = vector.load %arg2[%c0_1, %c0_2] : memref<8x128xf32, #tpu.memory_space<vmem>>, vector<8x128xf32>
    tpu.vector_store %arg2[%c0_1, %c0_2], %0 {strides = array<i32>} : memref<8x128xf32, #tpu.memory_space<vmem>>, vector<8x128xf32>,
    return
  }
  func.func @transform_0(%arg0: i32) -> (i32, i32) {
    %c0_i32 = arith.constant 0 : i32
    %c0_i32_0 = arith.constant 0 : i32
    %c0_i32_1 = arith.constant 0 : i32
    return %c0_i32, %c0_i32_0 : i32, i32
  }
  func.func @transform_1(%arg0: i32) -> (i32, i32) {
    %c0_i32 = arith.constant 0 : i32
    %c0_i32_0 = arith.constant 0 : i32
    %c0_i32_1 = arith.constant 0 : i32
    return %c0_i32, %c0_i32_0 : i32, i32
  }
}

module attributes {stable_mosaic.version = 11 : i64} {
  func.func @_conv_kernel(%arg0: i32, %arg1: i32, %arg2: memref<1x16x128xf32, #tpu.memory_space<vmem>>, %arg3: memref<1x16x2560xf32, #tpu.memory_space<vmem>>, %arg4: memref<1x16x128xf32, #tpu.memory_space<vmem>>, %arg5: memref<8x48xf32, #tpu.memory_space<vmem>>, %arg6: memref<8x1xf32, #tpu.memory_space<vmem>>, %arg7: memref<1x8x2560xf32, #tpu.memory_space<vmem>>) attributes {dimension_semantics = [#tpu.dimension_semantics<parallel>, #tpu.dimension_semantics<parallel>], iteration_bounds = array<i64: 2, 1>, scalar_prefetch = 0 : i64, scratch_operands = 0 : i64, tpu.core_type = #tpu.core_type<tc>, window_params = [{transform_indices = @transform_0, window_bounds = array<i64: 1, 16, 128>}, {transform_indices = @transform_1, window_bounds = array<i64: 1, 16, 2560>}, {transform_indices = @transform_2, window_bounds = array<i64: 1, 16, 128>}, {pipeline_mode = #tpu.pipeline_mode<synchronous>, transform_indices = @transform_3, window_bounds = array<i64: 8, 48>}, {pipeline_mode = #tpu.pipeline_mode<synchronous>, transform_indices = @transform_4, window_bounds = array<i64: 8, 1>}, {transform_indices = @transform_5, window_bounds = array<i64: 1, 8, 2560>}]} {
    %c0 = arith.constant 0 : index
    %c0_0 = arith.constant 0 : index
    %c0_1 = arith.constant 0 : index
    %0 = vector.load %arg2[%c0, %c0_0, %c0_1] : memref<1x16x128xf32, #tpu.memory_space<vmem>>, vector<1x16x128xf32>
    %1 = vector.shape_cast %0 : vector<1x16x128xf32> to vector<16x128xf32>
    %c0_2 = arith.constant 0 : index
    %c0_3 = arith.constant 0 : index
    %c0_4 = arith.constant 0 : index
    %2 = vector.load %arg3[%c0_2, %c0_3, %c0_4] : memref<1x16x2560xf32, #tpu.memory_space<vmem>>, vector<1x16x2560xf32>
    %3 = vector.shape_cast %2 : vector<1x16x2560xf32> to vector<16x2560xf32>
    %c0_5 = arith.constant 0 : index
    %c0_6 = arith.constant 0 : index
    %c0_7 = arith.constant 0 : index
    %4 = vector.load %arg4[%c0_5, %c0_6, %c0_7] : memref<1x16x128xf32, #tpu.memory_space<vmem>>, vector<1x16x128xf32>
    %5 = vector.shape_cast %4 : vector<1x16x128xf32> to vector<16x128xf32>
    %6 = tpu.concatenate %1, %3, %5 in 1 : vector<16x128xf32>, vector<16x2560xf32>, vector<16x128xf32> -> vector<16x2816xf32>
    %c2560_i32 = arith.constant 2560 : i32
    %7 = arith.muli %arg1, %c2560_i32 : i32
    %c128_i32 = arith.constant 128 : i32
    %8 = arith.subi %7, %c128_i32 : i32
    %9 = tpu.iota {dimensions = array<i32: 1>} : vector<1x2816xi32>
    %10 = vector.broadcast %8 : i32 to vector<1x2816xi32>
    %11 = arith.addi %10, %9 : vector<1x2816xi32>
    %c0_i32 = arith.constant 0 : i32
    %12 = vector.broadcast %c0_i32 : i32 to vector<1x2816xi32>
    %13 = arith.cmpi sge, %11, %12 : vector<1x2816xi32>
    %c2500_i32 = arith.constant 2500 : i32
    %14 = vector.broadcast %c2500_i32 : i32 to vector<1x2816xi32>
    %15 = arith.cmpi slt, %11, %14 : vector<1x2816xi32>
    %16 = arith.andi %13, %15 : vector<1x2816xi1>
    %cst = arith.constant 0.000000e+00 : f32
    %17 = vector.shape_cast %16 : vector<1x2816xi1> to vector<1x2816xi1>
    %18 = vector.broadcast %17 : vector<1x2816xi1> to vector<16x2816xi1>
    %19 = vector.broadcast %cst : f32 to vector<16x2816xf32>
    %20 = arith.select %18, %6, %19 : vector<16x2816xi1>, vector<16x2816xf32>
    %cst_8 = arith.constant 0.000000e+00 : f32
    %21 = vector.broadcast %cst_8 : f32 to vector<16x2816xf32>
    %22 = arith.cmpf oge, %20, %21 : vector<16x2816xf32>
    %cst_9 = arith.constant 2.000000e-01 : f32
    %23 = vector.broadcast %cst_9 : f32 to vector<16x2816xf32>
    %24 = arith.mulf %20, %23 : vector<16x2816xf32>
    %25 = arith.select %22, %20, %24 : vector<16x2816xi1>, vector<16x2816xf32>
    %26 = vector.extract_strided_slice %25 {offsets = [0, 125], sizes = [16, 2560], strides = [1, 1]} : vector<16x2816xf32> to vector<16x2560xf32>
    %27 = vector.extract_strided_slice %25 {offsets = [0, 128], sizes = [16, 2560], strides = [1, 1]} : vector<16x2816xf32> to vector<16x2560xf32>
    %28 = vector.extract_strided_slice %25 {offsets = [0, 131], sizes = [16, 2560], strides = [1, 1]} : vector<16x2816xf32> to vector<16x2560xf32>
    %29 = tpu.concatenate %26, %27, %28 in 0 : vector<16x2560xf32>, vector<16x2560xf32>, vector<16x2560xf32> -> vector<48x2560xf32>
    %c0_10 = arith.constant 0 : index
    %c0_11 = arith.constant 0 : index
    %30 = vector.load %arg5[%c0_10, %c0_11] : memref<8x48xf32, #tpu.memory_space<vmem>>, vector<8x48xf32>
    %cst_12 = arith.constant dense<0.000000e+00> : vector<8x2560xf32>
    %31 = tpu.matmul %30, %29, %cst_12 {dimension_numbers = #tpu.dot_dimension_numbers<[1], [0], [0], [1], [0, 0, 1, 1], [], []>, precision = #tpu.contract_precision<fp32>} : vector<8x48xf32>, vector<48x2560xf32>, vector<8x2560xf32> -> vector<8x2560xf32>
    %c0_13 = arith.constant 0 : index
    %c0_14 = arith.constant 0 : index
    %32 = vector.load %arg6[%c0_13, %c0_14] : memref<8x1xf32, #tpu.memory_space<vmem>>, vector<8x1xf32>
    %33 = vector.broadcast %32 : vector<8x1xf32> to vector<8x2560xf32>
    %34 = arith.addf %31, %33 : vector<8x2560xf32>
    %c0_15 = arith.constant 0 : index
    %c0_16 = arith.constant 0 : index
    %c0_17 = arith.constant 0 : index
    %35 = vector.load %arg7[%c0_15, %c0_16, %c0_17] : memref<1x8x2560xf32, #tpu.memory_space<vmem>>, vector<1x8x2560xf32>
    %36 = vector.shape_cast %35 : vector<1x8x2560xf32> to vector<8x2560xf32>
    %37 = vector.shape_cast %34 : vector<8x2560xf32> to vector<1x8x2560xf32>
    tpu.vector_store %arg7[%c0_15, %c0_16, %c0_17], %37 {strides = array<i32>} : memref<1x8x2560xf32, #tpu.memory_space<vmem>>, vector<1x8x2560xf32>,
    return
  }
  func.func @transform_0(%arg0: i32, %arg1: i32) -> (i32, i32, i32) {
    %c20_i32 = arith.constant 20 : i32
    %0 = arith.muli %arg1, %c20_i32 : i32
    %c1_i32 = arith.constant 1 : i32
    %1 = arith.subi %0, %c1_i32 : i32
    %c0_i32 = arith.constant 0 : i32
    %2 = arith.maxsi %1, %c0_i32 : i32
    %c0_i32_0 = arith.constant 0 : i32
    %c0_i32_1 = arith.constant 0 : i32
    return %arg0, %c0_i32_0, %2 : i32, i32, i32
  }
  func.func @transform_1(%arg0: i32, %arg1: i32) -> (i32, i32, i32) {
    %c0_i32 = arith.constant 0 : i32
    %c0_i32_0 = arith.constant 0 : i32
    return %arg0, %c0_i32, %arg1 : i32, i32, i32
  }
  func.func @transform_2(%arg0: i32, %arg1: i32) -> (i32, i32, i32) {
    %c1_i32 = arith.constant 1 : i32
    %0 = arith.addi %arg1, %c1_i32 : i32
    %c20_i32 = arith.constant 20 : i32
    %1 = arith.muli %0, %c20_i32 : i32
    %c19_i32 = arith.constant 19 : i32
    %2 = arith.minsi %1, %c19_i32 : i32
    %c0_i32 = arith.constant 0 : i32
    %c0_i32_0 = arith.constant 0 : i32
    return %arg0, %c0_i32, %2 : i32, i32, i32
  }
  func.func @transform_3(%arg0: i32, %arg1: i32) -> (i32, i32) {
    %c0_i32 = arith.constant 0 : i32
    %c0_i32_0 = arith.constant 0 : i32
    %c0_i32_1 = arith.constant 0 : i32
    return %c0_i32, %c0_i32_0 : i32, i32
  }
  func.func @transform_4(%arg0: i32, %arg1: i32) -> (i32, i32) {
    %c0_i32 = arith.constant 0 : i32
    %c0_i32_0 = arith.constant 0 : i32
    %c0_i32_1 = arith.constant 0 : i32
    return %c0_i32, %c0_i32_0 : i32, i32
  }
  func.func @transform_5(%arg0: i32, %arg1: i32) -> (i32, i32, i32) {
    %c0_i32 = arith.constant 0 : i32
    %c0_i32_0 = arith.constant 0 : i32
    return %arg0, %c0_i32, %arg1 : i32, i32, i32
  }
}

</mosaic_0001>

<llo_original>
// kernel: tpu_custom_call.1
$region0: #{tpu_custom_call.1}
  #allocation0 [shape = 'u32[]', space=smem, size = 0x4, offset = 0x4, fixed_abs, tag = 'smem constant byte address 0x4 - core index']
  #allocation1 [shape = 'u32[72,128]{1,0:T(1,128)}', space=vmem, size = 0x9000, scoped, tag = 'internal scratch']
  %s0 = inlined_call_operand.hbm [shape: f32[8,128], index: 0, kind: input, shape index: {}]
  %s1 = inlined_call_operand.hbm [shape: f32[8,128], index: 1, kind: output, shape index: {}]
  %s2 = sld [smem:[#allocation0]]
  $region18: #{tpu_custom_call.1} parent=0
    _
  %s4 = ssub.s32 1, %s2
  %s5 = scalar_select 0, %s4, %s2
  $region1: #{tpu_custom_call.1} parent=0
    #allocation2 [shape = 'u8[4096]{0}', space=vmem, size = 0x1000, scoped, tag = 'input window, operand 0, single buffered']
    #allocation3 [shape = 's32[1]{0}', space=sflag, size = 0x4, scoped, tag = 'scoped memory for tpu_custom_call.1']
    #allocation4 [shape = 's32[1]{0}', space=sflag, size = 0x4, scoped, tag = 'scoped memory for tpu_custom_call.1']
    #allocation5 [shape = 'u8[4096]{0}', space=vmem, size = 0x1000, scoped, tag = 'output window, operand 0, single buffered']
    %6 = vsyncpa [#allocation3], 0
    %7 = vsyncpa [#allocation4], 0
    // Predicated region
    $region2: #{tpu_custom_call.1} parent=1 // pred_check
      _
    $region3: #{tpu_custom_call.1} parent=1 // pred_check_branch
      %9 = sbr.rel (0) target = $region5
    $region4: #{tpu_custom_call.1} parent=1 // pred_region
      %11 = vsyncadd [#allocation3], 0
      %s13 = sshll.u32 %s0, 4
      %s14 = int_to_ptr.hbm [resolvable:$true] %s13
      %s15 = sshll.u32 [#allocation2], 4
      %s16 = int_to_ptr.vmem [resolvable:$true] %s15
      %18 = dma.hbm_to_vmem [thread:$0]  %s14, 128, %s16, [#allocation3]
    $region5: #{tpu_custom_call.1} parent=1 // pred_fallthru
      _
    // Predicated region
    $region6: #{tpu_custom_call.1} parent=1 // pred_check
      _
    $region7: #{tpu_custom_call.1} parent=1 // pred_check_branch
      %20 = sbr.rel (0) target = $region9
    $region8: #{tpu_custom_call.1} parent=1 // pred_region
      %22 = dma.done [#allocation3], 128
    $region9: #{tpu_custom_call.1} parent=1 // pred_fallthru
      _
    %v23 = vld [vmem:[#allocation2] sm:$0xff]
    %24 = vst [vmem:[#allocation5] sm:$0xff] %v23
    // Predicated region
    $region10: #{tpu_custom_call.1} parent=1 // pred_check
      _
    $region11: #{tpu_custom_call.1} parent=1 // pred_check_branch
      %26 = sbr.rel (0) target = $region13
    $region12: #{tpu_custom_call.1} parent=1 // pred_region
      %28 = vsyncadd [#allocation4], 0
      %s30 = sshll.u32 [#allocation5], 4
      %s31 = int_to_ptr.vmem [resolvable:$true] %s30
      %s32 = sshll.u32 %s1, 4
      %s33 = int_to_ptr.hbm [resolvable:$true] %s32
      %35 = dma.vmem_to_hbm [thread:$0]  %s31, 128, %s33, [#allocation4]
    $region13: #{tpu_custom_call.1} parent=1 // pred_fallthru
      _
    // Predicated region
    $region14: #{tpu_custom_call.1} parent=1 // pred_check
      _
    $region15: #{tpu_custom_call.1} parent=1 // pred_check_branch
      %37 = sbr.rel (0) target = $region17
    $region16: #{tpu_custom_call.1} parent=1 // pred_region
      %39 = dma.done [#allocation4], 128
    $region17: #{tpu_custom_call.1} parent=1 // pred_fallthru
      _
    %40 = vsyncpa [#allocation3], 1
    %41 = vsyncpa [#allocation4], 1

// kernel: tpu_custom_call.1
$region0: #{tpu_custom_call.1}
  #allocation0 [shape = 'u32[]', space=smem, size = 0x4, offset = 0x4, fixed_abs, tag = 'smem constant byte address 0x4 - core index']
  #allocation1 [shape = 'u32[72,128]{1,0:T(1,128)}', space=vmem, size = 0x9000, scoped, tag = 'internal scratch']
  %s0 = inlined_call_operand.hbm [shape: f32[2,16,2560], index: 0, kind: input, shape index: {}]
  %s1 = inlined_call_operand.hbm [shape: f32[2,16,2560], index: 1, kind: input, shape index: {}]
  %s2 = inlined_call_operand.hbm [shape: f32[2,16,2560], index: 2, kind: input, shape index: {}]
  %s3 = inlined_call_operand.vmem [shape: f32[8,48], index: 3, kind: input, shape index: {}]
  %s4 = inlined_call_operand.vmem [shape: f32[8,1], index: 4, kind: input, shape index: {}]
  %s5 = inlined_call_operand.hbm [shape: f32[2,8,2560], index: 5, kind: output, shape index: {}]
  %s6 = sld [smem:[#allocation0]]
  $region65: #{tpu_custom_call.1} parent=0
    _
  %s8 = ssub.s32 1, %s6
  %s9 = scalar_select 0, %s8, %s6
  $region1: #{tpu_custom_call.1} parent=0
    #allocation2 [shape = 'u8[16384]{0}', space=vmem, size = 0x4000, scoped, tag = 'input window, operand 0']
    #allocation3 [shape = 's32[2]{0}', space=sflag, size = 0x8, scoped, tag = 'scoped memory for tpu_custom_call.1']
    #allocation4 [shape = 's32[2]{0}', space=sflag, size = 0x8, scoped, tag = 'scoped memory for tpu_custom_call.1']
    #allocation5 [shape = 'u8[327680]{0}', space=vmem, size = 0x50000, scoped, tag = 'input window, operand 1']
    #allocation6 [shape = 's32[2]{0}', space=sflag, size = 0x8, scoped, tag = 'scoped memory for tpu_custom_call.1']
    #allocation7 [shape = 'u8[16384]{0}', space=vmem, size = 0x4000, scoped, tag = 'input window, operand 2']
    #allocation8 [shape = 'u8[163840]{0}', space=vmem, size = 0x28000, scoped, tag = 'output window, operand 0']
    %10 = vsyncpa [#allocation3], 0
    %s11 = scalar_lea.sflag [#allocation3], 1
    %12 = vsyncpa %s11, 0
    %13 = vsyncpa [#allocation6], 0
    %s14 = scalar_lea.sflag [#allocation6], 1
    %15 = vsyncpa %s14, 0
    %16 = vsyncpa [#allocation4], 0
    %s17 = scalar_lea.sflag [#allocation4], 1
    %18 = vsyncpa %s17, 0
    loop: start=0, step=1, limit=4
    $region2: #{tpu_custom_call.1} parent=1 // loop_pre_header
      _
    $region3: #{tpu_custom_call.1} parent=1 // loop_header
      %s20 = sphi 0, %s24
      %p21 = scmp.ge.s32.totalorder %s20, 4
      %s27 = sphi 0, %s39
      %s28 = sphi 0, %s35
      %s29 = sphi 0, %s27
      %s30 = sphi 0, %s28
      %s31 = sphi 0, %s29
      %s32 = sphi 0, %s30
      %s52 = sphi 0, %s54
      %s55 = sphi 0, %s52
      %s56 = sphi 0, %s55
      %s72 = sphi 0, %s56
      %s80 = sphi 0, %s82
      %s83 = sphi 0, %s80
      %s84 = sphi 0, %s83
      %s100 = sphi 0, %s84
      %s116 = sphi 0, %s118
      %s119 = sphi 0, %s116
      %s120 = sphi 0, %s119
      %s136 = sphi 0, %s120
      %s140 = sphi 0, %s140
      %s142 = sphi 0, %s140
      %s143 = sphi 0, %s142
      %s157 = sphi 0, %s143
      %s161 = sphi 0, %s161
      %s163 = sphi 0, %s161
      %s164 = sphi 0, %s163
      %s178 = sphi 0, %s164
      %s186 = sphi 0, %s188
      %s189 = sphi 0, %s186
      %s190 = sphi 0, %s189
      %s206 = sphi 0, %s190
    $region4: #{tpu_custom_call.1} parent=1 // loop_header_branch
      %23 = sbr.rel (%p21) target = $region8
    $region5: #{tpu_custom_call.1} parent=1 // loop_body
      %s25 = ssub.s32 %s20, 1
      %s26 = ssub.s32 %s20, 2
      %s33 = sadd.s32 1, %s28
      %p34 = scmp.ge.s32.totalorder %s33, 1
      %s35 = scalar_select %p34, 0, %s33
      %s36 = sadd.s32 1, %s27
      %s37 = scalar_select %p34, %s36, %s27
      %p38 = scmp.ge.s32.totalorder %s37, 2
      %s39 = scalar_select %p38, 0, %s37
      %s40 = smul.u32 %s28, 20
      %s41 = ssub.s32 %s40, 1
      %p42 = scmp.gt.s32.totalorder %s41, 0
      %s43 = scalar_select %p42, %s41, 0
      %s44 = smul.u32 %s35, 20
      %s45 = ssub.s32 %s44, 1
      %p46 = scmp.gt.s32.totalorder %s45, 0
      %s47 = scalar_select %p46, %s45, 0
      %s48 = ssub.s32 %s27, %s39
      %s49 = ssub.s32 %s43, %s47
      %s50 = sor.u32 %s48, %s49
      %p51 = scmp.eq.s32.totalorder %s50, 0
      %s53 = sadd.s32 %s52, 1
      %s54 = scalar_select %p51, %s52, %s53
      %p57 = pneg %p51
      %p58 = scmp.eq.s32.totalorder %s20, 1
      %p59 = por %p57, %p58
      %p60 = scmp.ne.s32.totalorder %s52, %s55
      %p61 = scmp.eq.s32.totalorder %s20, 0
      %p62 = por %p60, %p61
      %p63 = scmp.ne.s32.totalorder %s52, %s55
      %p64 = scmp.eq.s32.totalorder %s25, 1
      %p65 = por %p63, %p64
      %p66 = scmp.ne.s32.totalorder %s55, %s56
      %p67 = scmp.eq.s32.totalorder %s25, 0
      %p68 = por %p66, %p67
      %p69 = scmp.ne.s32.totalorder %s55, %s56
      %p70 = scmp.eq.s32.totalorder %s26, 1
      %p71 = por %p69, %p70
      %p73 = scmp.ne.s32.totalorder %s56, %s72
      %p74 = scmp.eq.s32.totalorder %s26, 0
      %p75 = por %p73, %p74
      %s76 = ssub.s32 %s27, %s39
      %s77 = ssub.s32 %s28, %s35
      %s78 = sor.u32 %s76, %s77
      %p79 = scmp.eq.s32.totalorder %s78, 0
      %s81 = sadd.s32 %s80, 1
      %s82 = scalar_select %p79, %s80, %s81
      %p85 = pneg %p79
      %p86 = scmp.eq.s32.totalorder %s20, 1
      %p87 = por %p85, %p86
      %p88 = scmp.ne.s32.totalorder %s80, %s83
      %p89 = scmp.eq.s32.totalorder %s20, 0
      %p90 = por %p88, %p89
      %p91 = scmp.ne.s32.totalorder %s80, %s83
      %p92 = scmp.eq.s32.totalorder %s25, 1
      %p93 = por %p91, %p92
      %p94 = scmp.ne.s32.totalorder %s83, %s84
      %p95 = scmp.eq.s32.totalorder %s25, 0
      %p96 = por %p94, %p95
      %p97 = scmp.ne.s32.totalorder %s83, %s84
      %p98 = scmp.eq.s32.totalorder %s26, 1
      %p99 = por %p97, %p98
      %p101 = scmp.ne.s32.totalorder %s84, %s100
      %p102 = scmp.eq.s32.totalorder %s26, 0
      %p103 = por %p101, %p102
      %s104 = sadd.s32 %s28, 1
      %s105 = smul.u32 %s104, 20
      %p106 = scmp.lt.s32.totalorder %s105, 19
      %s107 = scalar_select %p106, %s105, 19
      %s108 = sadd.s32 %s35, 1
      %s109 = smul.u32 %s108, 20
      %p110 = scmp.lt.s32.totalorder %s109, 19
      %s111 = scalar_select %p110, %s109, 19
      %s112 = ssub.s32 %s27, %s39
      %s113 = ssub.s32 %s107, %s111
      %s114 = sor.u32 %s112, %s113
      %p115 = scmp.eq.s32.totalorder %s114, 0
      %s117 = sadd.s32 %s116, 1
      %s118 = scalar_select %p115, %s116, %s117
      %p121 = pneg %p115
      %p122 = scmp.eq.s32.totalorder %s20, 1
      %p123 = por %p121, %p122
      %p124 = scmp.ne.s32.totalorder %s116, %s119
      %p125 = scmp.eq.s32.totalorder %s20, 0
      %p126 = por %p124, %p125
      %p127 = scmp.ne.s32.totalorder %s116, %s119
      %p128 = scmp.eq.s32.totalorder %s25, 1
      %p129 = por %p127, %p128
      %p130 = scmp.ne.s32.totalorder %s119, %s120
      %p131 = scmp.eq.s32.totalorder %s25, 0
      %p132 = por %p130, %p131
      %p133 = scmp.ne.s32.totalorder %s119, %s120
      %p134 = scmp.eq.s32.totalorder %s26, 1
      %p135 = por %p133, %p134
      %p137 = scmp.ne.s32.totalorder %s120, %s136
      %p138 = scmp.eq.s32.totalorder %s26, 0
      %p139 = por %p137, %p138
      %s141 = sadd.s32 %s140, 1
      %p144 = scmp.eq.s32.totalorder %s20, 1
      %p145 = scmp.ne.s32.totalorder %s140, %s142
      %p146 = scmp.eq.s32.totalorder %s20, 0
      %p147 = por %p145, %p146
      %p148 = scmp.ne.s32.totalorder %s140, %s142
      %p149 = scmp.eq.s32.totalorder %s25, 1
      %p150 = por %p148, %p149
      %p151 = scmp.ne.s32.totalorder %s142, %s143
      %p152 = scmp.eq.s32.totalorder %s25, 0
      %p153 = por %p151, %p152
      %p154 = scmp.ne.s32.totalorder %s142, %s143
      %p155 = scmp.eq.s32.totalorder %s26, 1
      %p156 = por %p154, %p155
      %p158 = scmp.ne.s32.totalorder %s143, %s157
      %p159 = scmp.eq.s32.totalorder %s26, 0
      %p160 = por %p158, %p159
      %s162 = sadd.s32 %s161, 1
      %p165 = scmp.eq.s32.totalorder %s20, 1
      %p166 = scmp.ne.s32.totalorder %s161, %s163
      %p167 = scmp.eq.s32.totalorder %s20, 0
      %p168 = por %p166, %p167
      %p169 = scmp.ne.s32.totalorder %s161, %s163
      %p170 = scmp.eq.s32.totalorder %s25, 1
      %p171 = por %p169, %p170
      %p172 = scmp.ne.s32.totalorder %s163, %s164
      %p173 = scmp.eq.s32.totalorder %s25, 0
      %p174 = por %p172, %p173
      %p175 = scmp.ne.s32.totalorder %s163, %s164
      %p176 = scmp.eq.s32.totalorder %s26, 1
      %p177 = por %p175, %p176
      %p179 = scmp.ne.s32.totalorder %s164, %s178
      %p180 = scmp.eq.s32.totalorder %s26, 0
      %p181 = por %p179, %p180
      %s182 = ssub.s32 %s27, %s39
      %s183 = ssub.s32 %s28, %s35
      %s184 = sor.u32 %s182, %s183
      %p185 = scmp.eq.s32.totalorder %s184, 0
      %s187 = sadd.s32 %s186, 1
      %s188 = scalar_select %p185, %s186, %s187
      %p191 = pneg %p185
      %p192 = scmp.eq.s32.totalorder %s20, 1
      %p193 = por %p191, %p192
      %p194 = scmp.ne.s32.totalorder %s186, %s189
      %p195 = scmp.eq.s32.totalorder %s20, 0
      %p196 = por %p194, %p195
      %p197 = scmp.ne.s32.totalorder %s186, %s189
      %p198 = scmp.eq.s32.totalorder %s25, 1
      %p199 = por %p197, %p198
      %p200 = scmp.ne.s32.totalorder %s189, %s190
      %p201 = scmp.eq.s32.totalorder %s25, 0
      %p202 = por %p200, %p201
      %p203 = scmp.ne.s32.totalorder %s189, %s190
      %p204 = scmp.eq.s32.totalorder %s26, 1
      %p205 = por %p203, %p204
      %p207 = scmp.ne.s32.totalorder %s190, %s206
      %p208 = scmp.eq.s32.totalorder %s26, 0
      %p209 = por %p207, %p208
      %p210 = scmp.le.s32.totalorder 1, %s20
      %p211 = scmp.lt.s32.totalorder %s20, 3
      %p212 = pnand %p210, %p211
      %p213 = pneg %p212
      // Predicated region
      $region9: #{tpu_custom_call.1} parent=5 // pred_check
        _
      $region10: #{tpu_custom_call.1} parent=5 // pred_check_branch
        %215 = sbr.rel (%p212) target = $region12
      $region11: #{tpu_custom_call.1} parent=5 // pred_region
        %s216 = ssub.s32 %s20, 1
        // Predicated region
        $region13: #{tpu_custom_call.1} parent=11 // pred_check
          %p217 = pneg %p153
        $region14: #{tpu_custom_call.1} parent=11 // pred_check_branch
          %219 = sbr.rel (%p217) target = $region16
        $region15: #{tpu_custom_call.1} parent=11 // pred_region
          _
        $region16: #{tpu_custom_call.1} parent=11 // pred_fallthru
          _
        // Predicated region
        $region17: #{tpu_custom_call.1} parent=11 // pred_check
          %p220 = pneg %p174
        $region18: #{tpu_custom_call.1} parent=11 // pred_check_branch
          %222 = sbr.rel (%p220) target = $region20
        $region19: #{tpu_custom_call.1} parent=11 // pred_region
          _
        $region20: #{tpu_custom_call.1} parent=11 // pred_fallthru
          _
      $region12: #{tpu_custom_call.1} parent=5 // pred_fallthru
        _
      %p223 = scmp.lt.s32.totalorder %s20, 2
      // Predicated region
      $region21: #{tpu_custom_call.1} parent=5 // pred_check
        %p224 = pneg %p223
      $region22: #{tpu_custom_call.1} parent=5 // pred_check_branch
        %226 = sbr.rel (%p224) target = $region24
      $region23: #{tpu_custom_call.1} parent=5 // pred_region
        // Predicated region
        $region25: #{tpu_custom_call.1} parent=23 // pred_check
          %p227 = pneg %p62
        $region26: #{tpu_custom_call.1} parent=23 // pred_check_branch
          %229 = sbr.rel (%p227) target = $region28
        $region27: #{tpu_custom_call.1} parent=23 // pred_region
          %s230 = sand.u32 %s52, 1
          %s231 = scalar_lea.sflag [#allocation3], %s230
          %s232 = sand.u32 %s52, 1
          %s233 = smul.addr %s232, 16
          %s234 = scalar_lea.vmem [#allocation2], %s233
          %s235 = smul.u32 %s28, 20
          %s236 = ssub.s32 %s235, 1
          %p237 = scmp.gt.s32.totalorder %s236, 0
          %s238 = scalar_select %p237, %s236, 0
          %240 = vsyncadd %s231, 0
          %s241 = smul.addr %s27, 40
          %s242 = sadd.s32 %s238, %s241
          %s243 = smul.addr %s242, 8
          %s244 = scalar_lea.hbm %s0, %s243
          %s245 = sshll.u32 %s244, 4
          %s246 = int_to_ptr.hbm [resolvable:$true] %s245
          %s247 = sshll.u32 %s234, 4
          %s248 = int_to_ptr.vmem [resolvable:$true] %s247
          %253 = dma.hbm_to_vmem [thread:$0]  %s246, 256, %s248, %s231, 2560, 128, 8
        $region28: #{tpu_custom_call.1} parent=23 // pred_fallthru
          _
        // Predicated region
        $region29: #{tpu_custom_call.1} parent=23 // pred_check
          %p254 = pneg %p90
        $region30: #{tpu_custom_call.1} parent=23 // pred_check_branch
          %256 = sbr.rel (%p254) target = $region32
        $region31: #{tpu_custom_call.1} parent=23 // pred_region
          %s257 = sand.u32 %s20, 1
          %s258 = scalar_lea.sflag [#allocation6], %s257
          %s259 = sand.u32 %s80, 1
          %s260 = smul.addr %s259, 320
          %s261 = scalar_lea.vmem [#allocation5], %s260
          %s262 = smul.u32 20, %s28
          %264 = vsyncadd %s258, 0
          %s265 = smul.addr %s27, 40
          %s266 = sadd.s32 %s262, %s265
          %s267 = smul.addr %s266, 8
          %s268 = scalar_lea.hbm %s1, %s267
          %s269 = sshll.u32 %s268, 4
          %s270 = int_to_ptr.hbm [resolvable:$true] %s269
          %s271 = sshll.u32 %s261, 4
          %s272 = int_to_ptr.vmem [resolvable:$true] %s271
          %277 = dma.hbm_to_vmem [thread:$0]  %s270, 5120, %s272, %s258, 2560, 2560, 160
        $region32: #{tpu_custom_call.1} parent=23 // pred_fallthru
          _
        // Predicated region
        $region33: #{tpu_custom_call.1} parent=23 // pred_check
          %p278 = pneg %p126
        $region34: #{tpu_custom_call.1} parent=23 // pred_check_branch
          %280 = sbr.rel (%p278) target = $region36
        $region35: #{tpu_custom_call.1} parent=23 // pred_region
          %s281 = sand.u32 %s20, 1
          %s282 = scalar_lea.sflag [#allocation6], %s281
          %s283 = sand.u32 %s116, 1
          %s284 = smul.addr %s283, 16
          %s285 = scalar_lea.vmem [#allocation7], %s284
          %s286 = sadd.s32 %s28, 1
          %s287 = smul.u32 %s286, 20
          %p288 = scmp.lt.s32.totalorder %s287, 19
          %s289 = scalar_select %p288, %s287, 19
          %291 = vsyncadd %s282, 0
          %s292 = smul.addr %s27, 40
          %s293 = sadd.s32 %s289, %s292
          %s294 = smul.addr %s293, 8
          %s295 = scalar_lea.hbm %s2, %s294
          %s296 = sshll.u32 %s295, 4
          %s297 = int_to_ptr.hbm [resolvable:$true] %s296
          %s298 = sshll.u32 %s285, 4
          %s299 = int_to_ptr.vmem [resolvable:$true] %s298
          %304 = dma.hbm_to_vmem [thread:$0]  %s297, 256, %s299, %s282, 2560, 128, 8
        $region36: #{tpu_custom_call.1} parent=23 // pred_fallthru
          _
      $region24: #{tpu_custom_call.1} parent=5 // pred_fallthru
        _
      %p305 = scmp.le.s32.totalorder 1, %s20
      %p306 = scmp.lt.s32.totalorder %s20, 3
      %p307 = pnand %p305, %p306
      %p308 = pneg %p307
      // Predicated region
      $region37: #{tpu_custom_call.1} parent=5 // pred_check
        _
      $region38: #{tpu_custom_call.1} parent=5 // pred_check_branch
        %310 = sbr.rel (%p307) target = $region40
      $region39: #{tpu_custom_call.1} parent=5 // pred_region
        %s311 = ssub.s32 %s20, 1
        %s312 = sand.u32 %s55, 1
        %s313 = scalar_lea.sflag [#allocation3], %s312
        %s314 = sand.u32 %s55, 1
        %s315 = smul.addr %s314, 16
        %s316 = scalar_lea.vmem [#allocation2], %s315
        // Predicated region
        $region41: #{tpu_custom_call.1} parent=39 // pred_check
          %p317 = pneg %p68
        $region42: #{tpu_custom_call.1} parent=39 // pred_check_branch
          %319 = sbr.rel (%p317) target = $region44
        $region43: #{tpu_custom_call.1} parent=39 // pred_region
          %321 = dma.done %s313, 256
        $region44: #{tpu_custom_call.1} parent=39 // pred_fallthru
          _
        %s322 = sand.u32 %s25, 1
        %s323 = scalar_lea.sflag [#allocation6], %s322
        %s324 = sand.u32 %s83, 1
        %s325 = smul.addr %s324, 320
        %s326 = scalar_lea.vmem [#allocation5], %s325
        // Predicated region
        $region45: #{tpu_custom_call.1} parent=39 // pred_check
          %p327 = pneg %p96
        $region46: #{tpu_custom_call.1} parent=39 // pred_check_branch
          %329 = sbr.rel (%p327) target = $region48
        $region47: #{tpu_custom_call.1} parent=39 // pred_region
          %331 = dma.done %s323, 5120
        $region48: #{tpu_custom_call.1} parent=39 // pred_fallthru
          _
        %s332 = sand.u32 %s25, 1
        %s333 = scalar_lea.sflag [#allocation6], %s332
        %s334 = sand.u32 %s119, 1
        %s335 = smul.addr %s334, 16
        %s336 = scalar_lea.vmem [#allocation7], %s335
        // Predicated region
        $region49: #{tpu_custom_call.1} parent=39 // pred_check
          %p337 = pneg %p132
        $region50: #{tpu_custom_call.1} parent=39 // pred_check_branch
          %339 = sbr.rel (%p337) target = $region52
        $region51: #{tpu_custom_call.1} parent=39 // pred_region
          %341 = dma.done %s333, 256
        $region52: #{tpu_custom_call.1} parent=39 // pred_fallthru
          _
        %s342 = sand.u32 %s55, 1
        %s343 = scalar_lea.sflag [#allocation3], %s342
        %s344 = sand.u32 %s55, 1
        %s345 = smul.addr %s344, 16
        %s346 = scalar_lea.vmem [#allocation2], %s345
        %p347 = pneg %p68
        %p348 = pneg %p65
        %s349 = sand.u32 %s25, 1
        %s350 = scalar_lea.sflag [#allocation6], %s349
        %s351 = sand.u32 %s83, 1
        %s352 = smul.addr %s351, 320
        %s353 = scalar_lea.vmem [#allocation5], %s352
        %p354 = pneg %p96
        %p355 = pneg %p93
        %s356 = sand.u32 %s25, 1
        %s357 = scalar_lea.sflag [#allocation6], %s356
        %s358 = sand.u32 %s119, 1
        %s359 = smul.addr %s358, 16
        %s360 = scalar_lea.vmem [#allocation7], %s359
        %p361 = pneg %p132
        %p362 = pneg %p129
        %p363 = pneg %p153
        %p364 = pneg %p150
        %p365 = pneg %p174
        %p366 = pneg %p171
        %p367 = pneg %p202
        %p368 = pneg %p199
        %s369 = sand.u32 %s189, 1
        %s370 = scalar_lea.sflag [#allocation4], %s369
        %s371 = sand.u32 %s189, 1
        %s372 = smul.addr %s371, 160
        %s373 = scalar_lea.vmem [#allocation8], %s372
        %s374 = smul.u32 %s30, 20
        %s375 = ssub.s32 %s374, 1
        %p376 = scmp.gt.s32.totalorder %s375, 0
        %s377 = scalar_select %p376, %s375, 0
        %s378 = smul.u32 20, %s30
        %s379 = sadd.s32 %s30, 1
        %s380 = smul.u32 %s379, 20
        %p381 = scmp.lt.s32.totalorder %s380, 19
        %s382 = scalar_select %p381, %s380, 19
        %s383 = smul.u32 20, %s30
        %v384 = vld [vmem:[%s316] sm:$0xff]
        %v385 = vld [vmem:[%s316 + $0x8] sm:$0xff]
        %v386 = vld [vmem:[%s326] sm:$0xff]
        %v387 = vld [vmem:[%s326 + $0x8] sm:$0xff]
        %v388 = vld [vmem:[%s326 + $0x10] sm:$0xff]
        %v389 = vld [vmem:[%s326 + $0x18] sm:$0xff]
        %v390 = vld [vmem:[%s326 + $0x20] sm:$0xff]
        %v391 = vld [vmem:[%s326 + $0x28] sm:$0xff]
        %v392 = vld [vmem:[%s326 + $0x30] sm:$0xff]
        %v393 = vld [vmem:[%s326 + $0x38] sm:$0xff]
        %v394 = vld [vmem:[%s326 + $0x40] sm:$0xff]
        %v395 = vld [vmem:[%s326 + $0x48] sm:$0xff]
        %v396 = vld [vmem:[%s326 + $0x50] sm:$0xff]
        %v397 = vld [vmem:[%s326 + $0x58] sm:$0xff]
        %v398 = vld [vmem:[%s326 + $0x60] sm:$0xff]
        %v399 = vld [vmem:[%s326 + $0x68] sm:$0xff]
        %v400 = vld [vmem:[%s326 + $0x70] sm:$0xff]
        %v401 = vld [vmem:[%s326 + $0x78] sm:$0xff]
        %v402 = vld [vmem:[%s326 + $0x80] sm:$0xff]
        %v403 = vld [vmem:[%s326 + $0x88] sm:$0xff]
        %v404 = vld [vmem:[%s326 + $0x90] sm:$0xff]
        %v405 = vld [vmem:[%s326 + $0x98] sm:$0xff]
        %v406 = vld [vmem:[%s326 + $0xa0] sm:$0xff]
        %v407 = vld [vmem:[%s326 + $0xa8] sm:$0xff]
        %v408 = vld [vmem:[%s326 + $0xb0] sm:$0xff]
        %v409 = vld [vmem:[%s326 + $0xb8] sm:$0xff]
        %v410 = vld [vmem:[%s326 + $0xc0] sm:$0xff]
        %v411 = vld [vmem:[%s326 + $0xc8] sm:$0xff]
        %v412 = vld [vmem:[%s326 + $0xd0] sm:$0xff]
        %v413 = vld [vmem:[%s326 + $0xd8] sm:$0xff]
        %v414 = vld [vmem:[%s326 + $0xe0] sm:$0xff]
        %v415 = vld [vmem:[%s326 + $0xe8] sm:$0xff]
        %v416 = vld [vmem:[%s326 + $0xf0] sm:$0xff]
        %v417 = vld [vmem:[%s326 + $0xf8] sm:$0xff]
        %v418 = vld [vmem:[%s326 + $0x100] sm:$0xff]
        %v419 = vld [vmem:[%s326 + $0x108] sm:$0xff]
        %v420 = vld [vmem:[%s326 + $0x110] sm:$0xff]
        %v421 = vld [vmem:[%s326 + $0x118] sm:$0xff]
        %v422 = vld [vmem:[%s326 + $0x120] sm:$0xff]
        %v423 = vld [vmem:[%s326 + $0x128] sm:$0xff]
        %v424 = vld [vmem:[%s326 + $0x130] sm:$0xff]
        %v425 = vld [vmem:[%s326 + $0x138] sm:$0xff]
        %v426 = vld [vmem:[%s336] sm:$0xff]
        %v427 = vld [vmem:[%s336 + $0x8] sm:$0xff]
        %s428 = smul.u32 %s30, 2560
        %s429 = ssub.s32 %s428, 128
        %v430 = vlaneseq
        %v431 = vand.u32 %v430, 127
        %v432 = vadd.s32 %v431, 128
        %v433 = vadd.s32 %v431, 256
        %v434 = vadd.s32 %v431, 384
        %v435 = vadd.s32 %v431, 512
        %v436 = vadd.s32 %v431, 640
        %v437 = vadd.s32 %v431, 768
        %v438 = vadd.s32 %v431, 896
        %v439 = vadd.s32 %v431, 1024
        %v440 = vadd.s32 %v431, 1152
        %v441 = vadd.s32 %v431, 1280
        %v442 = vadd.s32 %v431, 1408
        %v443 = vadd.s32 %v431, 1536
        %v444 = vadd.s32 %v431, 1664
        %v445 = vadd.s32 %v431, 1792
        %v446 = vadd.s32 %v431, 1920
        %v447 = vadd.s32 %v431, 2048
        %v448 = vadd.s32 %v431, 2176
        %v449 = vadd.s32 %v431, 2304
        %v450 = vadd.s32 %v431, 2432
        %v451 = vadd.s32 %v431, 2560
        %v452 = vadd.s32 %v431, 2688
        %v453 = vstv %s429
        %v454 = vadd.s32 %v453, %v431
        %v455 = vadd.s32 %v453, %v432
        %v456 = vadd.s32 %v453, %v433
        %v457 = vadd.s32 %v453, %v434
        %v458 = vadd.s32 %v453, %v435
        %v459 = vadd.s32 %v453, %v436
        %v460 = vadd.s32 %v453, %v437
        %v461 = vadd.s32 %v453, %v438
        %v462 = vadd.s32 %v453, %v439
        %v463 = vadd.s32 %v453, %v440
        %v464 = vadd.s32 %v453, %v441
        %v465 = vadd.s32 %v453, %v442
        %v466 = vadd.s32 %v453, %v443
        %v467 = vadd.s32 %v453, %v444
        %v468 = vadd.s32 %v453, %v445
        %v469 = vadd.s32 %v453, %v446
        %v470 = vadd.s32 %v453, %v447
        %v471 = vadd.s32 %v453, %v448
        %v472 = vadd.s32 %v453, %v449
        %v473 = vadd.s32 %v453, %v450
        %v474 = vadd.s32 %v453, %v451
        %v475 = vadd.s32 %v453, %v452
        %vm476 = vcmp.ge.s32.totalorder %v454, 0
        %vm477 = vcmp.ge.s32.totalorder %v455, 0
        %vm478 = vcmp.ge.s32.totalorder %v456, 0
        %vm479 = vcmp.ge.s32.totalorder %v457, 0
        %vm480 = vcmp.ge.s32.totalorder %v458, 0
        %vm481 = vcmp.ge.s32.totalorder %v459, 0
        %vm482 = vcmp.ge.s32.totalorder %v460, 0
        %vm483 = vcmp.ge.s32.totalorder %v461, 0
        %vm484 = vcmp.ge.s32.totalorder %v462, 0
        %vm485 = vcmp.ge.s32.totalorder %v463, 0
        %vm486 = vcmp.ge.s32.totalorder %v464, 0
        %vm487 = vcmp.ge.s32.totalorder %v465, 0
        %vm488 = vcmp.ge.s32.totalorder %v466, 0
        %vm489 = vcmp.ge.s32.totalorder %v467, 0
        %vm490 = vcmp.ge.s32.totalorder %v468, 0
        %vm491 = vcmp.ge.s32.totalorder %v469, 0
        %vm492 = vcmp.ge.s32.totalorder %v470, 0
        %vm493 = vcmp.ge.s32.totalorder %v471, 0
        %vm494 = vcmp.ge.s32.totalorder %v472, 0
        %vm495 = vcmp.ge.s32.totalorder %v473, 0
        %vm496 = vcmp.ge.s32.totalorder %v474, 0
        %vm497 = vcmp.ge.s32.totalorder %v475, 0
        %vm498 = vcmp.lt.s32.totalorder %v454, 2500
        %vm499 = vcmp.lt.s32.totalorder %v455, 2500
        %vm500 = vcmp.lt.s32.totalorder %v456, 2500
        %vm501 = vcmp.lt.s32.totalorder %v457, 2500
        %vm502 = vcmp.lt.s32.totalorder %v458, 2500
        %vm503 = vcmp.lt.s32.totalorder %v459, 2500
        %vm504 = vcmp.lt.s32.totalorder %v460, 2500
        %vm505 = vcmp.lt.s32.totalorder %v461, 2500
        %vm506 = vcmp.lt.s32.totalorder %v462, 2500
        %vm507 = vcmp.lt.s32.totalorder %v463, 2500
        %vm508 = vcmp.lt.s32.totalorder %v464, 2500
        %vm509 = vcmp.lt.s32.totalorder %v465, 2500
        %vm510 = vcmp.lt.s32.totalorder %v466, 2500
        %vm511 = vcmp.lt.s32.totalorder %v467, 2500
        %vm512 = vcmp.lt.s32.totalorder %v468, 2500
        %vm513 = vcmp.lt.s32.totalorder %v469, 2500
        %vm514 = vcmp.lt.s32.totalorder %v470, 2500
        %vm515 = vcmp.lt.s32.totalorder %v471, 2500
        %vm516 = vcmp.lt.s32.totalorder %v472, 2500
        %vm517 = vcmp.lt.s32.totalorder %v473, 2500
        %vm518 = vcmp.lt.s32.totalorder %v474, 2500
        %vm519 = vcmp.lt.s32.totalorder %v475, 2500
        %vm520 = vmand %vm476, %vm498
        %vm521 = vmand %vm477, %vm499
        %vm522 = vmand %vm478, %vm500
        %vm523 = vmand %vm479, %vm501
        %vm524 = vmand %vm480, %vm502
        %vm525 = vmand %vm481, %vm503
        %vm526 = vmand %vm482, %vm504
        %vm527 = vmand %vm483, %vm505
        %vm528 = vmand %vm484, %vm506
        %vm529 = vmand %vm485, %vm507
        %vm530 = vmand %vm486, %vm508
        %vm531 = vmand %vm487, %vm509
        %vm532 = vmand %vm488, %vm510
        %vm533 = vmand %vm489, %vm511
        %vm534 = vmand %vm490, %vm512
        %vm535 = vmand %vm491, %vm513
        %vm536 = vmand %vm492, %vm514
        %vm537 = vmand %vm493, %vm515
        %vm538 = vmand %vm494, %vm516
        %vm539 = vmand %vm495, %vm517
        %vm540 = vmand %vm496, %vm518
        %vm541 = vmand %vm497, %vm519
        %v542 = vsel %vm520, 1, 0
        %v543 = vsel %vm521, 1, 0
        %v544 = vsel %vm522, 1, 0
        %v545 = vsel %vm523, 1, 0
        %v546 = vsel %vm524, 1, 0
        %v547 = vsel %vm525, 1, 0
        %v548 = vsel %vm526, 1, 0
        %v549 = vsel %vm527, 1, 0
        %v550 = vsel %vm528, 1, 0
        %v551 = vsel %vm529, 1, 0
        %v552 = vsel %vm530, 1, 0
        %v553 = vsel %vm531, 1, 0
        %v554 = vsel %vm532, 1, 0
        %v555 = vsel %vm533, 1, 0
        %v556 = vsel %vm534, 1, 0
        %v557 = vsel %vm535, 1, 0
        %v558 = vsel %vm536, 1, 0
        %v559 = vsel %vm537, 1, 0
        %v560 = vsel %vm538, 1, 0
        %v561 = vsel %vm539, 1, 0
        %v562 = vsel %vm540, 1, 0
        %v563 = vsel %vm541, 1, 0
        %vm564 = vcmp.eq.s32.totalorder %v542, 1
        %vm565 = vcmp.eq.s32.totalorder %v543, 1
        %vm566 = vcmp.eq.s32.totalorder %v544, 1
        %vm567 = vcmp.eq.s32.totalorder %v545, 1
        %vm568 = vcmp.eq.s32.totalorder %v546, 1
        %vm569 = vcmp.eq.s32.totalorder %v547, 1
        %vm570 = vcmp.eq.s32.totalorder %v548, 1
        %vm571 = vcmp.eq.s32.totalorder %v549, 1
        %vm572 = vcmp.eq.s32.totalorder %v550, 1
        %vm573 = vcmp.eq.s32.totalorder %v551, 1
        %vm574 = vcmp.eq.s32.totalorder %v552, 1
        %vm575 = vcmp.eq.s32.totalorder %v553, 1
        %vm576 = vcmp.eq.s32.totalorder %v554, 1
        %vm577 = vcmp.eq.s32.totalorder %v555, 1
        %vm578 = vcmp.eq.s32.totalorder %v556, 1
        %vm579 = vcmp.eq.s32.totalorder %v557, 1
        %vm580 = vcmp.eq.s32.totalorder %v558, 1
        %vm581 = vcmp.eq.s32.totalorder %v559, 1
        %vm582 = vcmp.eq.s32.totalorder %v560, 1
        %vm583 = vcmp.eq.s32.totalorder %v561, 1
        %vm584 = vcmp.eq.s32.totalorder %v562, 1
        %vm585 = vcmp.eq.s32.totalorder %v563, 1
        %v586 = vsel %vm564, %v384, 0.0
        %v587 = vsel %vm565, %v386, 0.0
        %v588 = vsel %vm566, %v387, 0.0
        %v589 = vsel %vm567, %v388, 0.0
        %v590 = vsel %vm568, %v389, 0.0
        %v591 = vsel %vm569, %v390, 0.0
        %v592 = vsel %vm570, %v391, 0.0
        %v593 = vsel %vm571, %v392, 0.0
        %v594 = vsel %vm572, %v393, 0.0
        %v595 = vsel %vm573, %v394, 0.0
        %v596 = vsel %vm574, %v395, 0.0
        %v597 = vsel %vm575, %v396, 0.0
        %v598 = vsel %vm576, %v397, 0.0
        %v599 = vsel %vm577, %v398, 0.0
        %v600 = vsel %vm578, %v399, 0.0
        %v601 = vsel %vm579, %v400, 0.0
        %v602 = vsel %vm580, %v401, 0.0
        %v603 = vsel %vm581, %v402, 0.0
        %v604 = vsel %vm582, %v403, 0.0
        %v605 = vsel %vm583, %v404, 0.0
        %v606 = vsel %vm584, %v405, 0.0
        %v607 = vsel %vm585, %v426, 0.0
        %v608 = vsel %vm564, %v385, 0.0
        %v609 = vsel %vm565, %v406, 0.0
        %v610 = vsel %vm566, %v407, 0.0
        %v611 = vsel %vm567, %v408, 0.0
        %v612 = vsel %vm568, %v409, 0.0
        %v613 = vsel %vm569, %v410, 0.0
        %v614 = vsel %vm570, %v411, 0.0
        %v615 = vsel %vm571, %v412, 0.0
        %v616 = vsel %vm572, %v413, 0.0
        %v617 = vsel %vm573, %v414, 0.0
        %v618 = vsel %vm574, %v415, 0.0
        %v619 = vsel %vm575, %v416, 0.0
        %v620 = vsel %vm576, %v417, 0.0
        %v621 = vsel %vm577, %v418, 0.0
        %v622 = vsel %vm578, %v419, 0.0
        %v623 = vsel %vm579, %v420, 0.0
        %v624 = vsel %vm580, %v421, 0.0
        %v625 = vsel %vm581, %v422, 0.0
        %v626 = vsel %vm582, %v423, 0.0
        %v627 = vsel %vm583, %v424, 0.0
        %v628 = vsel %vm584, %v425, 0.0
        %v629 = vsel %vm585, %v427, 0.0
        %vm630 = vcmp.ge.f32.partialorder %v586, 0.0
        %vm631 = vcmp.ge.f32.partialorder %v587, 0.0
        %vm632 = vcmp.ge.f32.partialorder %v588, 0.0
        %vm633 = vcmp.ge.f32.partialorder %v589, 0.0
        %vm634 = vcmp.ge.f32.partialorder %v590, 0.0
        %vm635 = vcmp.ge.f32.partialorder %v591, 0.0
        %vm636 = vcmp.ge.f32.partialorder %v592, 0.0
        %vm637 = vcmp.ge.f32.partialorder %v593, 0.0
        %vm638 = vcmp.ge.f32.partialorder %v594, 0.0
        %vm639 = vcmp.ge.f32.partialorder %v595, 0.0
        %vm640 = vcmp.ge.f32.partialorder %v596, 0.0
        %vm641 = vcmp.ge.f32.partialorder %v597, 0.0
        %vm642 = vcmp.ge.f32.partialorder %v598, 0.0
        %vm643 = vcmp.ge.f32.partialorder %v599, 0.0
        %vm644 = vcmp.ge.f32.partialorder %v600, 0.0
        %vm645 = vcmp.ge.f32.partialorder %v601, 0.0
        %vm646 = vcmp.ge.f32.partialorder %v602, 0.0
        %vm647 = vcmp.ge.f32.partialorder %v603, 0.0
        %vm648 = vcmp.ge.f32.partialorder %v604, 0.0
        %vm649 = vcmp.ge.f32.partialorder %v605, 0.0
        %vm650 = vcmp.ge.f32.partialorder %v606, 0.0
        %vm651 = vcmp.ge.f32.partialorder %v607, 0.0
        %vm652 = vcmp.ge.f32.partialorder %v608, 0.0
        %vm653 = vcmp.ge.f32.partialorder %v609, 0.0
        %vm654 = vcmp.ge.f32.partialorder %v610, 0.0
        %vm655 = vcmp.ge.f32.partialorder %v611, 0.0
        %vm656 = vcmp.ge.f32.partialorder %v612, 0.0
        %vm657 = vcmp.ge.f32.partialorder %v613, 0.0
        %vm658 = vcmp.ge.f32.partialorder %v614, 0.0
        %vm659 = vcmp.ge.f32.partialorder %v615, 0.0
        %vm660 = vcmp.ge.f32.partialorder %v616, 0.0
        %vm661 = vcmp.ge.f32.partialorder %v617, 0.0
        %vm662 = vcmp.ge.f32.partialorder %v618, 0.0
        %vm663 = vcmp.ge.f32.partialorder %v619, 0.0
        %vm664 = vcmp.ge.f32.partialorder %v620, 0.0
        %vm665 = vcmp.ge.f32.partialorder %v621, 0.0
        %vm666 = vcmp.ge.f32.partialorder %v622, 0.0
        %vm667 = vcmp.ge.f32.partialorder %v623, 0.0
        %vm668 = vcmp.ge.f32.partialorder %v624, 0.0
        %vm669 = vcmp.ge.f32.partialorder %v625, 0.0
        %vm670 = vcmp.ge.f32.partialorder %v626, 0.0
        %vm671 = vcmp.ge.f32.partialorder %v627, 0.0
        %vm672 = vcmp.ge.f32.partialorder %v628, 0.0
        %vm673 = vcmp.ge.f32.partialorder %v629, 0.0
        %v674 = vmul.f32 %v586, 0.2
        %v675 = vmul.f32 %v587, 0.2
        %v676 = vmul.f32 %v588, 0.2
        %v677 = vmul.f32 %v589, 0.2
        %v678 = vmul.f32 %v590, 0.2
        %v679 = vmul.f32 %v591, 0.2
        %v680 = vmul.f32 %v592, 0.2
        %v681 = vmul.f32 %v593, 0.2
        %v682 = vmul.f32 %v594, 0.2
        %v683 = vmul.f32 %v595, 0.2
        %v684 = vmul.f32 %v596, 0.2
        %v685 = vmul.f32 %v597, 0.2
        %v686 = vmul.f32 %v598, 0.2
        %v687 = vmul.f32 %v599, 0.2
        %v688 = vmul.f32 %v600, 0.2
        %v689 = vmul.f32 %v601, 0.2
        %v690 = vmul.f32 %v602, 0.2
        %v691 = vmul.f32 %v603, 0.2
        %v692 = vmul.f32 %v604, 0.2
        %v693 = vmul.f32 %v605, 0.2
        %v694 = vmul.f32 %v606, 0.2
        %v695 = vmul.f32 %v607, 0.2
        %v696 = vmul.f32 %v608, 0.2
        %v697 = vmul.f32 %v609, 0.2
        %v698 = vmul.f32 %v610, 0.2
        %v699 = vmul.f32 %v611, 0.2
        %v700 = vmul.f32 %v612, 0.2
        %v701 = vmul.f32 %v613, 0.2
        %v702 = vmul.f32 %v614, 0.2
        %v703 = vmul.f32 %v615, 0.2
        %v704 = vmul.f32 %v616, 0.2
        %v705 = vmul.f32 %v617, 0.2
        %v706 = vmul.f32 %v618, 0.2
        %v707 = vmul.f32 %v619, 0.2
        %v708 = vmul.f32 %v620, 0.2
        %v709 = vmul.f32 %v621, 0.2
        %v710 = vmul.f32 %v622, 0.2
        %v711 = vmul.f32 %v623, 0.2
        %v712 = vmul.f32 %v624, 0.2
        %v713 = vmul.f32 %v625, 0.2
        %v714 = vmul.f32 %v626, 0.2
        %v715 = vmul.f32 %v627, 0.2
        %v716 = vmul.f32 %v628, 0.2
        %v717 = vmul.f32 %v629, 0.2
        %v718 = vsel %vm630, %v586, %v674
        %v719 = vsel %vm631, %v587, %v675
        %v720 = vsel %vm632, %v588, %v676
        %v721 = vsel %vm633, %v589, %v677
        %v722 = vsel %vm634, %v590, %v678
        %v723 = vsel %vm635, %v591, %v679
        %v724 = vsel %vm636, %v592, %v680
        %v725 = vsel %vm637, %v593, %v681
        %v726 = vsel %vm638, %v594, %v682
        %v727 = vsel %vm639, %v595, %v683
        %v728 = vsel %vm640, %v596, %v684
        %v729 = vsel %vm641, %v597, %v685
        %v730 = vsel %vm642, %v598, %v686
        %v731 = vsel %vm643, %v599, %v687
        %v732 = vsel %vm644, %v600, %v688
        %v733 = vsel %vm645, %v601, %v689
        %v734 = vsel %vm646, %v602, %v690
        %v735 = vsel %vm647, %v603, %v691
        %v736 = vsel %vm648, %v604, %v692
        %v737 = vsel %vm649, %v605, %v693
        %v738 = vsel %vm650, %v606, %v694
        %v739 = vsel %vm651, %v607, %v695
        %v740 = vsel %vm652, %v608, %v696
        %v741 = vsel %vm653, %v609, %v697
        %v742 = vsel %vm654, %v610, %v698
        %v743 = vsel %vm655, %v611, %v699
        %v744 = vsel %vm656, %v612, %v700
        %v745 = vsel %vm657, %v613, %v701
        %v746 = vsel %vm658, %v614, %v702
        %v747 = vsel %vm659, %v615, %v703
        %v748 = vsel %vm660, %v616, %v704
        %v749 = vsel %vm661, %v617, %v705
        %v750 = vsel %vm662, %v618, %v706
        %v751 = vsel %vm663, %v619, %v707
        %v752 = vsel %vm664, %v620, %v708
        %v753 = vsel %vm665, %v621, %v709
        %v754 = vsel %vm666, %v622, %v710
        %v755 = vsel %vm667, %v623, %v711
        %v756 = vsel %vm668, %v624, %v712
        %v757 = vsel %vm669, %v625, %v713
        %v758 = vsel %vm670, %v626, %v714
        %v759 = vsel %vm671, %v627, %v715
        %v760 = vsel %vm672, %v628, %v716
        %v761 = vsel %vm673, %v629, %v717
        %802 = vrot.lane.b32.xlu0 %v719, 125
        %v803 = vpop.permute.xlu0 %802
        %804 = vrot.lane.b32.xlu0 %v720, 125
        %v805 = vpop.permute.xlu0 %804
        %806 = vrot.lane.b32.xlu0 %v721, 125
        %v807 = vpop.permute.xlu0 %806
        %808 = vrot.lane.b32.xlu0 %v722, 125
        %v809 = vpop.permute.xlu0 %808
        %810 = vrot.lane.b32.xlu0 %v723, 125
        %v811 = vpop.permute.xlu0 %810
        %812 = vrot.lane.b32.xlu0 %v724, 125
        %v813 = vpop.permute.xlu0 %812
        %814 = vrot.lane.b32.xlu0 %v725, 125
        %v815 = vpop.permute.xlu0 %814
        %816 = vrot.lane.b32.xlu0 %v726, 125
        %v817 = vpop.permute.xlu0 %816
        %818 = vrot.lane.b32.xlu0 %v727, 125
        %v819 = vpop.permute.xlu0 %818
        %820 = vrot.lane.b32.xlu0 %v728, 125
        %v821 = vpop.permute.xlu0 %820
        %822 = vrot.lane.b32.xlu0 %v729, 125
        %v823 = vpop.permute.xlu0 %822
        %824 = vrot.lane.b32.xlu0 %v730, 125
        %v825 = vpop.permute.xlu0 %824
        %826 = vrot.lane.b32.xlu0 %v731, 125
        %v827 = vpop.permute.xlu0 %826
        %828 = vrot.lane.b32.xlu0 %v732, 125
        %v829 = vpop.permute.xlu0 %828
        %830 = vrot.lane.b32.xlu0 %v733, 125
        %v831 = vpop.permute.xlu0 %830
        %832 = vrot.lane.b32.xlu0 %v734, 125
        %v833 = vpop.permute.xlu0 %832
        %834 = vrot.lane.b32.xlu0 %v735, 125
        %v835 = vpop.permute.xlu0 %834
        %836 = vrot.lane.b32.xlu0 %v736, 125
        %v837 = vpop.permute.xlu0 %836
        %838 = vrot.lane.b32.xlu0 %v737, 125
        %v839 = vpop.permute.xlu0 %838
        %840 = vrot.lane.b32.xlu0 %v738, 125
        %v841 = vpop.permute.xlu0 %840
        %842 = vrot.lane.b32.xlu0 %v741, 125
        %v843 = vpop.permute.xlu0 %842
        %844 = vrot.lane.b32.xlu0 %v742, 125
        %v845 = vpop.permute.xlu0 %844
        %846 = vrot.lane.b32.xlu0 %v743, 125
        %v847 = vpop.permute.xlu0 %846
        %848 = vrot.lane.b32.xlu0 %v744, 125
        %v849 = vpop.permute.xlu0 %848
        %850 = vrot.lane.b32.xlu0 %v745, 125
        %v851 = vpop.permute.xlu0 %850
        %852 = vrot.lane.b32.xlu0 %v746, 125
        %v853 = vpop.permute.xlu0 %852
        %854 = vrot.lane.b32.xlu0 %v747, 125
        %v855 = vpop.permute.xlu0 %854
        %856 = vrot.lane.b32.xlu0 %v748, 125
        %v857 = vpop.permute.xlu0 %856
        %858 = vrot.lane.b32.xlu0 %v749, 125
        %v859 = vpop.permute.xlu0 %858
        %860 = vrot.lane.b32.xlu0 %v750, 125
        %v861 = vpop.permute.xlu0 %860
        %862 = vrot.lane.b32.xlu0 %v751, 125
        %v863 = vpop.permute.xlu0 %862
        %864 = vrot.lane.b32.xlu0 %v752, 125
        %v865 = vpop.permute.xlu0 %864
        %866 = vrot.lane.b32.xlu0 %v753, 125
        %v867 = vpop.permute.xlu0 %866
        %868 = vrot.lane.b32.xlu0 %v754, 125
        %v869 = vpop.permute.xlu0 %868
        %870 = vrot.lane.b32.xlu0 %v755, 125
        %v871 = vpop.permute.xlu0 %870
        %872 = vrot.lane.b32.xlu0 %v756, 125
        %v873 = vpop.permute.xlu0 %872
        %874 = vrot.lane.b32.xlu0 %v757, 125
        %v875 = vpop.permute.xlu0 %874
        %876 = vrot.lane.b32.xlu0 %v758, 125
        %v877 = vpop.permute.xlu0 %876
        %878 = vrot.lane.b32.xlu0 %v759, 125
        %v879 = vpop.permute.xlu0 %878
        %880 = vrot.lane.b32.xlu0 %v760, 125
        %v881 = vpop.permute.xlu0 %880
        %vm882 = vcmask 1022976
        %v883 = vsel %vm882, %v803, %v805
        %v884 = vsel %vm882, %v805, %v807
        %v885 = vsel %vm882, %v807, %v809
        %v886 = vsel %vm882, %v809, %v811
        %v887 = vsel %vm882, %v811, %v813
        %v888 = vsel %vm882, %v813, %v815
        %v889 = vsel %vm882, %v815, %v817
        %v890 = vsel %vm882, %v817, %v819
        %v891 = vsel %vm882, %v819, %v821
        %v892 = vsel %vm882, %v821, %v823
        %v893 = vsel %vm882, %v823, %v825
        %v894 = vsel %vm882, %v825, %v827
        %v895 = vsel %vm882, %v827, %v829
        %v896 = vsel %vm882, %v829, %v831
        %v897 = vsel %vm882, %v831, %v833
        %v898 = vsel %vm882, %v833, %v835
        %v899 = vsel %vm882, %v835, %v837
        %v900 = vsel %vm882, %v837, %v839
        %v901 = vsel %vm882, %v839, %v841
        %v902 = vsel %vm882, %v843, %v845
        %v903 = vsel %vm882, %v845, %v847
        %v904 = vsel %vm882, %v847, %v849
        %v905 = vsel %vm882, %v849, %v851
        %v906 = vsel %vm882, %v851, %v853
        %v907 = vsel %vm882, %v853, %v855
        %v908 = vsel %vm882, %v855, %v857
        %v909 = vsel %vm882, %v857, %v859
        %v910 = vsel %vm882, %v859, %v861
        %v911 = vsel %vm882, %v861, %v863
        %v912 = vsel %vm882, %v863, %v865
        %v913 = vsel %vm882, %v865, %v867
        %v914 = vsel %vm882, %v867, %v869
        %v915 = vsel %vm882, %v869, %v871
        %v916 = vsel %vm882, %v871, %v873
        %v917 = vsel %vm882, %v873, %v875
        %v918 = vsel %vm882, %v875, %v877
        %v919 = vsel %vm882, %v877, %v879
        %v920 = vsel %vm882, %v879, %v881
        %923 = vrot.lane.b32.xlu0 %v719, 122
        %v924 = vpop.permute.xlu0 %923
        %925 = vrot.lane.b32.xlu0 %v720, 122
        %v926 = vpop.permute.xlu0 %925
        %927 = vrot.lane.b32.xlu0 %v721, 122
        %v928 = vpop.permute.xlu0 %927
        %929 = vrot.lane.b32.xlu0 %v722, 122
        %v930 = vpop.permute.xlu0 %929
        %931 = vrot.lane.b32.xlu0 %v723, 122
        %v932 = vpop.permute.xlu0 %931
        %933 = vrot.lane.b32.xlu0 %v724, 122
        %v934 = vpop.permute.xlu0 %933
        %935 = vrot.lane.b32.xlu0 %v725, 122
        %v936 = vpop.permute.xlu0 %935
        %937 = vrot.lane.b32.xlu0 %v726, 122
        %v938 = vpop.permute.xlu0 %937
        %939 = vrot.lane.b32.xlu0 %v727, 122
        %v940 = vpop.permute.xlu0 %939
        %941 = vrot.lane.b32.xlu0 %v728, 122
        %v942 = vpop.permute.xlu0 %941
        %943 = vrot.lane.b32.xlu0 %v729, 122
        %v944 = vpop.permute.xlu0 %943
        %945 = vrot.lane.b32.xlu0 %v730, 122
        %v946 = vpop.permute.xlu0 %945
        %947 = vrot.lane.b32.xlu0 %v731, 122
        %v948 = vpop.permute.xlu0 %947
        %949 = vrot.lane.b32.xlu0 %v732, 122
        %v950 = vpop.permute.xlu0 %949
        %951 = vrot.lane.b32.xlu0 %v733, 122
        %v952 = vpop.permute.xlu0 %951
        %953 = vrot.lane.b32.xlu0 %v734, 122
        %v954 = vpop.permute.xlu0 %953
        %955 = vrot.lane.b32.xlu0 %v735, 122
        %v956 = vpop.permute.xlu0 %955
        %957 = vrot.lane.b32.xlu0 %v736, 122
        %v958 = vpop.permute.xlu0 %957
        %959 = vrot.lane.b32.xlu0 %v737, 122
        %v960 = vpop.permute.xlu0 %959
        %961 = vrot.lane.b32.xlu0 %v738, 122
        %v962 = vpop.permute.xlu0 %961
        %963 = vrot.lane.b32.xlu0 %v739, 122
        %v964 = vpop.permute.xlu0 %963
        %965 = vrot.lane.b32.xlu0 %v741, 122
        %v966 = vpop.permute.xlu0 %965
        %967 = vrot.lane.b32.xlu0 %v742, 122
        %v968 = vpop.permute.xlu0 %967
        %969 = vrot.lane.b32.xlu0 %v743, 122
        %v970 = vpop.permute.xlu0 %969
        %971 = vrot.lane.b32.xlu0 %v744, 122
        %v972 = vpop.permute.xlu0 %971
        %973 = vrot.lane.b32.xlu0 %v745, 122
        %v974 = vpop.permute.xlu0 %973
        %975 = vrot.lane.b32.xlu0 %v746, 122
        %v976 = vpop.permute.xlu0 %975
        %977 = vrot.lane.b32.xlu0 %v747, 122
        %v978 = vpop.permute.xlu0 %977
        %979 = vrot.lane.b32.xlu0 %v748, 122
        %v980 = vpop.permute.xlu0 %979
        %981 = vrot.lane.b32.xlu0 %v749, 122
        %v982 = vpop.permute.xlu0 %981
        %983 = vrot.lane.b32.xlu0 %v750, 122
        %v984 = vpop.permute.xlu0 %983
        %985 = vrot.lane.b32.xlu0 %v751, 122
        %v986 = vpop.permute.xlu0 %985
        %987 = vrot.lane.b32.xlu0 %v752, 122
        %v988 = vpop.permute.xlu0 %987
        %989 = vrot.lane.b32.xlu0 %v753, 122
        %v990 = vpop.permute.xlu0 %989
        %991 = vrot.lane.b32.xlu0 %v754, 122
        %v992 = vpop.permute.xlu0 %991
        %993 = vrot.lane.b32.xlu0 %v755, 122
        %v994 = vpop.permute.xlu0 %993
        %995 = vrot.lane.b32.xlu0 %v756, 122
        %v996 = vpop.permute.xlu0 %995
        %997 = vrot.lane.b32.xlu0 %v757, 122
        %v998 = vpop.permute.xlu0 %997
        %999 = vrot.lane.b32.xlu0 %v758, 122
        %v1000 = vpop.permute.xlu0 %999
        %1001 = vrot.lane.b32.xlu0 %v759, 122
        %v1002 = vpop.permute.xlu0 %1001
        %1003 = vrot.lane.b32.xlu0 %v760, 122
        %v1004 = vpop.permute.xlu0 %1003
        %1005 = vrot.lane.b32.xlu0 %v761, 122
        %v1006 = vpop.permute.xlu0 %1005
        %vm1007 = vcmask 998400
        %v1008 = vsel %vm1007, %v924, %v926
        %v1009 = vsel %vm1007, %v926, %v928
        %v1010 = vsel %vm1007, %v928, %v930
        %v1011 = vsel %vm1007, %v930, %v932
        %v1012 = vsel %vm1007, %v932, %v934
        %v1013 = vsel %vm1007, %v934, %v936
        %v1014 = vsel %vm1007, %v936, %v938
        %v1015 = vsel %vm1007, %v938, %v940
        %v1016 = vsel %vm1007, %v940, %v942
        %v1017 = vsel %vm1007, %v942, %v944
        %v1018 = vsel %vm1007, %v944, %v946
        %v1019 = vsel %vm1007, %v946, %v948
        %v1020 = vsel %vm1007, %v948, %v950
        %v1021 = vsel %vm1007, %v950, %v952
        %v1022 = vsel %vm1007, %v952, %v954
        %v1023 = vsel %vm1007, %v954, %v956
        %v1024 = vsel %vm1007, %v956, %v958
        %v1025 = vsel %vm1007, %v958, %v960
        %v1026 = vsel %vm1007, %v960, %v962
        %v1027 = vsel %vm1007, %v962, %v964
        %v1028 = vsel %vm1007, %v966, %v968
        %v1029 = vsel %vm1007, %v968, %v970
        %v1030 = vsel %vm1007, %v970, %v972
        %v1031 = vsel %vm1007, %v972, %v974
        %v1032 = vsel %vm1007, %v974, %v976
        %v1033 = vsel %vm1007, %v976, %v978
        %v1034 = vsel %vm1007, %v978, %v980
        %v1035 = vsel %vm1007, %v980, %v982
        %v1036 = vsel %vm1007, %v982, %v984
        %v1037 = vsel %vm1007, %v984, %v986
        %v1038 = vsel %vm1007, %v986, %v988
        %v1039 = vsel %vm1007, %v988, %v990
        %v1040 = vsel %vm1007, %v990, %v992
        %v1041 = vsel %vm1007, %v992, %v994
        %v1042 = vsel %vm1007, %v994, %v996
        %v1043 = vsel %vm1007, %v996, %v998
        %v1044 = vsel %vm1007, %v998, %v1000
        %v1045 = vsel %vm1007, %v1000, %v1002
        %v1046 = vsel %vm1007, %v1002, %v1004
        %v1047 = vsel %vm1007, %v1004, %v1006
        %v1048 = vld [vmem:[%s3] sm:$0xff]
        %v1049 = vld [vmem:[%s4] sm:$0xff]
        %1051 = vset.pattern.permute.xlu0 0
        %1052 = vperm.xlu0 %1051, %v1049
        %v1053 = vpop.permute.xlu0 %1052
        %1057 = vrot.lane.b32.xlu0 %v718, 3
        %v1058 = vpop.permute.xlu0 %1057
        %1059 = vrot.lane.b32.xlu0 %v719, 3
        %v1060 = vpop.permute.xlu0 %1059
        %1061 = vrot.lane.b32.xlu0 %v720, 3
        %v1062 = vpop.permute.xlu0 %1061
        %1063 = vrot.lane.b32.xlu0 %v721, 3
        %v1064 = vpop.permute.xlu0 %1063
        %1065 = vrot.lane.b32.xlu0 %v722, 3
        %v1066 = vpop.permute.xlu0 %1065
        %1067 = vrot.lane.b32.xlu0 %v723, 3
        %v1068 = vpop.permute.xlu0 %1067
        %1069 = vrot.lane.b32.xlu0 %v724, 3
        %v1070 = vpop.permute.xlu0 %1069
        %1071 = vrot.lane.b32.xlu0 %v725, 3
        %v1072 = vpop.permute.xlu0 %1071
        %1073 = vrot.lane.b32.xlu0 %v726, 3
        %v1074 = vpop.permute.xlu0 %1073
        %1075 = vrot.lane.b32.xlu0 %v727, 3
        %v1076 = vpop.permute.xlu0 %1075
        %1077 = vrot.lane.b32.xlu0 %v728, 3
        %v1078 = vpop.permute.xlu0 %1077
        %1079 = vrot.lane.b32.xlu0 %v729, 3
        %v1080 = vpop.permute.xlu0 %1079
        %1081 = vrot.lane.b32.xlu0 %v730, 3
        %v1082 = vpop.permute.xlu0 %1081
        %1083 = vrot.lane.b32.xlu0 %v731, 3
        %v1084 = vpop.permute.xlu0 %1083
        %1085 = vrot.lane.b32.xlu0 %v732, 3
        %v1086 = vpop.permute.xlu0 %1085
        %1087 = vrot.lane.b32.xlu0 %v733, 3
        %v1088 = vpop.permute.xlu0 %1087
        %1089 = vrot.lane.b32.xlu0 %v734, 3
        %v1090 = vpop.permute.xlu0 %1089
        %1091 = vrot.lane.b32.xlu0 %v735, 3
        %v1092 = vpop.permute.xlu0 %1091
        %1093 = vrot.lane.b32.xlu0 %v736, 3
        %v1094 = vpop.permute.xlu0 %1093
        %1095 = vrot.lane.b32.xlu0 %v737, 3
        %v1096 = vpop.permute.xlu0 %1095
        %1097 = vrot.lane.b32.xlu0 %v738, 3
        %v1098 = vpop.permute.xlu0 %1097
        %1099 = vrot.lane.b32.xlu0 %v740, 3
        %v1100 = vpop.permute.xlu0 %1099
        %1101 = vrot.lane.b32.xlu0 %v741, 3
        %v1102 = vpop.permute.xlu0 %1101
        %1103 = vrot.lane.b32.xlu0 %v742, 3
        %v1104 = vpop.permute.xlu0 %1103
        %1105 = vrot.lane.b32.xlu0 %v743, 3
        %v1106 = vpop.permute.xlu0 %1105
        %1107 = vrot.lane.b32.xlu0 %v744, 3
        %v1108 = vpop.permute.xlu0 %1107
        %1109 = vrot.lane.b32.xlu0 %v745, 3
        %v1110 = vpop.permute.xlu0 %1109
        %1111 = vrot.lane.b32.xlu0 %v746, 3
        %v1112 = vpop.permute.xlu0 %1111
        %1113 = vrot.lane.b32.xlu0 %v747, 3
        %v1114 = vpop.permute.xlu0 %1113
        %1115 = vrot.lane.b32.xlu0 %v748, 3
        %v1116 = vpop.permute.xlu0 %1115
        %1117 = vrot.lane.b32.xlu0 %v749, 3
        %v1118 = vpop.permute.xlu0 %1117
        %1119 = vrot.lane.b32.xlu0 %v750, 3
        %v1120 = vpop.permute.xlu0 %1119
        %1121 = vrot.lane.b32.xlu0 %v751, 3
        %v1122 = vpop.permute.xlu0 %1121
        %1123 = vrot.lane.b32.xlu0 %v752, 3
        %v1124 = vpop.permute.xlu0 %1123
        %1125 = vrot.lane.b32.xlu0 %v753, 3
        %v1126 = vpop.permute.xlu0 %1125
        %1127 = vrot.lane.b32.xlu0 %v754, 3
        %v1128 = vpop.permute.xlu0 %1127
        %1129 = vrot.lane.b32.xlu0 %v755, 3
        %v1130 = vpop.permute.xlu0 %1129
        %1131 = vrot.lane.b32.xlu0 %v756, 3
        %v1132 = vpop.permute.xlu0 %1131
        %1133 = vrot.lane.b32.xlu0 %v757, 3
        %v1134 = vpop.permute.xlu0 %1133
        %1135 = vrot.lane.b32.xlu0 %v758, 3
        %v1136 = vpop.permute.xlu0 %1135
        %1137 = vrot.lane.b32.xlu0 %v759, 3
        %v1138 = vpop.permute.xlu0 %1137
        %1139 = vrot.lane.b32.xlu0 %v760, 3
        %v1140 = vpop.permute.xlu0 %1139
        %1141 = vrot.lane.b32.xlu0 %v803, 3
        %v1142 = vpop.permute.xlu0 %1141
        %1143 = vrot.lane.b32.xlu0 %v883, 3
        %v1144 = vpop.permute.xlu0 %1143
        %1145 = vrot.lane.b32.xlu0 %v884, 3
        %v1146 = vpop.permute.xlu0 %1145
        %1147 = vrot.lane.b32.xlu0 %v885, 3
        %v1148 = vpop.permute.xlu0 %1147
        %1149 = vrot.lane.b32.xlu0 %v886, 3
        %v1150 = vpop.permute.xlu0 %1149
        %1151 = vrot.lane.b32.xlu0 %v887, 3
        %v1152 = vpop.permute.xlu0 %1151
        %1153 = vrot.lane.b32.xlu0 %v888, 3
        %v1154 = vpop.permute.xlu0 %1153
        %1155 = vrot.lane.b32.xlu0 %v889, 3
        %v1156 = vpop.permute.xlu0 %1155
        %1157 = vrot.lane.b32.xlu0 %v890, 3
        %v1158 = vpop.permute.xlu0 %1157
        %1159 = vrot.lane.b32.xlu0 %v891, 3
        %v1160 = vpop.permute.xlu0 %1159
        %1161 = vrot.lane.b32.xlu0 %v892, 3
        %v1162 = vpop.permute.xlu0 %1161
        %1163 = vrot.lane.b32.xlu0 %v893, 3
        %v1164 = vpop.permute.xlu0 %1163
        %1165 = vrot.lane.b32.xlu0 %v894, 3
        %v1166 = vpop.permute.xlu0 %1165
        %1167 = vrot.lane.b32.xlu0 %v895, 3
        %v1168 = vpop.permute.xlu0 %1167
        %1169 = vrot.lane.b32.xlu0 %v896, 3
        %v1170 = vpop.permute.xlu0 %1169
        %1171 = vrot.lane.b32.xlu0 %v897, 3
        %v1172 = vpop.permute.xlu0 %1171
        %1173 = vrot.lane.b32.xlu0 %v898, 3
        %v1174 = vpop.permute.xlu0 %1173
        %1175 = vrot.lane.b32.xlu0 %v899, 3
        %v1176 = vpop.permute.xlu0 %1175
        %1177 = vrot.lane.b32.xlu0 %v900, 3
        %v1178 = vpop.permute.xlu0 %1177
        %1179 = vrot.lane.b32.xlu0 %v901, 3
        %v1180 = vpop.permute.xlu0 %1179
        %1181 = vrot.lane.b32.xlu0 %v841, 3
        %v1182 = vpop.permute.xlu0 %1181
        %1183 = vrot.lane.b32.xlu0 %v843, 3
        %v1184 = vpop.permute.xlu0 %1183
        %1185 = vrot.lane.b32.xlu0 %v902, 3
        %v1186 = vpop.permute.xlu0 %1185
        %1187 = vrot.lane.b32.xlu0 %v903, 3
        %v1188 = vpop.permute.xlu0 %1187
        %1189 = vrot.lane.b32.xlu0 %v904, 3
        %v1190 = vpop.permute.xlu0 %1189
        %1191 = vrot.lane.b32.xlu0 %v905, 3
        %v1192 = vpop.permute.xlu0 %1191
        %1193 = vrot.lane.b32.xlu0 %v906, 3
        %v1194 = vpop.permute.xlu0 %1193
        %1195 = vrot.lane.b32.xlu0 %v907, 3
        %v1196 = vpop.permute.xlu0 %1195
        %1197 = vrot.lane.b32.xlu0 %v908, 3
        %v1198 = vpop.permute.xlu0 %1197
        %1199 = vrot.lane.b32.xlu0 %v909, 3
        %v1200 = vpop.permute.xlu0 %1199
        %1201 = vrot.lane.b32.xlu0 %v910, 3
        %v1202 = vpop.permute.xlu0 %1201
        %1203 = vrot.lane.b32.xlu0 %v911, 3
        %v1204 = vpop.permute.xlu0 %1203
        %1205 = vrot.lane.b32.xlu0 %v912, 3
        %v1206 = vpop.permute.xlu0 %1205
        %1207 = vrot.lane.b32.xlu0 %v913, 3
        %v1208 = vpop.permute.xlu0 %1207
        %1209 = vrot.lane.b32.xlu0 %v914, 3
        %v1210 = vpop.permute.xlu0 %1209
        %1211 = vrot.lane.b32.xlu0 %v915, 3
        %v1212 = vpop.permute.xlu0 %1211
        %1213 = vrot.lane.b32.xlu0 %v916, 3
        %v1214 = vpop.permute.xlu0 %1213
        %1215 = vrot.lane.b32.xlu0 %v917, 3
        %v1216 = vpop.permute.xlu0 %1215
        %1217 = vrot.lane.b32.xlu0 %v918, 3
        %v1218 = vpop.permute.xlu0 %1217
        %1219 = vrot.lane.b32.xlu0 %v919, 3
        %v1220 = vpop.permute.xlu0 %1219
        %1221 = vrot.lane.b32.xlu0 %v920, 3
        %v1222 = vpop.permute.xlu0 %1221
        %1223 = vrot.lane.b32.xlu0 %v881, 3
        %v1224 = vpop.permute.xlu0 %1223
        %1225 = vrot.lane.b32.xlu0 %v924, 3
        %v1226 = vpop.permute.xlu0 %1225
        %1227 = vrot.lane.b32.xlu0 %v1008, 3
        %v1228 = vpop.permute.xlu0 %1227
        %1229 = vrot.lane.b32.xlu0 %v1009, 3
        %v1230 = vpop.permute.xlu0 %1229
        %1231 = vrot.lane.b32.xlu0 %v1010, 3
        %v1232 = vpop.permute.xlu0 %1231
        %1233 = vrot.lane.b32.xlu0 %v1011, 3
        %v1234 = vpop.permute.xlu0 %1233
        %1235 = vrot.lane.b32.xlu0 %v1012, 3
        %v1236 = vpop.permute.xlu0 %1235
        %1237 = vrot.lane.b32.xlu0 %v1013, 3
        %v1238 = vpop.permute.xlu0 %1237
        %1239 = vrot.lane.b32.xlu0 %v1014, 3
        %v1240 = vpop.permute.xlu0 %1239
        %1241 = vrot.lane.b32.xlu0 %v1015, 3
        %v1242 = vpop.permute.xlu0 %1241
        %1243 = vrot.lane.b32.xlu0 %v1016, 3
        %v1244 = vpop.permute.xlu0 %1243
        %1245 = vrot.lane.b32.xlu0 %v1017, 3
        %v1246 = vpop.permute.xlu0 %1245
        %1247 = vrot.lane.b32.xlu0 %v1018, 3
        %v1248 = vpop.permute.xlu0 %1247
        %1249 = vrot.lane.b32.xlu0 %v1019, 3
        %v1250 = vpop.permute.xlu0 %1249
        %1251 = vrot.lane.b32.xlu0 %v1020, 3
        %v1252 = vpop.permute.xlu0 %1251
        %1253 = vrot.lane.b32.xlu0 %v1021, 3
        %v1254 = vpop.permute.xlu0 %1253
        %1255 = vrot.lane.b32.xlu0 %v1022, 3
        %v1256 = vpop.permute.xlu0 %1255
        %1257 = vrot.lane.b32.xlu0 %v1023, 3
        %v1258 = vpop.permute.xlu0 %1257
        %1259 = vrot.lane.b32.xlu0 %v1024, 3
        %v1260 = vpop.permute.xlu0 %1259
        %1261 = vrot.lane.b32.xlu0 %v1025, 3
        %v1262 = vpop.permute.xlu0 %1261
        %1263 = vrot.lane.b32.xlu0 %v1026, 3
        %v1264 = vpop.permute.xlu0 %1263
        %1265 = vrot.lane.b32.xlu0 %v1027, 3
        %v1266 = vpop.permute.xlu0 %1265
        %1267 = vrot.lane.b32.xlu0 %v966, 3
        %v1268 = vpop.permute.xlu0 %1267
        %1269 = vrot.lane.b32.xlu0 %v1028, 3
        %v1270 = vpop.permute.xlu0 %1269
        %1271 = vrot.lane.b32.xlu0 %v1029, 3
        %v1272 = vpop.permute.xlu0 %1271
        %1273 = vrot.lane.b32.xlu0 %v1030, 3
        %v1274 = vpop.permute.xlu0 %1273
        %1275 = vrot.lane.b32.xlu0 %v1031, 3
        %v1276 = vpop.permute.xlu0 %1275
        %1277 = vrot.lane.b32.xlu0 %v1032, 3
        %v1278 = vpop.permute.xlu0 %1277
        %1279 = vrot.lane.b32.xlu0 %v1033, 3
        %v1280 = vpop.permute.xlu0 %1279
        %1281 = vrot.lane.b32.xlu0 %v1034, 3
        %v1282 = vpop.permute.xlu0 %1281
        %1283 = vrot.lane.b32.xlu0 %v1035, 3
        %v1284 = vpop.permute.xlu0 %1283
        %1285 = vrot.lane.b32.xlu0 %v1036, 3
        %v1286 = vpop.permute.xlu0 %1285
        %1287 = vrot.lane.b32.xlu0 %v1037, 3
        %v1288 = vpop.permute.xlu0 %1287
        %1289 = vrot.lane.b32.xlu0 %v1038, 3
        %v1290 = vpop.permute.xlu0 %1289
        %1291 = vrot.lane.b32.xlu0 %v1039, 3
        %v1292 = vpop.permute.xlu0 %1291
        %1293 = vrot.lane.b32.xlu0 %v1040, 3
        %v1294 = vpop.permute.xlu0 %1293
        %1295 = vrot.lane.b32.xlu0 %v1041, 3
        %v1296 = vpop.permute.xlu0 %1295
        %1297 = vrot.lane.b32.xlu0 %v1042, 3
        %v1298 = vpop.permute.xlu0 %1297
        %1299 = vrot.lane.b32.xlu0 %v1043, 3
        %v1300 = vpop.permute.xlu0 %1299
        %1301 = vrot.lane.b32.xlu0 %v1044, 3
        %v1302 = vpop.permute.xlu0 %1301
        %1303 = vrot.lane.b32.xlu0 %v1045, 3
        %v1304 = vpop.permute.xlu0 %1303
        %1305 = vrot.lane.b32.xlu0 %v1046, 3
        %v1306 = vpop.permute.xlu0 %1305
        %1307 = vrot.lane.b32.xlu0 %v1047, 3
        %v1308 = vpop.permute.xlu0 %1307
        %vm1309 = vcmask 23552
        %v1310 = vsel %vm1309, %v1058, %v1060
        %v1311 = vsel %vm1309, %v1060, %v1062
        %v1312 = vsel %vm1309, %v1062, %v1064
        %v1313 = vsel %vm1309, %v1064, %v1066
        %v1314 = vsel %vm1309, %v1066, %v1068
        %v1315 = vsel %vm1309, %v1068, %v1070
        %v1316 = vsel %vm1309, %v1070, %v1072
        %v1317 = vsel %vm1309, %v1072, %v1074
        %v1318 = vsel %vm1309, %v1074, %v1076
        %v1319 = vsel %vm1309, %v1076, %v1078
        %v1320 = vsel %vm1309, %v1078, %v1080
        %v1321 = vsel %vm1309, %v1080, %v1082
        %v1322 = vsel %vm1309, %v1082, %v1084
        %v1323 = vsel %vm1309, %v1084, %v1086
        %v1324 = vsel %vm1309, %v1086, %v1088
        %v1325 = vsel %vm1309, %v1088, %v1090
        %v1326 = vsel %vm1309, %v1090, %v1092
        %v1327 = vsel %vm1309, %v1092, %v1094
        %v1328 = vsel %vm1309, %v1094, %v1096
        %v1329 = vsel %vm1309, %v1096, %v1098
        %v1330 = vsel %vm1309, %v1100, %v1102
        %v1331 = vsel %vm1309, %v1102, %v1104
        %v1332 = vsel %vm1309, %v1104, %v1106
        %v1333 = vsel %vm1309, %v1106, %v1108
        %v1334 = vsel %vm1309, %v1108, %v1110
        %v1335 = vsel %vm1309, %v1110, %v1112
        %v1336 = vsel %vm1309, %v1112, %v1114
        %v1337 = vsel %vm1309, %v1114, %v1116
        %v1338 = vsel %vm1309, %v1116, %v1118
        %v1339 = vsel %vm1309, %v1118, %v1120
        %v1340 = vsel %vm1309, %v1120, %v1122
        %v1341 = vsel %vm1309, %v1122, %v1124
        %v1342 = vsel %vm1309, %v1124, %v1126
        %v1343 = vsel %vm1309, %v1126, %v1128
        %v1344 = vsel %vm1309, %v1128, %v1130
        %v1345 = vsel %vm1309, %v1130, %v1132
        %v1346 = vsel %vm1309, %v1132, %v1134
        %v1347 = vsel %vm1309, %v1134, %v1136
        %v1348 = vsel %vm1309, %v1136, %v1138
        %v1349 = vsel %vm1309, %v1138, %v1140
        %v1350 = vsel %vm1309, %v1142, %v1144
        %v1351 = vsel %vm1309, %v1144, %v1146
        %v1352 = vsel %vm1309, %v1146, %v1148
        %v1353 = vsel %vm1309, %v1148, %v1150
        %v1354 = vsel %vm1309, %v1150, %v1152
        %v1355 = vsel %vm1309, %v1152, %v1154
        %v1356 = vsel %vm1309, %v1154, %v1156
        %v1357 = vsel %vm1309, %v1156, %v1158
        %v1358 = vsel %vm1309, %v1158, %v1160
        %v1359 = vsel %vm1309, %v1160, %v1162
        %v1360 = vsel %vm1309, %v1162, %v1164
        %v1361 = vsel %vm1309, %v1164, %v1166
        %v1362 = vsel %vm1309, %v1166, %v1168
        %v1363 = vsel %vm1309, %v1168, %v1170
        %v1364 = vsel %vm1309, %v1170, %v1172
        %v1365 = vsel %vm1309, %v1172, %v1174
        %v1366 = vsel %vm1309, %v1174, %v1176
        %v1367 = vsel %vm1309, %v1176, %v1178
        %v1368 = vsel %vm1309, %v1178, %v1180
        %v1369 = vsel %vm1309, %v1180, %v1182
        %v1370 = vsel %vm1309, %v1184, %v1186
        %v1371 = vsel %vm1309, %v1186, %v1188
        %v1372 = vsel %vm1309, %v1188, %v1190
        %v1373 = vsel %vm1309, %v1190, %v1192
        %v1374 = vsel %vm1309, %v1192, %v1194
        %v1375 = vsel %vm1309, %v1194, %v1196
        %v1376 = vsel %vm1309, %v1196, %v1198
        %v1377 = vsel %vm1309, %v1198, %v1200
        %v1378 = vsel %vm1309, %v1200, %v1202
        %v1379 = vsel %vm1309, %v1202, %v1204
        %v1380 = vsel %vm1309, %v1204, %v1206
        %v1381 = vsel %vm1309, %v1206, %v1208
        %v1382 = vsel %vm1309, %v1208, %v1210
        %v1383 = vsel %vm1309, %v1210, %v1212
        %v1384 = vsel %vm1309, %v1212, %v1214
        %v1385 = vsel %vm1309, %v1214, %v1216
        %v1386 = vsel %vm1309, %v1216, %v1218
        %v1387 = vsel %vm1309, %v1218, %v1220
        %v1388 = vsel %vm1309, %v1220, %v1222
        %v1389 = vsel %vm1309, %v1222, %v1224
        %v1390 = vsel %vm1309, %v1226, %v1228
        %v1391 = vsel %vm1309, %v1228, %v1230
        %v1392 = vsel %vm1309, %v1230, %v1232
        %v1393 = vsel %vm1309, %v1232, %v1234
        %v1394 = vsel %vm1309, %v1234, %v1236
        %v1395 = vsel %vm1309, %v1236, %v1238
        %v1396 = vsel %vm1309, %v1238, %v1240
        %v1397 = vsel %vm1309, %v1240, %v1242
        %v1398 = vsel %vm1309, %v1242, %v1244
        %v1399 = vsel %vm1309, %v1244, %v1246
        %v1400 = vsel %vm1309, %v1246, %v1248
        %v1401 = vsel %vm1309, %v1248, %v1250
        %v1402 = vsel %vm1309, %v1250, %v1252
        %v1403 = vsel %vm1309, %v1252, %v1254
        %v1404 = vsel %vm1309, %v1254, %v1256
        %v1405 = vsel %vm1309, %v1256, %v1258
        %v1406 = vsel %vm1309, %v1258, %v1260
        %v1407 = vsel %vm1309, %v1260, %v1262
        %v1408 = vsel %vm1309, %v1262, %v1264
        %v1409 = vsel %vm1309, %v1264, %v1266
        %v1410 = vsel %vm1309, %v1268, %v1270
        %v1411 = vsel %vm1309, %v1270, %v1272
        %v1412 = vsel %vm1309, %v1272, %v1274
        %v1413 = vsel %vm1309, %v1274, %v1276
        %v1414 = vsel %vm1309, %v1276, %v1278
        %v1415 = vsel %vm1309, %v1278, %v1280
        %v1416 = vsel %vm1309, %v1280, %v1282
        %v1417 = vsel %vm1309, %v1282, %v1284
        %v1418 = vsel %vm1309, %v1284, %v1286
        %v1419 = vsel %vm1309, %v1286, %v1288
        %v1420 = vsel %vm1309, %v1288, %v1290
        %v1421 = vsel %vm1309, %v1290, %v1292
        %v1422 = vsel %vm1309, %v1292, %v1294
        %v1423 = vsel %vm1309, %v1294, %v1296
        %v1424 = vsel %vm1309, %v1296, %v1298
        %v1425 = vsel %vm1309, %v1298, %v1300
        %v1426 = vsel %vm1309, %v1300, %v1302
        %v1427 = vsel %vm1309, %v1302, %v1304
        %v1428 = vsel %vm1309, %v1304, %v1306
        %v1429 = vsel %vm1309, %v1306, %v1308
        %vm1550 = vcmask 392192
        %v1552 = vsel %vm1550, %v1048, 0
        %1554 = vmatpush.msra.mxu0 0.0
        %1555 = vmatpush.msra.mxu0 0.0
        %1556 = vmatpush.msra.mxu0 0.0
        %1557 = vmatpush.msra.mxu0 0.0
        %1558 = vmatpush.msra.mxu0 0.0
        %1559 = vmatpush.msra.mxu0 0.0
        %1560 = vmatpush.msra.mxu0 0.0
        %1561 = vmatpush.msra.mxu0 0.0
        %1562 = vmatpush.msra.mxu0 0.0
        %1563 = vmatpush.msra.mxu0 0.0
        %v1564 = vand.u32 %v1410, 4294901760
        %1565 = vmatpush.msra.mxu0 %v1564
        %v1566 = vand.u32 %v1390, 4294901760
        %1567 = vmatpush.msra.mxu0 %v1566
        %v1568 = vand.u32 %v1370, 4294901760
        %1569 = vmatpush.msra.mxu0 %v1568
        %v1570 = vand.u32 %v1350, 4294901760
        %1571 = vmatpush.msra.mxu0 %v1570
        %v1572 = vand.u32 %v1330, 4294901760
        %1573 = vmatpush.msra.mxu0 %v1572
        %v1574 = vand.u32 %v1310, 4294901760
        %1575 = vmatpush.msra.mxu0 %v1574
        %v1576 = vand.u32 %v1552, 4294901760
        %v1577 = vsub.f32 %v1552, %v1576
        %v1578 = vand.u32 %v1577, 4294901760
        %v1579 = vsub.f32 %v1577, %v1578
        %v1580 = vand.u32 %v1579, 4294901760
        %1581 = vmatmul.f32.gmra.mxu0 %v1580
        %v1582 = vpop.f32.mrf.mxu0
        %v1583 = vadd.f32 %v1053, %v1582
        %1584 = vdwg.mxu0
        %1585 = vmatpush.msra.mxu0 0.0
        %1586 = vmatpush.msra.mxu0 0.0
        %1587 = vmatpush.msra.mxu0 0.0
        %1588 = vmatpush.msra.mxu0 0.0
        %1589 = vmatpush.msra.mxu0 0.0
        %1590 = vmatpush.msra.mxu0 0.0
        %1591 = vmatpush.msra.mxu0 0.0
        %1592 = vmatpush.msra.mxu0 0.0
        %1593 = vmatpush.msra.mxu0 0.0
        %1594 = vmatpush.msra.mxu0 0.0
        %v1595 = vand.u32 %v1410, 4294901760
        %v1596 = vsub.f32 %v1410, %v1595
        %v1597 = vand.u32 %v1596, 4294901760
        %v1598 = vsub.f32 %v1596, %v1597
        %v1599 = vand.u32 %v1598, 4294901760
        %1600 = vmatpush.msra.mxu0 %v1599
        %v1601 = vand.u32 %v1390, 4294901760
        %v1602 = vsub.f32 %v1390, %v1601
        %v1603 = vand.u32 %v1602, 4294901760
        %v1604 = vsub.f32 %v1602, %v1603
        %v1605 = vand.u32 %v1604, 4294901760
        %1606 = vmatpush.msra.mxu0 %v1605
        %v1607 = vand.u32 %v1370, 4294901760
        %v1608 = vsub.f32 %v1370, %v1607
        %v1609 = vand.u32 %v1608, 4294901760
        %v1610 = vsub.f32 %v1608, %v1609
        %v1611 = vand.u32 %v1610, 4294901760
        %1612 = vmatpush.msra.mxu0 %v1611
        %v1613 = vand.u32 %v1350, 4294901760
        %v1614 = vsub.f32 %v1350, %v1613
        %v1615 = vand.u32 %v1614, 4294901760
        %v1616 = vsub.f32 %v1614, %v1615
        %v1617 = vand.u32 %v1616, 4294901760
        %1618 = vmatpush.msra.mxu0 %v1617
        %v1619 = vand.u32 %v1330, 4294901760
        %v1620 = vsub.f32 %v1330, %v1619
        %v1621 = vand.u32 %v1620, 4294901760
        %v1622 = vsub.f32 %v1620, %v1621
        %v1623 = vand.u32 %v1622, 4294901760
        %1624 = vmatpush.msra.mxu0 %v1623
        %v1625 = vand.u32 %v1310, 4294901760
        %v1626 = vsub.f32 %v1310, %v1625
        %v1627 = vand.u32 %v1626, 4294901760
        %v1628 = vsub.f32 %v1626, %v1627
        %v1629 = vand.u32 %v1628, 4294901760
        %1630 = vmatpush.msra.mxu0 %v1629
        %v1631 = vand.u32 %v1552, 4294901760
        %1632 = vmatmul.f32.gmra.mxu0 %v1631
        %v1633 = vpop.f32.mrf.mxu0
        %v1634 = vadd.f32 %v1583, %v1633
        %1635 = vdwg.mxu0
        %1636 = vmatpush.msra.mxu0 0.0
        %1637 = vmatpush.msra.mxu0 0.0
        %1638 = vmatpush.msra.mxu0 0.0
        %1639 = vmatpush.msra.mxu0 0.0
        %1640 = vmatpush.msra.mxu0 0.0
        %1641 = vmatpush.msra.mxu0 0.0
        %1642 = vmatpush.msra.mxu0 0.0
        %1643 = vmatpush.msra.mxu0 0.0
        %1644 = vmatpush.msra.mxu0 0.0
        %1645 = vmatpush.msra.mxu0 0.0
        %v1646 = vand.u32 %v1410, 4294901760
        %v1647 = vsub.f32 %v1410, %v1646
        %1648 = vmatpush.msra.mxu0 %v1647
        %v1649 = vand.u32 %v1390, 4294901760
        %v1650 = vsub.f32 %v1390, %v1649
        %1651 = vmatpush.msra.mxu0 %v1650
        %v1652 = vand.u32 %v1370, 4294901760
        %v1653 = vsub.f32 %v1370, %v1652
        %1654 = vmatpush.msra.mxu0 %v1653
        %v1655 = vand.u32 %v1350, 4294901760
        %v1656 = vsub.f32 %v1350, %v1655
        %1657 = vmatpush.msra.mxu0 %v1656
        %v1658 = vand.u32 %v1330, 4294901760
        %v1659 = vsub.f32 %v1330, %v1658
        %1660 = vmatpush.msra.mxu0 %v1659
        %v1661 = vand.u32 %v1310, 4294901760
        %v1662 = vsub.f32 %v1310, %v1661
        %1663 = vmatpush.msra.mxu0 %v1662
        %v1664 = vand.u32 %v1552, 4294901760
        %v1665 = vsub.f32 %v1552, %v1664
        %1666 = vmatmul.f32.gmra.mxu0 %v1665
        %v1667 = vpop.f32.mrf.mxu0
        %v1668 = vadd.f32 %v1634, %v1667
        %1669 = vdwg.mxu0
        %1670 = vmatpush.msra.mxu0 0.0
        %1671 = vmatpush.msra.mxu0 0.0
        %1672 = vmatpush.msra.mxu0 0.0
        %1673 = vmatpush.msra.mxu0 0.0
        %1674 = vmatpush.msra.mxu0 0.0
        %1675 = vmatpush.msra.mxu0 0.0
        %1676 = vmatpush.msra.mxu0 0.0
        %1677 = vmatpush.msra.mxu0 0.0
        %1678 = vmatpush.msra.mxu0 0.0
        %1679 = vmatpush.msra.mxu0 0.0
        %v1680 = vand.u32 %v1410, 4294901760
        %1681 = vmatpush.msra.mxu0 %v1680
        %v1682 = vand.u32 %v1390, 4294901760
        %1683 = vmatpush.msra.mxu0 %v1682
        %v1684 = vand.u32 %v1370, 4294901760
        %1685 = vmatpush.msra.mxu0 %v1684
        %v1686 = vand.u32 %v1350, 4294901760
        %1687 = vmatpush.msra.mxu0 %v1686
        %v1688 = vand.u32 %v1330, 4294901760
        %1689 = vmatpush.msra.mxu0 %v1688
        %v1690 = vand.u32 %v1310, 4294901760
        %1691 = vmatpush.msra.mxu0 %v1690
        %v1692 = vand.u32 %v1552, 4294901760
        %v1693 = vsub.f32 %v1552, %v1692
        %v1694 = vand.u32 %v1693, 4294901760
        %1695 = vmatmul.f32.gmra.mxu0 %v1694
        %v1696 = vpop.f32.mrf.mxu0
        %v1697 = vadd.f32 %v1668, %v1696
        %1698 = vdwg.mxu0
        %1699 = vmatpush.msra.mxu0 0.0
        %1700 = vmatpush.msra.mxu0 0.0
        %1701 = vmatpush.msra.mxu0 0.0
        %1702 = vmatpush.msra.mxu0 0.0
        %1703 = vmatpush.msra.mxu0 0.0
        %1704 = vmatpush.msra.mxu0 0.0
        %1705 = vmatpush.msra.mxu0 0.0
        %1706 = vmatpush.msra.mxu0 0.0
        %1707 = vmatpush.msra.mxu0 0.0
        %1708 = vmatpush.msra.mxu0 0.0
        %v1709 = vand.u32 %v1410, 4294901760
        %v1710 = vsub.f32 %v1410, %v1709
        %v1711 = vand.u32 %v1710, 4294901760
        %1712 = vmatpush.msra.mxu0 %v1711
        %v1713 = vand.u32 %v1390, 4294901760
        %v1714 = vsub.f32 %v1390, %v1713
        %v1715 = vand.u32 %v1714, 4294901760
        %1716 = vmatpush.msra.mxu0 %v1715
        %v1717 = vand.u32 %v1370, 4294901760
        %v1718 = vsub.f32 %v1370, %v1717
        %v1719 = vand.u32 %v1718, 4294901760
        %1720 = vmatpush.msra.mxu0 %v1719
        %v1721 = vand.u32 %v1350, 4294901760
        %v1722 = vsub.f32 %v1350, %v1721
        %v1723 = vand.u32 %v1722, 4294901760
        %1724 = vmatpush.msra.mxu0 %v1723
        %v1725 = vand.u32 %v1330, 4294901760
        %v1726 = vsub.f32 %v1330, %v1725
        %v1727 = vand.u32 %v1726, 4294901760
        %1728 = vmatpush.msra.mxu0 %v1727
        %v1729 = vand.u32 %v1310, 4294901760
        %v1730 = vsub.f32 %v1310, %v1729
        %v1731 = vand.u32 %v1730, 4294901760
        %1732 = vmatpush.msra.mxu0 %v1731
        %v1733 = vand.u32 %v1552, 4294901760
        %1734 = vmatmul.f32.gmra.mxu0 %v1733
        %v1735 = vpop.f32.mrf.mxu0
        %v1736 = vadd.f32 %v1697, %v1735
        %1737 = vdwg.mxu0
        %1738 = vmatpush.msra.mxu0 0.0
        %1739 = vmatpush.msra.mxu0 0.0
        %1740 = vmatpush.msra.mxu0 0.0
        %1741 = vmatpush.msra.mxu0 0.0
        %1742 = vmatpush.msra.mxu0 0.0
        %1743 = vmatpush.msra.mxu0 0.0
        %1744 = vmatpush.msra.mxu0 0.0
        %1745 = vmatpush.msra.mxu0 0.0
        %1746 = vmatpush.msra.mxu0 0.0
        %1747 = vmatpush.msra.mxu0 0.0
        %v1748 = vand.u32 %v1410, 4294901760
        %1749 = vmatpush.msra.mxu0 %v1748
        %v1750 = vand.u32 %v1390, 4294901760
        %1751 = vmatpush.msra.mxu0 %v1750
        %v1752 = vand.u32 %v1370, 4294901760
        %1753 = vmatpush.msra.mxu0 %v1752
        %v1754 = vand.u32 %v1350, 4294901760
        %1755 = vmatpush.msra.mxu0 %v1754
        %v1756 = vand.u32 %v1330, 4294901760
        %1757 = vmatpush.msra.mxu0 %v1756
        %v1758 = vand.u32 %v1310, 4294901760
        %1759 = vmatpush.msra.mxu0 %v1758
        %v1760 = vand.u32 %v1552, 4294901760
        %1761 = vmatmul.f32.gmra.mxu0 %v1760
        %v1762 = vpop.f32.mrf.mxu0
        %v1763 = vadd.f32 %v1736, %v1762
        %1764 = vdwg.mxu0
        %1765 = vmatpush.msra.mxu0 0.0
        %1766 = vmatpush.msra.mxu0 0.0
        %1767 = vmatpush.msra.mxu0 0.0
        %1768 = vmatpush.msra.mxu0 0.0
        %1769 = vmatpush.msra.mxu0 0.0
        %1770 = vmatpush.msra.mxu0 0.0
        %1771 = vmatpush.msra.mxu0 0.0
        %1772 = vmatpush.msra.mxu0 0.0
        %1773 = vmatpush.msra.mxu0 0.0
        %1774 = vmatpush.msra.mxu0 0.0
        %v1775 = vand.u32 %v1411, 4294901760
        %1776 = vmatpush.msra.mxu0 %v1775
        %v1777 = vand.u32 %v1391, 4294901760
        %1778 = vmatpush.msra.mxu0 %v1777
        %v1779 = vand.u32 %v1371, 4294901760
        %1780 = vmatpush.msra.mxu0 %v1779
        %v1781 = vand.u32 %v1351, 4294901760
        %1782 = vmatpush.msra.mxu0 %v1781
        %v1783 = vand.u32 %v1331, 4294901760
        %1784 = vmatpush.msra.mxu0 %v1783
        %v1785 = vand.u32 %v1311, 4294901760
        %1786 = vmatpush.msra.mxu0 %v1785
        %v1787 = vand.u32 %v1552, 4294901760
        %v1788 = vsub.f32 %v1552, %v1787
        %v1789 = vand.u32 %v1788, 4294901760
        %v1790 = vsub.f32 %v1788, %v1789
        %v1791 = vand.u32 %v1790, 4294901760
        %1792 = vmatmul.f32.gmra.mxu0 %v1791
        %v1793 = vpop.f32.mrf.mxu0
        %v1794 = vadd.f32 %v1053, %v1793
        %1795 = vdwg.mxu0
        %1796 = vmatpush.msra.mxu0 0.0
        %1797 = vmatpush.msra.mxu0 0.0
        %1798 = vmatpush.msra.mxu0 0.0
        %1799 = vmatpush.msra.mxu0 0.0
        %1800 = vmatpush.msra.mxu0 0.0
        %1801 = vmatpush.msra.mxu0 0.0
        %1802 = vmatpush.msra.mxu0 0.0
        %1803 = vmatpush.msra.mxu0 0.0
        %1804 = vmatpush.msra.mxu0 0.0
        %1805 = vmatpush.msra.mxu0 0.0
        %v1806 = vand.u32 %v1411, 4294901760
        %v1807 = vsub.f32 %v1411, %v1806
        %v1808 = vand.u32 %v1807, 4294901760
        %v1809 = vsub.f32 %v1807, %v1808
        %v1810 = vand.u32 %v1809, 4294901760
        %1811 = vmatpush.msra.mxu0 %v1810
        %v1812 = vand.u32 %v1391, 4294901760
        %v1813 = vsub.f32 %v1391, %v1812
        %v1814 = vand.u32 %v1813, 4294901760
        %v1815 = vsub.f32 %v1813, %v1814
        %v1816 = vand.u32 %v1815, 4294901760
        %1817 = vmatpush.msra.mxu0 %v1816
        %v1818 = vand.u32 %v1371, 4294901760
        %v1819 = vsub.f32 %v1371, %v1818
        %v1820 = vand.u32 %v1819, 4294901760
        %v1821 = vsub.f32 %v1819, %v1820
        %v1822 = vand.u32 %v1821, 4294901760
        %1823 = vmatpush.msra.mxu0 %v1822
        %v1824 = vand.u32 %v1351, 4294901760
        %v1825 = vsub.f32 %v1351, %v1824
        %v1826 = vand.u32 %v1825, 4294901760
        %v1827 = vsub.f32 %v1825, %v1826
        %v1828 = vand.u32 %v1827, 4294901760
        %1829 = vmatpush.msra.mxu0 %v1828
        %v1830 = vand.u32 %v1331, 4294901760
        %v1831 = vsub.f32 %v1331, %v1830
        %v1832 = vand.u32 %v1831, 4294901760
        %v1833 = vsub.f32 %v1831, %v1832
        %v1834 = vand.u32 %v1833, 4294901760
        %1835 = vmatpush.msra.mxu0 %v1834
        %v1836 = vand.u32 %v1311, 4294901760
        %v1837 = vsub.f32 %v1311, %v1836
        %v1838 = vand.u32 %v1837, 4294901760
        %v1839 = vsub.f32 %v1837, %v1838
        %v1840 = vand.u32 %v1839, 4294901760
        %1841 = vmatpush.msra.mxu0 %v1840
        %v1842 = vand.u32 %v1552, 4294901760
        %1843 = vmatmul.f32.gmra.mxu0 %v1842
        %v1844 = vpop.f32.mrf.mxu0
        %v1845 = vadd.f32 %v1794, %v1844
        %1846 = vdwg.mxu0
        %1847 = vmatpush.msra.mxu0 0.0
        %1848 = vmatpush.msra.mxu0 0.0
        %1849 = vmatpush.msra.mxu0 0.0
        %1850 = vmatpush.msra.mxu0 0.0
        %1851 = vmatpush.msra.mxu0 0.0
        %1852 = vmatpush.msra.mxu0 0.0
        %1853 = vmatpush.msra.mxu0 0.0
        %1854 = vmatpush.msra.mxu0 0.0
        %1855 = vmatpush.msra.mxu0 0.0
        %1856 = vmatpush.msra.mxu0 0.0
        %v1857 = vand.u32 %v1411, 4294901760
        %v1858 = vsub.f32 %v1411, %v1857
        %1859 = vmatpush.msra.mxu0 %v1858
        %v1860 = vand.u32 %v1391, 4294901760
        %v1861 = vsub.f32 %v1391, %v1860
        %1862 = vmatpush.msra.mxu0 %v1861
        %v1863 = vand.u32 %v1371, 4294901760
        %v1864 = vsub.f32 %v1371, %v1863
        %1865 = vmatpush.msra.mxu0 %v1864
        %v1866 = vand.u32 %v1351, 4294901760
        %v1867 = vsub.f32 %v1351, %v1866
        %1868 = vmatpush.msra.mxu0 %v1867
        %v1869 = vand.u32 %v1331, 4294901760
        %v1870 = vsub.f32 %v1331, %v1869
        %1871 = vmatpush.msra.mxu0 %v1870
        %v1872 = vand.u32 %v1311, 4294901760
        %v1873 = vsub.f32 %v1311, %v1872
        %1874 = vmatpush.msra.mxu0 %v1873
        %v1875 = vand.u32 %v1552, 4294901760
        %v1876 = vsub.f32 %v1552, %v1875
        %1877 = vmatmul.f32.gmra.mxu0 %v1876
        %v1878 = vpop.f32.mrf.mxu0
        %v1879 = vadd.f32 %v1845, %v1878
        %1880 = vdwg.mxu0
        %1881 = vmatpush.msra.mxu0 0.0
        %1882 = vmatpush.msra.mxu0 0.0
        %1883 = vmatpush.msra.mxu0 0.0
        %1884 = vmatpush.msra.mxu0 0.0
        %1885 = vmatpush.msra.mxu0 0.0
        %1886 = vmatpush.msra.mxu0 0.0
        %1887 = vmatpush.msra.mxu0 0.0
        %1888 = vmatpush.msra.mxu0 0.0
        %1889 = vmatpush.msra.mxu0 0.0
        %1890 = vmatpush.msra.mxu0 0.0
        %v1891 = vand.u32 %v1411, 4294901760
        %1892 = vmatpush.msra.mxu0 %v1891
        %v1893 = vand.u32 %v1391, 4294901760
        %1894 = vmatpush.msra.mxu0 %v1893
        %v1895 = vand.u32 %v1371, 4294901760
        %1896 = vmatpush.msra.mxu0 %v1895
        %v1897 = vand.u32 %v1351, 4294901760
        %1898 = vmatpush.msra.mxu0 %v1897
        %v1899 = vand.u32 %v1331, 4294901760
        %1900 = vmatpush.msra.mxu0 %v1899
        %v1901 = vand.u32 %v1311, 4294901760
        %1902 = vmatpush.msra.mxu0 %v1901
        %v1903 = vand.u32 %v1552, 4294901760
        %v1904 = vsub.f32 %v1552, %v1903
        %v1905 = vand.u32 %v1904, 4294901760
        %1906 = vmatmul.f32.gmra.mxu0 %v1905
        %v1907 = vpop.f32.mrf.mxu0
        %v1908 = vadd.f32 %v1879, %v1907
        %1909 = vdwg.mxu0
        %1910 = vmatpush.msra.mxu0 0.0
        %1911 = vmatpush.msra.mxu0 0.0
        %1912 = vmatpush.msra.mxu0 0.0
        %1913 = vmatpush.msra.mxu0 0.0
        %1914 = vmatpush.msra.mxu0 0.0
        %1915 = vmatpush.msra.mxu0 0.0
        %1916 = vmatpush.msra.mxu0 0.0
        %1917 = vmatpush.msra.mxu0 0.0
        %1918 = vmatpush.msra.mxu0 0.0
        %1919 = vmatpush.msra.mxu0 0.0
        %v1920 = vand.u32 %v1411, 4294901760
        %v1921 = vsub.f32 %v1411, %v1920
        %v1922 = vand.u32 %v1921, 4294901760
        %1923 = vmatpush.msra.mxu0 %v1922
        %v1924 = vand.u32 %v1391, 4294901760
        %v1925 = vsub.f32 %v1391, %v1924
        %v1926 = vand.u32 %v1925, 4294901760
        %1927 = vmatpush.msra.mxu0 %v1926
        %v1928 = vand.u32 %v1371, 4294901760
        %v1929 = vsub.f32 %v1371, %v1928
        %v1930 = vand.u32 %v1929, 4294901760
        %1931 = vmatpush.msra.mxu0 %v1930
        %v1932 = vand.u32 %v1351, 4294901760
        %v1933 = vsub.f32 %v1351, %v1932
        %v1934 = vand.u32 %v1933, 4294901760
        %1935 = vmatpush.msra.mxu0 %v1934
        %v1936 = vand.u32 %v1331, 4294901760
        %v1937 = vsub.f32 %v1331, %v1936
        %v1938 = vand.u32 %v1937, 4294901760
        %1939 = vmatpush.msra.mxu0 %v1938
        %v1940 = vand.u32 %v1311, 4294901760
        %v1941 = vsub.f32 %v1311, %v1940
        %v1942 = vand.u32 %v1941, 4294901760
        %1943 = vmatpush.msra.mxu0 %v1942
        %v1944 = vand.u32 %v1552, 4294901760
        %1945 = vmatmul.f32.gmra.mxu0 %v1944
        %v1946 = vpop.f32.mrf.mxu0
        %v1947 = vadd.f32 %v1908, %v1946
        %1948 = vdwg.mxu0
        %1949 = vmatpush.msra.mxu0 0.0
        %1950 = vmatpush.msra.mxu0 0.0
        %1951 = vmatpush.msra.mxu0 0.0
        %1952 = vmatpush.msra.mxu0 0.0
        %1953 = vmatpush.msra.mxu0 0.0
        %1954 = vmatpush.msra.mxu0 0.0
        %1955 = vmatpush.msra.mxu0 0.0
        %1956 = vmatpush.msra.mxu0 0.0
        %1957 = vmatpush.msra.mxu0 0.0
        %1958 = vmatpush.msra.mxu0 0.0
        %v1959 = vand.u32 %v1411, 4294901760
        %1960 = vmatpush.msra.mxu0 %v1959
        %v1961 = vand.u32 %v1391, 4294901760
        %1962 = vmatpush.msra.mxu0 %v1961
        %v1963 = vand.u32 %v1371, 4294901760
        %1964 = vmatpush.msra.mxu0 %v1963
        %v1965 = vand.u32 %v1351, 4294901760
        %1966 = vmatpush.msra.mxu0 %v1965
        %v1967 = vand.u32 %v1331, 4294901760
        %1968 = vmatpush.msra.mxu0 %v1967
        %v1969 = vand.u32 %v1311, 4294901760
        %1970 = vmatpush.msra.mxu0 %v1969
        %v1971 = vand.u32 %v1552, 4294901760
        %1972 = vmatmul.f32.gmra.mxu0 %v1971
        %v1973 = vpop.f32.mrf.mxu0
        %v1974 = vadd.f32 %v1947, %v1973
        %1975 = vdwg.mxu0
        %1976 = vmatpush.msra.mxu0 0.0
        %1977 = vmatpush.msra.mxu0 0.0
        %1978 = vmatpush.msra.mxu0 0.0
        %1979 = vmatpush.msra.mxu0 0.0
        %1980 = vmatpush.msra.mxu0 0.0
        %1981 = vmatpush.msra.mxu0 0.0
        %1982 = vmatpush.msra.mxu0 0.0
        %1983 = vmatpush.msra.mxu0 0.0
        %1984 = vmatpush.msra.mxu0 0.0
        %1985 = vmatpush.msra.mxu0 0.0
        %v1986 = vand.u32 %v1412, 4294901760
        %1987 = vmatpush.msra.mxu0 %v1986
        %v1988 = vand.u32 %v1392, 4294901760
        %1989 = vmatpush.msra.mxu0 %v1988
        %v1990 = vand.u32 %v1372, 4294901760
        %1991 = vmatpush.msra.mxu0 %v1990
        %v1992 = vand.u32 %v1352, 4294901760
        %1993 = vmatpush.msra.mxu0 %v1992
        %v1994 = vand.u32 %v1332, 4294901760
        %1995 = vmatpush.msra.mxu0 %v1994
        %v1996 = vand.u32 %v1312, 4294901760
        %1997 = vmatpush.msra.mxu0 %v1996
        %v1998 = vand.u32 %v1552, 4294901760
        %v1999 = vsub.f32 %v1552, %v1998
        %v2000 = vand.u32 %v1999, 4294901760
        %v2001 = vsub.f32 %v1999, %v2000
        %v2002 = vand.u32 %v2001, 4294901760
        %2003 = vmatmul.f32.gmra.mxu0 %v2002
        %v2004 = vpop.f32.mrf.mxu0
        %v2005 = vadd.f32 %v1053, %v2004
        %2006 = vdwg.mxu0
        %2007 = vmatpush.msra.mxu0 0.0
        %2008 = vmatpush.msra.mxu0 0.0
        %2009 = vmatpush.msra.mxu0 0.0
        %2010 = vmatpush.msra.mxu0 0.0
        %2011 = vmatpush.msra.mxu0 0.0
        %2012 = vmatpush.msra.mxu0 0.0
        %2013 = vmatpush.msra.mxu0 0.0
        %2014 = vmatpush.msra.mxu0 0.0
        %2015 = vmatpush.msra.mxu0 0.0
        %2016 = vmatpush.msra.mxu0 0.0
        %v2017 = vand.u32 %v1412, 4294901760
        %v2018 = vsub.f32 %v1412, %v2017
        %v2019 = vand.u32 %v2018, 4294901760
        %v2020 = vsub.f32 %v2018, %v2019
        %v2021 = vand.u32 %v2020, 4294901760
        %2022 = vmatpush.msra.mxu0 %v2021
        %v2023 = vand.u32 %v1392, 4294901760
        %v2024 = vsub.f32 %v1392, %v2023
        %v2025 = vand.u32 %v2024, 4294901760
        %v2026 = vsub.f32 %v2024, %v2025
        %v2027 = vand.u32 %v2026, 4294901760
        %2028 = vmatpush.msra.mxu0 %v2027
        %v2029 = vand.u32 %v1372, 4294901760
        %v2030 = vsub.f32 %v1372, %v2029
        %v2031 = vand.u32 %v2030, 4294901760
        %v2032 = vsub.f32 %v2030, %v2031
        %v2033 = vand.u32 %v2032, 4294901760
        %2034 = vmatpush.msra.mxu0 %v2033
        %v2035 = vand.u32 %v1352, 4294901760
        %v2036 = vsub.f32 %v1352, %v2035
        %v2037 = vand.u32 %v2036, 4294901760
        %v2038 = vsub.f32 %v2036, %v2037
        %v2039 = vand.u32 %v2038, 4294901760
        %2040 = vmatpush.msra.mxu0 %v2039
        %v2041 = vand.u32 %v1332, 4294901760
        %v2042 = vsub.f32 %v1332, %v2041
        %v2043 = vand.u32 %v2042, 4294901760
        %v2044 = vsub.f32 %v2042, %v2043
        %v2045 = vand.u32 %v2044, 4294901760
        %2046 = vmatpush.msra.mxu0 %v2045
        %v2047 = vand.u32 %v1312, 4294901760
        %v2048 = vsub.f32 %v1312, %v2047
        %v2049 = vand.u32 %v2048, 4294901760
        %v2050 = vsub.f32 %v2048, %v2049
        %v2051 = vand.u32 %v2050, 4294901760
        %2052 = vmatpush.msra.mxu0 %v2051
        %v2053 = vand.u32 %v1552, 4294901760
        %2054 = vmatmul.f32.gmra.mxu0 %v2053
        %v2055 = vpop.f32.mrf.mxu0
        %v2056 = vadd.f32 %v2005, %v2055
        %2057 = vdwg.mxu0
        %2058 = vmatpush.msra.mxu0 0.0
        %2059 = vmatpush.msra.mxu0 0.0
        %2060 = vmatpush.msra.mxu0 0.0
        %2061 = vmatpush.msra.mxu0 0.0
        %2062 = vmatpush.msra.mxu0 0.0
        %2063 = vmatpush.msra.mxu0 0.0
        %2064 = vmatpush.msra.mxu0 0.0
        %2065 = vmatpush.msra.mxu0 0.0
        %2066 = vmatpush.msra.mxu0 0.0
        %2067 = vmatpush.msra.mxu0 0.0
        %v2068 = vand.u32 %v1412, 4294901760
        %v2069 = vsub.f32 %v1412, %v2068
        %2070 = vmatpush.msra.mxu0 %v2069
        %v2071 = vand.u32 %v1392, 4294901760
        %v2072 = vsub.f32 %v1392, %v2071
        %2073 = vmatpush.msra.mxu0 %v2072
        %v2074 = vand.u32 %v1372, 4294901760
        %v2075 = vsub.f32 %v1372, %v2074
        %2076 = vmatpush.msra.mxu0 %v2075
        %v2077 = vand.u32 %v1352, 4294901760
        %v2078 = vsub.f32 %v1352, %v2077
        %2079 = vmatpush.msra.mxu0 %v2078
        %v2080 = vand.u32 %v1332, 4294901760
        %v2081 = vsub.f32 %v1332, %v2080
        %2082 = vmatpush.msra.mxu0 %v2081
        %v2083 = vand.u32 %v1312, 4294901760
        %v2084 = vsub.f32 %v1312, %v2083
        %2085 = vmatpush.msra.mxu0 %v2084
        %v2086 = vand.u32 %v1552, 4294901760
        %v2087 = vsub.f32 %v1552, %v2086
        %2088 = vmatmul.f32.gmra.mxu0 %v2087
        %v2089 = vpop.f32.mrf.mxu0
        %v2090 = vadd.f32 %v2056, %v2089
        %2091 = vdwg.mxu0
        %2092 = vmatpush.msra.mxu0 0.0
        %2093 = vmatpush.msra.mxu0 0.0
        %2094 = vmatpush.msra.mxu0 0.0
        %2095 = vmatpush.msra.mxu0 0.0
        %2096 = vmatpush.msra.mxu0 0.0
        %2097 = vmatpush.msra.mxu0 0.0
        %2098 = vmatpush.msra.mxu0 0.0
        %2099 = vmatpush.msra.mxu0 0.0
        %2100 = vmatpush.msra.mxu0 0.0
        %2101 = vmatpush.msra.mxu0 0.0
        %v2102 = vand.u32 %v1412, 4294901760
        %2103 = vmatpush.msra.mxu0 %v2102
        %v2104 = vand.u32 %v1392, 4294901760
        %2105 = vmatpush.msra.mxu0 %v2104
        %v2106 = vand.u32 %v1372, 4294901760
        %2107 = vmatpush.msra.mxu0 %v2106
        %v2108 = vand.u32 %v1352, 4294901760
        %2109 = vmatpush.msra.mxu0 %v2108
        %v2110 = vand.u32 %v1332, 4294901760
        %2111 = vmatpush.msra.mxu0 %v2110
        %v2112 = vand.u32 %v1312, 4294901760
        %2113 = vmatpush.msra.mxu0 %v2112
        %v2114 = vand.u32 %v1552, 4294901760
        %v2115 = vsub.f32 %v1552, %v2114
        %v2116 = vand.u32 %v2115, 4294901760
        %2117 = vmatmul.f32.gmra.mxu0 %v2116
        %v2118 = vpop.f32.mrf.mxu0
        %v2119 = vadd.f32 %v2090, %v2118
        %2120 = vdwg.mxu0
        %2121 = vmatpush.msra.mxu0 0.0
        %2122 = vmatpush.msra.mxu0 0.0
        %2123 = vmatpush.msra.mxu0 0.0
        %2124 = vmatpush.msra.mxu0 0.0
        %2125 = vmatpush.msra.mxu0 0.0
        %2126 = vmatpush.msra.mxu0 0.0
        %2127 = vmatpush.msra.mxu0 0.0
        %2128 = vmatpush.msra.mxu0 0.0
        %2129 = vmatpush.msra.mxu0 0.0
        %2130 = vmatpush.msra.mxu0 0.0
        %v2131 = vand.u32 %v1412, 4294901760
        %v2132 = vsub.f32 %v1412, %v2131
        %v2133 = vand.u32 %v2132, 4294901760
        %2134 = vmatpush.msra.mxu0 %v2133
        %v2135 = vand.u32 %v1392, 4294901760
        %v2136 = vsub.f32 %v1392, %v2135
        %v2137 = vand.u32 %v2136, 4294901760
        %2138 = vmatpush.msra.mxu0 %v2137
        %v2139 = vand.u32 %v1372, 4294901760
        %v2140 = vsub.f32 %v1372, %v2139
        %v2141 = vand.u32 %v2140, 4294901760
        %2142 = vmatpush.msra.mxu0 %v2141
        %v2143 = vand.u32 %v1352, 4294901760
        %v2144 = vsub.f32 %v1352, %v2143
        %v2145 = vand.u32 %v2144, 4294901760
        %2146 = vmatpush.msra.mxu0 %v2145
        %v2147 = vand.u32 %v1332, 4294901760
        %v2148 = vsub.f32 %v1332, %v2147
        %v2149 = vand.u32 %v2148, 4294901760
        %2150 = vmatpush.msra.mxu0 %v2149
        %v2151 = vand.u32 %v1312, 4294901760
        %v2152 = vsub.f32 %v1312, %v2151
        %v2153 = vand.u32 %v2152, 4294901760
        %2154 = vmatpush.msra.mxu0 %v2153
        %v2155 = vand.u32 %v1552, 4294901760
        %2156 = vmatmul.f32.gmra.mxu0 %v2155
        %v2157 = vpop.f32.mrf.mxu0
        %v2158 = vadd.f32 %v2119, %v2157
        %2159 = vdwg.mxu0
        %2160 = vmatpush.msra.mxu0 0.0
        %2161 = vmatpush.msra.mxu0 0.0
        %2162 = vmatpush.msra.mxu0 0.0
        %2163 = vmatpush.msra.mxu0 0.0
        %2164 = vmatpush.msra.mxu0 0.0
        %2165 = vmatpush.msra.mxu0 0.0
        %2166 = vmatpush.msra.mxu0 0.0
        %2167 = vmatpush.msra.mxu0 0.0
        %2168 = vmatpush.msra.mxu0 0.0
        %2169 = vmatpush.msra.mxu0 0.0
        %v2170 = vand.u32 %v1412, 4294901760
        %2171 = vmatpush.msra.mxu0 %v2170
        %v2172 = vand.u32 %v1392, 4294901760
        %2173 = vmatpush.msra.mxu0 %v2172
        %v2174 = vand.u32 %v1372, 4294901760
        %2175 = vmatpush.msra.mxu0 %v2174
        %v2176 = vand.u32 %v1352, 4294901760
        %2177 = vmatpush.msra.mxu0 %v2176
        %v2178 = vand.u32 %v1332, 4294901760
        %2179 = vmatpush.msra.mxu0 %v2178
        %v2180 = vand.u32 %v1312, 4294901760
        %2181 = vmatpush.msra.mxu0 %v2180
        %v2182 = vand.u32 %v1552, 4294901760
        %2183 = vmatmul.f32.gmra.mxu0 %v2182
        %v2184 = vpop.f32.mrf.mxu0
        %v2185 = vadd.f32 %v2158, %v2184
        %2186 = vdwg.mxu0
        %2187 = vmatpush.msra.mxu0 0.0
        %2188 = vmatpush.msra.mxu0 0.0
        %2189 = vmatpush.msra.mxu0 0.0
        %2190 = vmatpush.msra.mxu0 0.0
        %2191 = vmatpush.msra.mxu0 0.0
        %2192 = vmatpush.msra.mxu0 0.0
        %2193 = vmatpush.msra.mxu0 0.0
        %2194 = vmatpush.msra.mxu0 0.0
        %2195 = vmatpush.msra.mxu0 0.0
        %2196 = vmatpush.msra.mxu0 0.0
        %v2197 = vand.u32 %v1413, 4294901760
        %2198 = vmatpush.msra.mxu0 %v2197
        %v2199 = vand.u32 %v1393, 4294901760
        %2200 = vmatpush.msra.mxu0 %v2199
        %v2201 = vand.u32 %v1373, 4294901760
        %2202 = vmatpush.msra.mxu0 %v2201
        %v2203 = vand.u32 %v1353, 4294901760
        %2204 = vmatpush.msra.mxu0 %v2203
        %v2205 = vand.u32 %v1333, 4294901760
        %2206 = vmatpush.msra.mxu0 %v2205
        %v2207 = vand.u32 %v1313, 4294901760
        %2208 = vmatpush.msra.mxu0 %v2207
        %v2209 = vand.u32 %v1552, 4294901760
        %v2210 = vsub.f32 %v1552, %v2209
        %v2211 = vand.u32 %v2210, 4294901760
        %v2212 = vsub.f32 %v2210, %v2211
        %v2213 = vand.u32 %v2212, 4294901760
        %2214 = vmatmul.f32.gmra.mxu0 %v2213
        %v2215 = vpop.f32.mrf.mxu0
        %v2216 = vadd.f32 %v1053, %v2215
        %2217 = vdwg.mxu0
        %2218 = vmatpush.msra.mxu0 0.0
        %2219 = vmatpush.msra.mxu0 0.0
        %2220 = vmatpush.msra.mxu0 0.0
        %2221 = vmatpush.msra.mxu0 0.0
        %2222 = vmatpush.msra.mxu0 0.0
        %2223 = vmatpush.msra.mxu0 0.0
        %2224 = vmatpush.msra.mxu0 0.0
        %2225 = vmatpush.msra.mxu0 0.0
        %2226 = vmatpush.msra.mxu0 0.0
        %2227 = vmatpush.msra.mxu0 0.0
        %v2228 = vand.u32 %v1413, 4294901760
        %v2229 = vsub.f32 %v1413, %v2228
        %v2230 = vand.u32 %v2229, 4294901760
        %v2231 = vsub.f32 %v2229, %v2230
        %v2232 = vand.u32 %v2231, 4294901760
        %2233 = vmatpush.msra.mxu0 %v2232
        %v2234 = vand.u32 %v1393, 4294901760
        %v2235 = vsub.f32 %v1393, %v2234
        %v2236 = vand.u32 %v2235, 4294901760
        %v2237 = vsub.f32 %v2235, %v2236
        %v2238 = vand.u32 %v2237, 4294901760
        %2239 = vmatpush.msra.mxu0 %v2238
        %v2240 = vand.u32 %v1373, 4294901760
        %v2241 = vsub.f32 %v1373, %v2240
        %v2242 = vand.u32 %v2241, 4294901760
        %v2243 = vsub.f32 %v2241, %v2242
        %v2244 = vand.u32 %v2243, 4294901760
        %2245 = vmatpush.msra.mxu0 %v2244
        %v2246 = vand.u32 %v1353, 4294901760
        %v2247 = vsub.f32 %v1353, %v2246
        %v2248 = vand.u32 %v2247, 4294901760
        %v2249 = vsub.f32 %v2247, %v2248
        %v2250 = vand.u32 %v2249, 4294901760
        %2251 = vmatpush.msra.mxu0 %v2250
        %v2252 = vand.u32 %v1333, 4294901760
        %v2253 = vsub.f32 %v1333, %v2252
        %v2254 = vand.u32 %v2253, 4294901760
        %v2255 = vsub.f32 %v2253, %v2254
        %v2256 = vand.u32 %v2255, 4294901760
        %2257 = vmatpush.msra.mxu0 %v2256
        %v2258 = vand.u32 %v1313, 4294901760
        %v2259 = vsub.f32 %v1313, %v2258
        %v2260 = vand.u32 %v2259, 4294901760
        %v2261 = vsub.f32 %v2259, %v2260
        %v2262 = vand.u32 %v2261, 4294901760
        %2263 = vmatpush.msra.mxu0 %v2262
        %v2264 = vand.u32 %v1552, 4294901760
        %2265 = vmatmul.f32.gmra.mxu0 %v2264
        %v2266 = vpop.f32.mrf.mxu0
        %v2267 = vadd.f32 %v2216, %v2266
        %2268 = vdwg.mxu0
        %2269 = vmatpush.msra.mxu0 0.0
        %2270 = vmatpush.msra.mxu0 0.0
        %2271 = vmatpush.msra.mxu0 0.0
        %2272 = vmatpush.msra.mxu0 0.0
        %2273 = vmatpush.msra.mxu0 0.0
        %2274 = vmatpush.msra.mxu0 0.0
        %2275 = vmatpush.msra.mxu0 0.0
        %2276 = vmatpush.msra.mxu0 0.0
        %2277 = vmatpush.msra.mxu0 0.0
        %2278 = vmatpush.msra.mxu0 0.0
        %v2279 = vand.u32 %v1413, 4294901760
        %v2280 = vsub.f32 %v1413, %v2279
        %2281 = vmatpush.msra.mxu0 %v2280
        %v2282 = vand.u32 %v1393, 4294901760
        %v2283 = vsub.f32 %v1393, %v2282
        %2284 = vmatpush.msra.mxu0 %v2283
        %v2285 = vand.u32 %v1373, 4294901760
        %v2286 = vsub.f32 %v1373, %v2285
        %2287 = vmatpush.msra.mxu0 %v2286
        %v2288 = vand.u32 %v1353, 4294901760
        %v2289 = vsub.f32 %v1353, %v2288
        %2290 = vmatpush.msra.mxu0 %v2289
        %v2291 = vand.u32 %v1333, 4294901760
        %v2292 = vsub.f32 %v1333, %v2291
        %2293 = vmatpush.msra.mxu0 %v2292
        %v2294 = vand.u32 %v1313, 4294901760
        %v2295 = vsub.f32 %v1313, %v2294
        %2296 = vmatpush.msra.mxu0 %v2295
        %v2297 = vand.u32 %v1552, 4294901760
        %v2298 = vsub.f32 %v1552, %v2297
        %2299 = vmatmul.f32.gmra.mxu0 %v2298
        %v2300 = vpop.f32.mrf.mxu0
        %v2301 = vadd.f32 %v2267, %v2300
        %2302 = vdwg.mxu0
        %2303 = vmatpush.msra.mxu0 0.0
        %2304 = vmatpush.msra.mxu0 0.0
        %2305 = vmatpush.msra.mxu0 0.0
        %2306 = vmatpush.msra.mxu0 0.0
        %2307 = vmatpush.msra.mxu0 0.0
        %2308 = vmatpush.msra.mxu0 0.0
        %2309 = vmatpush.msra.mxu0 0.0
        %2310 = vmatpush.msra.mxu0 0.0
        %2311 = vmatpush.msra.mxu0 0.0
        %2312 = vmatpush.msra.mxu0 0.0
        %v2313 = vand.u32 %v1413, 4294901760
        %2314 = vmatpush.msra.mxu0 %v2313
        %v2315 = vand.u32 %v1393, 4294901760
        %2316 = vmatpush.msra.mxu0 %v2315
        %v2317 = vand.u32 %v1373, 4294901760
        %2318 = vmatpush.msra.mxu0 %v2317
        %v2319 = vand.u32 %v1353, 4294901760
        %2320 = vmatpush.msra.mxu0 %v2319
        %v2321 = vand.u32 %v1333, 4294901760
        %2322 = vmatpush.msra.mxu0 %v2321
        %v2323 = vand.u32 %v1313, 4294901760
        %2324 = vmatpush.msra.mxu0 %v2323
        %v2325 = vand.u32 %v1552, 4294901760
        %v2326 = vsub.f32 %v1552, %v2325
        %v2327 = vand.u32 %v2326, 4294901760
        %2328 = vmatmul.f32.gmra.mxu0 %v2327
        %v2329 = vpop.f32.mrf.mxu0
        %v2330 = vadd.f32 %v2301, %v2329
        %2331 = vdwg.mxu0
        %2332 = vmatpush.msra.mxu0 0.0
        %2333 = vmatpush.msra.mxu0 0.0
        %2334 = vmatpush.msra.mxu0 0.0
        %2335 = vmatpush.msra.mxu0 0.0
        %2336 = vmatpush.msra.mxu0 0.0
        %2337 = vmatpush.msra.mxu0 0.0
        %2338 = vmatpush.msra.mxu0 0.0
        %2339 = vmatpush.msra.mxu0 0.0
        %2340 = vmatpush.msra.mxu0 0.0
        %2341 = vmatpush.msra.mxu0 0.0
        %v2342 = vand.u32 %v1413, 4294901760
        %v2343 = vsub.f32 %v1413, %v2342
        %v2344 = vand.u32 %v2343, 4294901760
        %2345 = vmatpush.msra.mxu0 %v2344
        %v2346 = vand.u32 %v1393, 4294901760
        %v2347 = vsub.f32 %v1393, %v2346
        %v2348 = vand.u32 %v2347, 4294901760
        %2349 = vmatpush.msra.mxu0 %v2348
        %v2350 = vand.u32 %v1373, 4294901760
        %v2351 = vsub.f32 %v1373, %v2350
        %v2352 = vand.u32 %v2351, 4294901760
        %2353 = vmatpush.msra.mxu0 %v2352
        %v2354 = vand.u32 %v1353, 4294901760
        %v2355 = vsub.f32 %v1353, %v2354
        %v2356 = vand.u32 %v2355, 4294901760
        %2357 = vmatpush.msra.mxu0 %v2356
        %v2358 = vand.u32 %v1333, 4294901760
        %v2359 = vsub.f32 %v1333, %v2358
        %v2360 = vand.u32 %v2359, 4294901760
        %2361 = vmatpush.msra.mxu0 %v2360
        %v2362 = vand.u32 %v1313, 4294901760
        %v2363 = vsub.f32 %v1313, %v2362
        %v2364 = vand.u32 %v2363, 4294901760
        %2365 = vmatpush.msra.mxu0 %v2364
        %v2366 = vand.u32 %v1552, 4294901760
        %2367 = vmatmul.f32.gmra.mxu0 %v2366
        %v2368 = vpop.f32.mrf.mxu0
        %v2369 = vadd.f32 %v2330, %v2368
        %2370 = vdwg.mxu0
        %2371 = vmatpush.msra.mxu0 0.0
        %2372 = vmatpush.msra.mxu0 0.0
        %2373 = vmatpush.msra.mxu0 0.0
        %2374 = vmatpush.msra.mxu0 0.0
        %2375 = vmatpush.msra.mxu0 0.0
        %2376 = vmatpush.msra.mxu0 0.0
        %2377 = vmatpush.msra.mxu0 0.0
        %2378 = vmatpush.msra.mxu0 0.0
        %2379 = vmatpush.msra.mxu0 0.0
        %2380 = vmatpush.msra.mxu0 0.0
        %v2381 = vand.u32 %v1413, 4294901760
        %2382 = vmatpush.msra.mxu0 %v2381
        %v2383 = vand.u32 %v1393, 4294901760
        %2384 = vmatpush.msra.mxu0 %v2383
        %v2385 = vand.u32 %v1373, 4294901760
        %2386 = vmatpush.msra.mxu0 %v2385
        %v2387 = vand.u32 %v1353, 4294901760
        %2388 = vmatpush.msra.mxu0 %v2387
        %v2389 = vand.u32 %v1333, 4294901760
        %2390 = vmatpush.msra.mxu0 %v2389
        %v2391 = vand.u32 %v1313, 4294901760
        %2392 = vmatpush.msra.mxu0 %v2391
        %v2393 = vand.u32 %v1552, 4294901760
        %2394 = vmatmul.f32.gmra.mxu0 %v2393
        %v2395 = vpop.f32.mrf.mxu0
        %v2396 = vadd.f32 %v2369, %v2395
        %2397 = vdwg.mxu0
        %2398 = vmatpush.msra.mxu0 0.0
        %2399 = vmatpush.msra.mxu0 0.0
        %2400 = vmatpush.msra.mxu0 0.0
        %2401 = vmatpush.msra.mxu0 0.0
        %2402 = vmatpush.msra.mxu0 0.0
        %2403 = vmatpush.msra.mxu0 0.0
        %2404 = vmatpush.msra.mxu0 0.0
        %2405 = vmatpush.msra.mxu0 0.0
        %2406 = vmatpush.msra.mxu0 0.0
        %2407 = vmatpush.msra.mxu0 0.0
        %v2408 = vand.u32 %v1414, 4294901760
        %2409 = vmatpush.msra.mxu0 %v2408
        %v2410 = vand.u32 %v1394, 4294901760
        %2411 = vmatpush.msra.mxu0 %v2410
        %v2412 = vand.u32 %v1374, 4294901760
        %2413 = vmatpush.msra.mxu0 %v2412
        %v2414 = vand.u32 %v1354, 4294901760
        %2415 = vmatpush.msra.mxu0 %v2414
        %v2416 = vand.u32 %v1334, 4294901760
        %2417 = vmatpush.msra.mxu0 %v2416
        %v2418 = vand.u32 %v1314, 4294901760
        %2419 = vmatpush.msra.mxu0 %v2418
        %v2420 = vand.u32 %v1552, 4294901760
        %v2421 = vsub.f32 %v1552, %v2420
        %v2422 = vand.u32 %v2421, 4294901760
        %v2423 = vsub.f32 %v2421, %v2422
        %v2424 = vand.u32 %v2423, 4294901760
        %2425 = vmatmul.f32.gmra.mxu0 %v2424
        %v2426 = vpop.f32.mrf.mxu0
        %v2427 = vadd.f32 %v1053, %v2426
        %2428 = vdwg.mxu0
        %2429 = vmatpush.msra.mxu0 0.0
        %2430 = vmatpush.msra.mxu0 0.0
        %2431 = vmatpush.msra.mxu0 0.0
        %2432 = vmatpush.msra.mxu0 0.0
        %2433 = vmatpush.msra.mxu0 0.0
        %2434 = vmatpush.msra.mxu0 0.0
        %2435 = vmatpush.msra.mxu0 0.0
        %2436 = vmatpush.msra.mxu0 0.0
        %2437 = vmatpush.msra.mxu0 0.0
        %2438 = vmatpush.msra.mxu0 0.0
        %v2439 = vand.u32 %v1414, 4294901760
        %v2440 = vsub.f32 %v1414, %v2439
        %v2441 = vand.u32 %v2440, 4294901760
        %v2442 = vsub.f32 %v2440, %v2441
        %v2443 = vand.u32 %v2442, 4294901760
        %2444 = vmatpush.msra.mxu0 %v2443
        %v2445 = vand.u32 %v1394, 4294901760
        %v2446 = vsub.f32 %v1394, %v2445
        %v2447 = vand.u32 %v2446, 4294901760
        %v2448 = vsub.f32 %v2446, %v2447
        %v2449 = vand.u32 %v2448, 4294901760
        %2450 = vmatpush.msra.mxu0 %v2449
        %v2451 = vand.u32 %v1374, 4294901760
        %v2452 = vsub.f32 %v1374, %v2451
        %v2453 = vand.u32 %v2452, 4294901760
        %v2454 = vsub.f32 %v2452, %v2453
        %v2455 = vand.u32 %v2454, 4294901760
        %2456 = vmatpush.msra.mxu0 %v2455
        %v2457 = vand.u32 %v1354, 4294901760
        %v2458 = vsub.f32 %v1354, %v2457
        %v2459 = vand.u32 %v2458, 4294901760
        %v2460 = vsub.f32 %v2458, %v2459
        %v2461 = vand.u32 %v2460, 4294901760
        %2462 = vmatpush.msra.mxu0 %v2461
        %v2463 = vand.u32 %v1334, 4294901760
        %v2464 = vsub.f32 %v1334, %v2463
        %v2465 = vand.u32 %v2464, 4294901760
        %v2466 = vsub.f32 %v2464, %v2465
        %v2467 = vand.u32 %v2466, 4294901760
        %2468 = vmatpush.msra.mxu0 %v2467
        %v2469 = vand.u32 %v1314, 4294901760
        %v2470 = vsub.f32 %v1314, %v2469
        %v2471 = vand.u32 %v2470, 4294901760
        %v2472 = vsub.f32 %v2470, %v2471
        %v2473 = vand.u32 %v2472, 4294901760
        %2474 = vmatpush.msra.mxu0 %v2473
        %v2475 = vand.u32 %v1552, 4294901760
        %2476 = vmatmul.f32.gmra.mxu0 %v2475
        %v2477 = vpop.f32.mrf.mxu0
        %v2478 = vadd.f32 %v2427, %v2477
        %2479 = vdwg.mxu0
        %2480 = vmatpush.msra.mxu0 0.0
        %2481 = vmatpush.msra.mxu0 0.0
        %2482 = vmatpush.msra.mxu0 0.0
        %2483 = vmatpush.msra.mxu0 0.0
        %2484 = vmatpush.msra.mxu0 0.0
        %2485 = vmatpush.msra.mxu0 0.0
        %2486 = vmatpush.msra.mxu0 0.0
        %2487 = vmatpush.msra.mxu0 0.0
        %2488 = vmatpush.msra.mxu0 0.0
        %2489 = vmatpush.msra.mxu0 0.0
        %v2490 = vand.u32 %v1414, 4294901760
        %v2491 = vsub.f32 %v1414, %v2490
        %2492 = vmatpush.msra.mxu0 %v2491
        %v2493 = vand.u32 %v1394, 4294901760
        %v2494 = vsub.f32 %v1394, %v2493
        %2495 = vmatpush.msra.mxu0 %v2494
        %v2496 = vand.u32 %v1374, 4294901760
        %v2497 = vsub.f32 %v1374, %v2496
        %2498 = vmatpush.msra.mxu0 %v2497
        %v2499 = vand.u32 %v1354, 4294901760
        %v2500 = vsub.f32 %v1354, %v2499
        %2501 = vmatpush.msra.mxu0 %v2500
        %v2502 = vand.u32 %v1334, 4294901760
        %v2503 = vsub.f32 %v1334, %v2502
        %2504 = vmatpush.msra.mxu0 %v2503
        %v2505 = vand.u32 %v1314, 4294901760
        %v2506 = vsub.f32 %v1314, %v2505
        %2507 = vmatpush.msra.mxu0 %v2506
        %v2508 = vand.u32 %v1552, 4294901760
        %v2509 = vsub.f32 %v1552, %v2508
        %2510 = vmatmul.f32.gmra.mxu0 %v2509
        %v2511 = vpop.f32.mrf.mxu0
        %v2512 = vadd.f32 %v2478, %v2511
        %2513 = vdwg.mxu0
        %2514 = vmatpush.msra.mxu0 0.0
        %2515 = vmatpush.msra.mxu0 0.0
        %2516 = vmatpush.msra.mxu0 0.0
        %2517 = vmatpush.msra.mxu0 0.0
        %2518 = vmatpush.msra.mxu0 0.0
        %2519 = vmatpush.msra.mxu0 0.0
        %2520 = vmatpush.msra.mxu0 0.0
        %2521 = vmatpush.msra.mxu0 0.0
        %2522 = vmatpush.msra.mxu0 0.0
        %2523 = vmatpush.msra.mxu0 0.0
        %v2524 = vand.u32 %v1414, 4294901760
        %2525 = vmatpush.msra.mxu0 %v2524
        %v2526 = vand.u32 %v1394, 4294901760
        %2527 = vmatpush.msra.mxu0 %v2526
        %v2528 = vand.u32 %v1374, 4294901760
        %2529 = vmatpush.msra.mxu0 %v2528
        %v2530 = vand.u32 %v1354, 4294901760
        %2531 = vmatpush.msra.mxu0 %v2530
        %v2532 = vand.u32 %v1334, 4294901760
        %2533 = vmatpush.msra.mxu0 %v2532
        %v2534 = vand.u32 %v1314, 4294901760
        %2535 = vmatpush.msra.mxu0 %v2534
        %v2536 = vand.u32 %v1552, 4294901760
        %v2537 = vsub.f32 %v1552, %v2536
        %v2538 = vand.u32 %v2537, 4294901760
        %2539 = vmatmul.f32.gmra.mxu0 %v2538
        %v2540 = vpop.f32.mrf.mxu0
        %v2541 = vadd.f32 %v2512, %v2540
        %2542 = vdwg.mxu0
        %2543 = vmatpush.msra.mxu0 0.0
        %2544 = vmatpush.msra.mxu0 0.0
        %2545 = vmatpush.msra.mxu0 0.0
        %2546 = vmatpush.msra.mxu0 0.0
        %2547 = vmatpush.msra.mxu0 0.0
        %2548 = vmatpush.msra.mxu0 0.0
        %2549 = vmatpush.msra.mxu0 0.0
        %2550 = vmatpush.msra.mxu0 0.0
        %2551 = vmatpush.msra.mxu0 0.0
        %2552 = vmatpush.msra.mxu0 0.0
        %v2553 = vand.u32 %v1414, 4294901760
        %v2554 = vsub.f32 %v1414, %v2553
        %v2555 = vand.u32 %v2554, 4294901760
        %2556 = vmatpush.msra.mxu0 %v2555
        %v2557 = vand.u32 %v1394, 4294901760
        %v2558 = vsub.f32 %v1394, %v2557
        %v2559 = vand.u32 %v2558, 4294901760
        %2560 = vmatpush.msra.mxu0 %v2559
        %v2561 = vand.u32 %v1374, 4294901760
        %v2562 = vsub.f32 %v1374, %v2561
        %v2563 = vand.u32 %v2562, 4294901760
        %2564 = vmatpush.msra.mxu0 %v2563
        %v2565 = vand.u32 %v1354, 4294901760
        %v2566 = vsub.f32 %v1354, %v2565
        %v2567 = vand.u32 %v2566, 4294901760
        %2568 = vmatpush.msra.mxu0 %v2567
        %v2569 = vand.u32 %v1334, 4294901760
        %v2570 = vsub.f32 %v1334, %v2569
        %v2571 = vand.u32 %v2570, 4294901760
        %2572 = vmatpush.msra.mxu0 %v2571
        %v2573 = vand.u32 %v1314, 4294901760
        %v2574 = vsub.f32 %v1314, %v2573
        %v2575 = vand.u32 %v2574, 4294901760
        %2576 = vmatpush.msra.mxu0 %v2575
        %v2577 = vand.u32 %v1552, 4294901760
        %2578 = vmatmul.f32.gmra.mxu0 %v2577
        %v2579 = vpop.f32.mrf.mxu0
        %v2580 = vadd.f32 %v2541, %v2579
        %2581 = vdwg.mxu0
        %2582 = vmatpush.msra.mxu0 0.0
        %2583 = vmatpush.msra.mxu0 0.0
        %2584 = vmatpush.msra.mxu0 0.0
        %2585 = vmatpush.msra.mxu0 0.0
        %2586 = vmatpush.msra.mxu0 0.0
        %2587 = vmatpush.msra.mxu0 0.0
        %2588 = vmatpush.msra.mxu0 0.0
        %2589 = vmatpush.msra.mxu0 0.0
        %2590 = vmatpush.msra.mxu0 0.0
        %2591 = vmatpush.msra.mxu0 0.0
        %v2592 = vand.u32 %v1414, 4294901760
        %2593 = vmatpush.msra.mxu0 %v2592
        %v2594 = vand.u32 %v1394, 4294901760
        %2595 = vmatpush.msra.mxu0 %v2594
        %v2596 = vand.u32 %v1374, 4294901760
        %2597 = vmatpush.msra.mxu0 %v2596
        %v2598 = vand.u32 %v1354, 4294901760
        %2599 = vmatpush.msra.mxu0 %v2598
        %v2600 = vand.u32 %v1334, 4294901760
        %2601 = vmatpush.msra.mxu0 %v2600
        %v2602 = vand.u32 %v1314, 4294901760
        %2603 = vmatpush.msra.mxu0 %v2602
        %v2604 = vand.u32 %v1552, 4294901760
        %2605 = vmatmul.f32.gmra.mxu0 %v2604
        %v2606 = vpop.f32.mrf.mxu0
        %v2607 = vadd.f32 %v2580, %v2606
        %2608 = vdwg.mxu0
        %2609 = vmatpush.msra.mxu0 0.0
        %2610 = vmatpush.msra.mxu0 0.0
        %2611 = vmatpush.msra.mxu0 0.0
        %2612 = vmatpush.msra.mxu0 0.0
        %2613 = vmatpush.msra.mxu0 0.0
        %2614 = vmatpush.msra.mxu0 0.0
        %2615 = vmatpush.msra.mxu0 0.0
        %2616 = vmatpush.msra.mxu0 0.0
        %2617 = vmatpush.msra.mxu0 0.0
        %2618 = vmatpush.msra.mxu0 0.0
        %v2619 = vand.u32 %v1415, 4294901760
        %2620 = vmatpush.msra.mxu0 %v2619
        %v2621 = vand.u32 %v1395, 4294901760
        %2622 = vmatpush.msra.mxu0 %v2621
        %v2623 = vand.u32 %v1375, 4294901760
        %2624 = vmatpush.msra.mxu0 %v2623
        %v2625 = vand.u32 %v1355, 4294901760
        %2626 = vmatpush.msra.mxu0 %v2625
        %v2627 = vand.u32 %v1335, 4294901760
        %2628 = vmatpush.msra.mxu0 %v2627
        %v2629 = vand.u32 %v1315, 4294901760
        %2630 = vmatpush.msra.mxu0 %v2629
        %v2631 = vand.u32 %v1552, 4294901760
        %v2632 = vsub.f32 %v1552, %v2631
        %v2633 = vand.u32 %v2632, 4294901760
        %v2634 = vsub.f32 %v2632, %v2633
        %v2635 = vand.u32 %v2634, 4294901760
        %2636 = vmatmul.f32.gmra.mxu0 %v2635
        %v2637 = vpop.f32.mrf.mxu0
        %v2638 = vadd.f32 %v1053, %v2637
        %2639 = vdwg.mxu0
        %2640 = vmatpush.msra.mxu0 0.0
        %2641 = vmatpush.msra.mxu0 0.0
        %2642 = vmatpush.msra.mxu0 0.0
        %2643 = vmatpush.msra.mxu0 0.0
        %2644 = vmatpush.msra.mxu0 0.0
        %2645 = vmatpush.msra.mxu0 0.0
        %2646 = vmatpush.msra.mxu0 0.0
        %2647 = vmatpush.msra.mxu0 0.0
        %2648 = vmatpush.msra.mxu0 0.0
        %2649 = vmatpush.msra.mxu0 0.0
        %v2650 = vand.u32 %v1415, 4294901760
        %v2651 = vsub.f32 %v1415, %v2650
        %v2652 = vand.u32 %v2651, 4294901760
        %v2653 = vsub.f32 %v2651, %v2652
        %v2654 = vand.u32 %v2653, 4294901760
        %2655 = vmatpush.msra.mxu0 %v2654
        %v2656 = vand.u32 %v1395, 4294901760
        %v2657 = vsub.f32 %v1395, %v2656
        %v2658 = vand.u32 %v2657, 4294901760
        %v2659 = vsub.f32 %v2657, %v2658
        %v2660 = vand.u32 %v2659, 4294901760
        %2661 = vmatpush.msra.mxu0 %v2660
        %v2662 = vand.u32 %v1375, 4294901760
        %v2663 = vsub.f32 %v1375, %v2662
        %v2664 = vand.u32 %v2663, 4294901760
        %v2665 = vsub.f32 %v2663, %v2664
        %v2666 = vand.u32 %v2665, 4294901760
        %2667 = vmatpush.msra.mxu0 %v2666
        %v2668 = vand.u32 %v1355, 4294901760
        %v2669 = vsub.f32 %v1355, %v2668
        %v2670 = vand.u32 %v2669, 4294901760
        %v2671 = vsub.f32 %v2669, %v2670
        %v2672 = vand.u32 %v2671, 4294901760
        %2673 = vmatpush.msra.mxu0 %v2672
        %v2674 = vand.u32 %v1335, 4294901760
        %v2675 = vsub.f32 %v1335, %v2674
        %v2676 = vand.u32 %v2675, 4294901760
        %v2677 = vsub.f32 %v2675, %v2676
        %v2678 = vand.u32 %v2677, 4294901760
        %2679 = vmatpush.msra.mxu0 %v2678
        %v2680 = vand.u32 %v1315, 4294901760
        %v2681 = vsub.f32 %v1315, %v2680
        %v2682 = vand.u32 %v2681, 4294901760
        %v2683 = vsub.f32 %v2681, %v2682
        %v2684 = vand.u32 %v2683, 4294901760
        %2685 = vmatpush.msra.mxu0 %v2684
        %v2686 = vand.u32 %v1552, 4294901760
        %2687 = vmatmul.f32.gmra.mxu0 %v2686
        %v2688 = vpop.f32.mrf.mxu0
        %v2689 = vadd.f32 %v2638, %v2688
        %2690 = vdwg.mxu0
        %2691 = vmatpush.msra.mxu0 0.0
        %2692 = vmatpush.msra.mxu0 0.0
        %2693 = vmatpush.msra.mxu0 0.0
        %2694 = vmatpush.msra.mxu0 0.0
        %2695 = vmatpush.msra.mxu0 0.0
        %2696 = vmatpush.msra.mxu0 0.0
        %2697 = vmatpush.msra.mxu0 0.0
        %2698 = vmatpush.msra.mxu0 0.0
        %2699 = vmatpush.msra.mxu0 0.0
        %2700 = vmatpush.msra.mxu0 0.0
        %v2701 = vand.u32 %v1415, 4294901760
        %v2702 = vsub.f32 %v1415, %v2701
        %2703 = vmatpush.msra.mxu0 %v2702
        %v2704 = vand.u32 %v1395, 4294901760
        %v2705 = vsub.f32 %v1395, %v2704
        %2706 = vmatpush.msra.mxu0 %v2705
        %v2707 = vand.u32 %v1375, 4294901760
        %v2708 = vsub.f32 %v1375, %v2707
        %2709 = vmatpush.msra.mxu0 %v2708
        %v2710 = vand.u32 %v1355, 4294901760
        %v2711 = vsub.f32 %v1355, %v2710
        %2712 = vmatpush.msra.mxu0 %v2711
        %v2713 = vand.u32 %v1335, 4294901760
        %v2714 = vsub.f32 %v1335, %v2713
        %2715 = vmatpush.msra.mxu0 %v2714
        %v2716 = vand.u32 %v1315, 4294901760
        %v2717 = vsub.f32 %v1315, %v2716
        %2718 = vmatpush.msra.mxu0 %v2717
        %v2719 = vand.u32 %v1552, 4294901760
        %v2720 = vsub.f32 %v1552, %v2719
        %2721 = vmatmul.f32.gmra.mxu0 %v2720
        %v2722 = vpop.f32.mrf.mxu0
        %v2723 = vadd.f32 %v2689, %v2722
        %2724 = vdwg.mxu0
        %2725 = vmatpush.msra.mxu0 0.0
        %2726 = vmatpush.msra.mxu0 0.0
        %2727 = vmatpush.msra.mxu0 0.0
        %2728 = vmatpush.msra.mxu0 0.0
        %2729 = vmatpush.msra.mxu0 0.0
        %2730 = vmatpush.msra.mxu0 0.0
        %2731 = vmatpush.msra.mxu0 0.0
        %2732 = vmatpush.msra.mxu0 0.0
        %2733 = vmatpush.msra.mxu0 0.0
        %2734 = vmatpush.msra.mxu0 0.0
        %v2735 = vand.u32 %v1415, 4294901760
        %2736 = vmatpush.msra.mxu0 %v2735
        %v2737 = vand.u32 %v1395, 4294901760
        %2738 = vmatpush.msra.mxu0 %v2737
        %v2739 = vand.u32 %v1375, 4294901760
        %2740 = vmatpush.msra.mxu0 %v2739
        %v2741 = vand.u32 %v1355, 4294901760
        %2742 = vmatpush.msra.mxu0 %v2741
        %v2743 = vand.u32 %v1335, 4294901760
        %2744 = vmatpush.msra.mxu0 %v2743
        %v2745 = vand.u32 %v1315, 4294901760
        %2746 = vmatpush.msra.mxu0 %v2745
        %v2747 = vand.u32 %v1552, 4294901760
        %v2748 = vsub.f32 %v1552, %v2747
        %v2749 = vand.u32 %v2748, 4294901760
        %2750 = vmatmul.f32.gmra.mxu0 %v2749
        %v2751 = vpop.f32.mrf.mxu0
        %v2752 = vadd.f32 %v2723, %v2751
        %2753 = vdwg.mxu0
        %2754 = vmatpush.msra.mxu0 0.0
        %2755 = vmatpush.msra.mxu0 0.0
        %2756 = vmatpush.msra.mxu0 0.0
        %2757 = vmatpush.msra.mxu0 0.0
        %2758 = vmatpush.msra.mxu0 0.0
        %2759 = vmatpush.msra.mxu0 0.0
        %2760 = vmatpush.msra.mxu0 0.0
        %2761 = vmatpush.msra.mxu0 0.0
        %2762 = vmatpush.msra.mxu0 0.0
        %2763 = vmatpush.msra.mxu0 0.0
        %v2764 = vand.u32 %v1415, 4294901760
        %v2765 = vsub.f32 %v1415, %v2764
        %v2766 = vand.u32 %v2765, 4294901760
        %2767 = vmatpush.msra.mxu0 %v2766
        %v2768 = vand.u32 %v1395, 4294901760
        %v2769 = vsub.f32 %v1395, %v2768
        %v2770 = vand.u32 %v2769, 4294901760
        %2771 = vmatpush.msra.mxu0 %v2770
        %v2772 = vand.u32 %v1375, 4294901760
        %v2773 = vsub.f32 %v1375, %v2772
        %v2774 = vand.u32 %v2773, 4294901760
        %2775 = vmatpush.msra.mxu0 %v2774
        %v2776 = vand.u32 %v1355, 4294901760
        %v2777 = vsub.f32 %v1355, %v2776
        %v2778 = vand.u32 %v2777, 4294901760
        %2779 = vmatpush.msra.mxu0 %v2778
        %v2780 = vand.u32 %v1335, 4294901760
        %v2781 = vsub.f32 %v1335, %v2780
        %v2782 = vand.u32 %v2781, 4294901760
        %2783 = vmatpush.msra.mxu0 %v2782
        %v2784 = vand.u32 %v1315, 4294901760
        %v2785 = vsub.f32 %v1315, %v2784
        %v2786 = vand.u32 %v2785, 4294901760
        %2787 = vmatpush.msra.mxu0 %v2786
        %v2788 = vand.u32 %v1552, 4294901760
        %2789 = vmatmul.f32.gmra.mxu0 %v2788
        %v2790 = vpop.f32.mrf.mxu0
        %v2791 = vadd.f32 %v2752, %v2790
        %2792 = vdwg.mxu0
        %2793 = vmatpush.msra.mxu0 0.0
        %2794 = vmatpush.msra.mxu0 0.0
        %2795 = vmatpush.msra.mxu0 0.0
        %2796 = vmatpush.msra.mxu0 0.0
        %2797 = vmatpush.msra.mxu0 0.0
        %2798 = vmatpush.msra.mxu0 0.0
        %2799 = vmatpush.msra.mxu0 0.0
        %2800 = vmatpush.msra.mxu0 0.0
        %2801 = vmatpush.msra.mxu0 0.0
        %2802 = vmatpush.msra.mxu0 0.0
        %v2803 = vand.u32 %v1415, 4294901760
        %2804 = vmatpush.msra.mxu0 %v2803
        %v2805 = vand.u32 %v1395, 4294901760
        %2806 = vmatpush.msra.mxu0 %v2805
        %v2807 = vand.u32 %v1375, 4294901760
        %2808 = vmatpush.msra.mxu0 %v2807
        %v2809 = vand.u32 %v1355, 4294901760
        %2810 = vmatpush.msra.mxu0 %v2809
        %v2811 = vand.u32 %v1335, 4294901760
        %2812 = vmatpush.msra.mxu0 %v2811
        %v2813 = vand.u32 %v1315, 4294901760
        %2814 = vmatpush.msra.mxu0 %v2813
        %v2815 = vand.u32 %v1552, 4294901760
        %2816 = vmatmul.f32.gmra.mxu0 %v2815
        %v2817 = vpop.f32.mrf.mxu0
        %v2818 = vadd.f32 %v2791, %v2817
        %2819 = vdwg.mxu0
        %2820 = vmatpush.msra.mxu0 0.0
        %2821 = vmatpush.msra.mxu0 0.0
        %2822 = vmatpush.msra.mxu0 0.0
        %2823 = vmatpush.msra.mxu0 0.0
        %2824 = vmatpush.msra.mxu0 0.0
        %2825 = vmatpush.msra.mxu0 0.0
        %2826 = vmatpush.msra.mxu0 0.0
        %2827 = vmatpush.msra.mxu0 0.0
        %2828 = vmatpush.msra.mxu0 0.0
        %2829 = vmatpush.msra.mxu0 0.0
        %v2830 = vand.u32 %v1416, 4294901760
        %2831 = vmatpush.msra.mxu0 %v2830
        %v2832 = vand.u32 %v1396, 4294901760
        %2833 = vmatpush.msra.mxu0 %v2832
        %v2834 = vand.u32 %v1376, 4294901760
        %2835 = vmatpush.msra.mxu0 %v2834
        %v2836 = vand.u32 %v1356, 4294901760
        %2837 = vmatpush.msra.mxu0 %v2836
        %v2838 = vand.u32 %v1336, 4294901760
        %2839 = vmatpush.msra.mxu0 %v2838
        %v2840 = vand.u32 %v1316, 4294901760
        %2841 = vmatpush.msra.mxu0 %v2840
        %v2842 = vand.u32 %v1552, 4294901760
        %v2843 = vsub.f32 %v1552, %v2842
        %v2844 = vand.u32 %v2843, 4294901760
        %v2845 = vsub.f32 %v2843, %v2844
        %v2846 = vand.u32 %v2845, 4294901760
        %2847 = vmatmul.f32.gmra.mxu0 %v2846
        %v2848 = vpop.f32.mrf.mxu0
        %v2849 = vadd.f32 %v1053, %v2848
        %2850 = vdwg.mxu0
        %2851 = vmatpush.msra.mxu0 0.0
        %2852 = vmatpush.msra.mxu0 0.0
        %2853 = vmatpush.msra.mxu0 0.0
        %2854 = vmatpush.msra.mxu0 0.0
        %2855 = vmatpush.msra.mxu0 0.0
        %2856 = vmatpush.msra.mxu0 0.0
        %2857 = vmatpush.msra.mxu0 0.0
        %2858 = vmatpush.msra.mxu0 0.0
        %2859 = vmatpush.msra.mxu0 0.0
        %2860 = vmatpush.msra.mxu0 0.0
        %v2861 = vand.u32 %v1416, 4294901760
        %v2862 = vsub.f32 %v1416, %v2861
        %v2863 = vand.u32 %v2862, 4294901760
        %v2864 = vsub.f32 %v2862, %v2863
        %v2865 = vand.u32 %v2864, 4294901760
        %2866 = vmatpush.msra.mxu0 %v2865
        %v2867 = vand.u32 %v1396, 4294901760
        %v2868 = vsub.f32 %v1396, %v2867
        %v2869 = vand.u32 %v2868, 4294901760
        %v2870 = vsub.f32 %v2868, %v2869
        %v2871 = vand.u32 %v2870, 4294901760
        %2872 = vmatpush.msra.mxu0 %v2871
        %v2873 = vand.u32 %v1376, 4294901760
        %v2874 = vsub.f32 %v1376, %v2873
        %v2875 = vand.u32 %v2874, 4294901760
        %v2876 = vsub.f32 %v2874, %v2875
        %v2877 = vand.u32 %v2876, 4294901760
        %2878 = vmatpush.msra.mxu0 %v2877
        %v2879 = vand.u32 %v1356, 4294901760
        %v2880 = vsub.f32 %v1356, %v2879
        %v2881 = vand.u32 %v2880, 4294901760
        %v2882 = vsub.f32 %v2880, %v2881
        %v2883 = vand.u32 %v2882, 4294901760
        %2884 = vmatpush.msra.mxu0 %v2883
        %v2885 = vand.u32 %v1336, 4294901760
        %v2886 = vsub.f32 %v1336, %v2885
        %v2887 = vand.u32 %v2886, 4294901760
        %v2888 = vsub.f32 %v2886, %v2887
        %v2889 = vand.u32 %v2888, 4294901760
        %2890 = vmatpush.msra.mxu0 %v2889
        %v2891 = vand.u32 %v1316, 4294901760
        %v2892 = vsub.f32 %v1316, %v2891
        %v2893 = vand.u32 %v2892, 4294901760
        %v2894 = vsub.f32 %v2892, %v2893
        %v2895 = vand.u32 %v2894, 4294901760
        %2896 = vmatpush.msra.mxu0 %v2895
        %v2897 = vand.u32 %v1552, 4294901760
        %2898 = vmatmul.f32.gmra.mxu0 %v2897
        %v2899 = vpop.f32.mrf.mxu0
        %v2900 = vadd.f32 %v2849, %v2899
        %2901 = vdwg.mxu0
        %2902 = vmatpush.msra.mxu0 0.0
        %2903 = vmatpush.msra.mxu0 0.0
        %2904 = vmatpush.msra.mxu0 0.0
        %2905 = vmatpush.msra.mxu0 0.0
        %2906 = vmatpush.msra.mxu0 0.0
        %2907 = vmatpush.msra.mxu0 0.0
        %2908 = vmatpush.msra.mxu0 0.0
        %2909 = vmatpush.msra.mxu0 0.0
        %2910 = vmatpush.msra.mxu0 0.0
        %2911 = vmatpush.msra.mxu0 0.0
        %v2912 = vand.u32 %v1416, 4294901760
        %v2913 = vsub.f32 %v1416, %v2912
        %2914 = vmatpush.msra.mxu0 %v2913
        %v2915 = vand.u32 %v1396, 4294901760
        %v2916 = vsub.f32 %v1396, %v2915
        %2917 = vmatpush.msra.mxu0 %v2916
        %v2918 = vand.u32 %v1376, 4294901760
        %v2919 = vsub.f32 %v1376, %v2918
        %2920 = vmatpush.msra.mxu0 %v2919
        %v2921 = vand.u32 %v1356, 4294901760
        %v2922 = vsub.f32 %v1356, %v2921
        %2923 = vmatpush.msra.mxu0 %v2922
        %v2924 = vand.u32 %v1336, 4294901760
        %v2925 = vsub.f32 %v1336, %v2924
        %2926 = vmatpush.msra.mxu0 %v2925
        %v2927 = vand.u32 %v1316, 4294901760
        %v2928 = vsub.f32 %v1316, %v2927
        %2929 = vmatpush.msra.mxu0 %v2928
        %v2930 = vand.u32 %v1552, 4294901760
        %v2931 = vsub.f32 %v1552, %v2930
        %2932 = vmatmul.f32.gmra.mxu0 %v2931
        %v2933 = vpop.f32.mrf.mxu0
        %v2934 = vadd.f32 %v2900, %v2933
        %2935 = vdwg.mxu0
        %2936 = vmatpush.msra.mxu0 0.0
        %2937 = vmatpush.msra.mxu0 0.0
        %2938 = vmatpush.msra.mxu0 0.0
        %2939 = vmatpush.msra.mxu0 0.0
        %2940 = vmatpush.msra.mxu0 0.0
        %2941 = vmatpush.msra.mxu0 0.0
        %2942 = vmatpush.msra.mxu0 0.0
        %2943 = vmatpush.msra.mxu0 0.0
        %2944 = vmatpush.msra.mxu0 0.0
        %2945 = vmatpush.msra.mxu0 0.0
        %v2946 = vand.u32 %v1416, 4294901760
        %2947 = vmatpush.msra.mxu0 %v2946
        %v2948 = vand.u32 %v1396, 4294901760
        %2949 = vmatpush.msra.mxu0 %v2948
        %v2950 = vand.u32 %v1376, 4294901760
        %2951 = vmatpush.msra.mxu0 %v2950
        %v2952 = vand.u32 %v1356, 4294901760
        %2953 = vmatpush.msra.mxu0 %v2952
        %v2954 = vand.u32 %v1336, 4294901760
        %2955 = vmatpush.msra.mxu0 %v2954
        %v2956 = vand.u32 %v1316, 4294901760
        %2957 = vmatpush.msra.mxu0 %v2956
        %v2958 = vand.u32 %v1552, 4294901760
        %v2959 = vsub.f32 %v1552, %v2958
        %v2960 = vand.u32 %v2959, 4294901760
        %2961 = vmatmul.f32.gmra.mxu0 %v2960
        %v2962 = vpop.f32.mrf.mxu0
        %v2963 = vadd.f32 %v2934, %v2962
        %2964 = vdwg.mxu0
        %2965 = vmatpush.msra.mxu0 0.0
        %2966 = vmatpush.msra.mxu0 0.0
        %2967 = vmatpush.msra.mxu0 0.0
        %2968 = vmatpush.msra.mxu0 0.0
        %2969 = vmatpush.msra.mxu0 0.0
        %2970 = vmatpush.msra.mxu0 0.0
        %2971 = vmatpush.msra.mxu0 0.0
        %2972 = vmatpush.msra.mxu0 0.0
        %2973 = vmatpush.msra.mxu0 0.0
        %2974 = vmatpush.msra.mxu0 0.0
        %v2975 = vand.u32 %v1416, 4294901760
        %v2976 = vsub.f32 %v1416, %v2975
        %v2977 = vand.u32 %v2976, 4294901760
        %2978 = vmatpush.msra.mxu0 %v2977
        %v2979 = vand.u32 %v1396, 4294901760
        %v2980 = vsub.f32 %v1396, %v2979
        %v2981 = vand.u32 %v2980, 4294901760
        %2982 = vmatpush.msra.mxu0 %v2981
        %v2983 = vand.u32 %v1376, 4294901760
        %v2984 = vsub.f32 %v1376, %v2983
        %v2985 = vand.u32 %v2984, 4294901760
        %2986 = vmatpush.msra.mxu0 %v2985
        %v2987 = vand.u32 %v1356, 4294901760
        %v2988 = vsub.f32 %v1356, %v2987
        %v2989 = vand.u32 %v2988, 4294901760
        %2990 = vmatpush.msra.mxu0 %v2989
        %v2991 = vand.u32 %v1336, 4294901760
        %v2992 = vsub.f32 %v1336, %v2991
        %v2993 = vand.u32 %v2992, 4294901760
        %2994 = vmatpush.msra.mxu0 %v2993
        %v2995 = vand.u32 %v1316, 4294901760
        %v2996 = vsub.f32 %v1316, %v2995
        %v2997 = vand.u32 %v2996, 4294901760
        %2998 = vmatpush.msra.mxu0 %v2997
        %v2999 = vand.u32 %v1552, 4294901760
        %3000 = vmatmul.f32.gmra.mxu0 %v2999
        %v3001 = vpop.f32.mrf.mxu0
        %v3002 = vadd.f32 %v2963, %v3001
        %3003 = vdwg.mxu0
        %3004 = vmatpush.msra.mxu0 0.0
        %3005 = vmatpush.msra.mxu0 0.0
        %3006 = vmatpush.msra.mxu0 0.0
        %3007 = vmatpush.msra.mxu0 0.0
        %3008 = vmatpush.msra.mxu0 0.0
        %3009 = vmatpush.msra.mxu0 0.0
        %3010 = vmatpush.msra.mxu0 0.0
        %3011 = vmatpush.msra.mxu0 0.0
        %3012 = vmatpush.msra.mxu0 0.0
        %3013 = vmatpush.msra.mxu0 0.0
        %v3014 = vand.u32 %v1416, 4294901760
        %3015 = vmatpush.msra.mxu0 %v3014
        %v3016 = vand.u32 %v1396, 4294901760
        %3017 = vmatpush.msra.mxu0 %v3016
        %v3018 = vand.u32 %v1376, 4294901760
        %3019 = vmatpush.msra.mxu0 %v3018
        %v3020 = vand.u32 %v1356, 4294901760
        %3021 = vmatpush.msra.mxu0 %v3020
        %v3022 = vand.u32 %v1336, 4294901760
        %3023 = vmatpush.msra.mxu0 %v3022
        %v3024 = vand.u32 %v1316, 4294901760
        %3025 = vmatpush.msra.mxu0 %v3024
        %v3026 = vand.u32 %v1552, 4294901760
        %3027 = vmatmul.f32.gmra.mxu0 %v3026
        %v3028 = vpop.f32.mrf.mxu0
        %v3029 = vadd.f32 %v3002, %v3028
        %3030 = vdwg.mxu0
        %3031 = vmatpush.msra.mxu0 0.0
        %3032 = vmatpush.msra.mxu0 0.0
        %3033 = vmatpush.msra.mxu0 0.0
        %3034 = vmatpush.msra.mxu0 0.0
        %3035 = vmatpush.msra.mxu0 0.0
        %3036 = vmatpush.msra.mxu0 0.0
        %3037 = vmatpush.msra.mxu0 0.0
        %3038 = vmatpush.msra.mxu0 0.0
        %3039 = vmatpush.msra.mxu0 0.0
        %3040 = vmatpush.msra.mxu0 0.0
        %v3041 = vand.u32 %v1417, 4294901760
        %3042 = vmatpush.msra.mxu0 %v3041
        %v3043 = vand.u32 %v1397, 4294901760
        %3044 = vmatpush.msra.mxu0 %v3043
        %v3045 = vand.u32 %v1377, 4294901760
        %3046 = vmatpush.msra.mxu0 %v3045
        %v3047 = vand.u32 %v1357, 4294901760
        %3048 = vmatpush.msra.mxu0 %v3047
        %v3049 = vand.u32 %v1337, 4294901760
        %3050 = vmatpush.msra.mxu0 %v3049
        %v3051 = vand.u32 %v1317, 4294901760
        %3052 = vmatpush.msra.mxu0 %v3051
        %v3053 = vand.u32 %v1552, 4294901760
        %v3054 = vsub.f32 %v1552, %v3053
        %v3055 = vand.u32 %v3054, 4294901760
        %v3056 = vsub.f32 %v3054, %v3055
        %v3057 = vand.u32 %v3056, 4294901760
        %3058 = vmatmul.f32.gmra.mxu0 %v3057
        %v3059 = vpop.f32.mrf.mxu0
        %v3060 = vadd.f32 %v1053, %v3059
        %3061 = vdwg.mxu0
        %3062 = vmatpush.msra.mxu0 0.0
        %3063 = vmatpush.msra.mxu0 0.0
        %3064 = vmatpush.msra.mxu0 0.0
        %3065 = vmatpush.msra.mxu0 0.0
        %3066 = vmatpush.msra.mxu0 0.0
        %3067 = vmatpush.msra.mxu0 0.0
        %3068 = vmatpush.msra.mxu0 0.0
        %3069 = vmatpush.msra.mxu0 0.0
        %3070 = vmatpush.msra.mxu0 0.0
        %3071 = vmatpush.msra.mxu0 0.0
        %v3072 = vand.u32 %v1417, 4294901760
        %v3073 = vsub.f32 %v1417, %v3072
        %v3074 = vand.u32 %v3073, 4294901760
        %v3075 = vsub.f32 %v3073, %v3074
        %v3076 = vand.u32 %v3075, 4294901760
        %3077 = vmatpush.msra.mxu0 %v3076
        %v3078 = vand.u32 %v1397, 4294901760
        %v3079 = vsub.f32 %v1397, %v3078
        %v3080 = vand.u32 %v3079, 4294901760
        %v3081 = vsub.f32 %v3079, %v3080
        %v3082 = vand.u32 %v3081, 4294901760
        %3083 = vmatpush.msra.mxu0 %v3082
        %v3084 = vand.u32 %v1377, 4294901760
        %v3085 = vsub.f32 %v1377, %v3084
        %v3086 = vand.u32 %v3085, 4294901760
        %v3087 = vsub.f32 %v3085, %v3086
        %v3088 = vand.u32 %v3087, 4294901760
        %3089 = vmatpush.msra.mxu0 %v3088
        %v3090 = vand.u32 %v1357, 4294901760
        %v3091 = vsub.f32 %v1357, %v3090
        %v3092 = vand.u32 %v3091, 4294901760
        %v3093 = vsub.f32 %v3091, %v3092
        %v3094 = vand.u32 %v3093, 4294901760
        %3095 = vmatpush.msra.mxu0 %v3094
        %v3096 = vand.u32 %v1337, 4294901760
        %v3097 = vsub.f32 %v1337, %v3096
        %v3098 = vand.u32 %v3097, 4294901760
        %v3099 = vsub.f32 %v3097, %v3098
        %v3100 = vand.u32 %v3099, 4294901760
        %3101 = vmatpush.msra.mxu0 %v3100
        %v3102 = vand.u32 %v1317, 4294901760
        %v3103 = vsub.f32 %v1317, %v3102
        %v3104 = vand.u32 %v3103, 4294901760
        %v3105 = vsub.f32 %v3103, %v3104
        %v3106 = vand.u32 %v3105, 4294901760
        %3107 = vmatpush.msra.mxu0 %v3106
        %v3108 = vand.u32 %v1552, 4294901760
        %3109 = vmatmul.f32.gmra.mxu0 %v3108
        %v3110 = vpop.f32.mrf.mxu0
        %v3111 = vadd.f32 %v3060, %v3110
        %3112 = vdwg.mxu0
        %3113 = vmatpush.msra.mxu0 0.0
        %3114 = vmatpush.msra.mxu0 0.0
        %3115 = vmatpush.msra.mxu0 0.0
        %3116 = vmatpush.msra.mxu0 0.0
        %3117 = vmatpush.msra.mxu0 0.0
        %3118 = vmatpush.msra.mxu0 0.0
        %3119 = vmatpush.msra.mxu0 0.0
        %3120 = vmatpush.msra.mxu0 0.0
        %3121 = vmatpush.msra.mxu0 0.0
        %3122 = vmatpush.msra.mxu0 0.0
        %v3123 = vand.u32 %v1417, 4294901760
        %v3124 = vsub.f32 %v1417, %v3123
        %3125 = vmatpush.msra.mxu0 %v3124
        %v3126 = vand.u32 %v1397, 4294901760
        %v3127 = vsub.f32 %v1397, %v3126
        %3128 = vmatpush.msra.mxu0 %v3127
        %v3129 = vand.u32 %v1377, 4294901760
        %v3130 = vsub.f32 %v1377, %v3129
        %3131 = vmatpush.msra.mxu0 %v3130
        %v3132 = vand.u32 %v1357, 4294901760
        %v3133 = vsub.f32 %v1357, %v3132
        %3134 = vmatpush.msra.mxu0 %v3133
        %v3135 = vand.u32 %v1337, 4294901760
        %v3136 = vsub.f32 %v1337, %v3135
        %3137 = vmatpush.msra.mxu0 %v3136
        %v3138 = vand.u32 %v1317, 4294901760
        %v3139 = vsub.f32 %v1317, %v3138
        %3140 = vmatpush.msra.mxu0 %v3139
        %v3141 = vand.u32 %v1552, 4294901760
        %v3142 = vsub.f32 %v1552, %v3141
        %3143 = vmatmul.f32.gmra.mxu0 %v3142
        %v3144 = vpop.f32.mrf.mxu0
        %v3145 = vadd.f32 %v3111, %v3144
        %3146 = vdwg.mxu0
        %3147 = vmatpush.msra.mxu0 0.0
        %3148 = vmatpush.msra.mxu0 0.0
        %3149 = vmatpush.msra.mxu0 0.0
        %3150 = vmatpush.msra.mxu0 0.0
        %3151 = vmatpush.msra.mxu0 0.0
        %3152 = vmatpush.msra.mxu0 0.0
        %3153 = vmatpush.msra.mxu0 0.0
        %3154 = vmatpush.msra.mxu0 0.0
        %3155 = vmatpush.msra.mxu0 0.0
        %3156 = vmatpush.msra.mxu0 0.0
        %v3157 = vand.u32 %v1417, 4294901760
        %3158 = vmatpush.msra.mxu0 %v3157
        %v3159 = vand.u32 %v1397, 4294901760
        %3160 = vmatpush.msra.mxu0 %v3159
        %v3161 = vand.u32 %v1377, 4294901760
        %3162 = vmatpush.msra.mxu0 %v3161
        %v3163 = vand.u32 %v1357, 4294901760
        %3164 = vmatpush.msra.mxu0 %v3163
        %v3165 = vand.u32 %v1337, 4294901760
        %3166 = vmatpush.msra.mxu0 %v3165
        %v3167 = vand.u32 %v1317, 4294901760
        %3168 = vmatpush.msra.mxu0 %v3167
        %v3169 = vand.u32 %v1552, 4294901760
        %v3170 = vsub.f32 %v1552, %v3169
        %v3171 = vand.u32 %v3170, 4294901760
        %3172 = vmatmul.f32.gmra.mxu0 %v3171
        %v3173 = vpop.f32.mrf.mxu0
        %v3174 = vadd.f32 %v3145, %v3173
        %3175 = vdwg.mxu0
        %3176 = vmatpush.msra.mxu0 0.0
        %3177 = vmatpush.msra.mxu0 0.0
        %3178 = vmatpush.msra.mxu0 0.0
        %3179 = vmatpush.msra.mxu0 0.0
        %3180 = vmatpush.msra.mxu0 0.0
        %3181 = vmatpush.msra.mxu0 0.0
        %3182 = vmatpush.msra.mxu0 0.0
        %3183 = vmatpush.msra.mxu0 0.0
        %3184 = vmatpush.msra.mxu0 0.0
        %3185 = vmatpush.msra.mxu0 0.0
        %v3186 = vand.u32 %v1417, 4294901760
        %v3187 = vsub.f32 %v1417, %v3186
        %v3188 = vand.u32 %v3187, 4294901760
        %3189 = vmatpush.msra.mxu0 %v3188
        %v3190 = vand.u32 %v1397, 4294901760
        %v3191 = vsub.f32 %v1397, %v3190
        %v3192 = vand.u32 %v3191, 4294901760
        %3193 = vmatpush.msra.mxu0 %v3192
        %v3194 = vand.u32 %v1377, 4294901760
        %v3195 = vsub.f32 %v1377, %v3194
        %v3196 = vand.u32 %v3195, 4294901760
        %3197 = vmatpush.msra.mxu0 %v3196
        %v3198 = vand.u32 %v1357, 4294901760
        %v3199 = vsub.f32 %v1357, %v3198
        %v3200 = vand.u32 %v3199, 4294901760
        %3201 = vmatpush.msra.mxu0 %v3200
        %v3202 = vand.u32 %v1337, 4294901760
        %v3203 = vsub.f32 %v1337, %v3202
        %v3204 = vand.u32 %v3203, 4294901760
        %3205 = vmatpush.msra.mxu0 %v3204
        %v3206 = vand.u32 %v1317, 4294901760
        %v3207 = vsub.f32 %v1317, %v3206
        %v3208 = vand.u32 %v3207, 4294901760
        %3209 = vmatpush.msra.mxu0 %v3208
        %v3210 = vand.u32 %v1552, 4294901760
        %3211 = vmatmul.f32.gmra.mxu0 %v3210
        %v3212 = vpop.f32.mrf.mxu0
        %v3213 = vadd.f32 %v3174, %v3212
        %3214 = vdwg.mxu0
        %3215 = vmatpush.msra.mxu0 0.0
        %3216 = vmatpush.msra.mxu0 0.0
        %3217 = vmatpush.msra.mxu0 0.0
        %3218 = vmatpush.msra.mxu0 0.0
        %3219 = vmatpush.msra.mxu0 0.0
        %3220 = vmatpush.msra.mxu0 0.0
        %3221 = vmatpush.msra.mxu0 0.0
        %3222 = vmatpush.msra.mxu0 0.0
        %3223 = vmatpush.msra.mxu0 0.0
        %3224 = vmatpush.msra.mxu0 0.0
        %v3225 = vand.u32 %v1417, 4294901760
        %3226 = vmatpush.msra.mxu0 %v3225
        %v3227 = vand.u32 %v1397, 4294901760
        %3228 = vmatpush.msra.mxu0 %v3227
        %v3229 = vand.u32 %v1377, 4294901760
        %3230 = vmatpush.msra.mxu0 %v3229
        %v3231 = vand.u32 %v1357, 4294901760
        %3232 = vmatpush.msra.mxu0 %v3231
        %v3233 = vand.u32 %v1337, 4294901760
        %3234 = vmatpush.msra.mxu0 %v3233
        %v3235 = vand.u32 %v1317, 4294901760
        %3236 = vmatpush.msra.mxu0 %v3235
        %v3237 = vand.u32 %v1552, 4294901760
        %3238 = vmatmul.f32.gmra.mxu0 %v3237
        %v3239 = vpop.f32.mrf.mxu0
        %v3240 = vadd.f32 %v3213, %v3239
        %3241 = vdwg.mxu0
        %3242 = vmatpush.msra.mxu0 0.0
        %3243 = vmatpush.msra.mxu0 0.0
        %3244 = vmatpush.msra.mxu0 0.0
        %3245 = vmatpush.msra.mxu0 0.0
        %3246 = vmatpush.msra.mxu0 0.0
        %3247 = vmatpush.msra.mxu0 0.0
        %3248 = vmatpush.msra.mxu0 0.0
        %3249 = vmatpush.msra.mxu0 0.0
        %3250 = vmatpush.msra.mxu0 0.0
        %3251 = vmatpush.msra.mxu0 0.0
        %v3252 = vand.u32 %v1418, 4294901760
        %3253 = vmatpush.msra.mxu0 %v3252
        %v3254 = vand.u32 %v1398, 4294901760
        %3255 = vmatpush.msra.mxu0 %v3254
        %v3256 = vand.u32 %v1378, 4294901760
        %3257 = vmatpush.msra.mxu0 %v3256
        %v3258 = vand.u32 %v1358, 4294901760
        %3259 = vmatpush.msra.mxu0 %v3258
        %v3260 = vand.u32 %v1338, 4294901760
        %3261 = vmatpush.msra.mxu0 %v3260
        %v3262 = vand.u32 %v1318, 4294901760
        %3263 = vmatpush.msra.mxu0 %v3262
        %v3264 = vand.u32 %v1552, 4294901760
        %v3265 = vsub.f32 %v1552, %v3264
        %v3266 = vand.u32 %v3265, 4294901760
        %v3267 = vsub.f32 %v3265, %v3266
        %v3268 = vand.u32 %v3267, 4294901760
        %3269 = vmatmul.f32.gmra.mxu0 %v3268
        %v3270 = vpop.f32.mrf.mxu0
        %v3271 = vadd.f32 %v1053, %v3270
        %3272 = vdwg.mxu0
        %3273 = vmatpush.msra.mxu0 0.0
        %3274 = vmatpush.msra.mxu0 0.0
        %3275 = vmatpush.msra.mxu0 0.0
        %3276 = vmatpush.msra.mxu0 0.0
        %3277 = vmatpush.msra.mxu0 0.0
        %3278 = vmatpush.msra.mxu0 0.0
        %3279 = vmatpush.msra.mxu0 0.0
        %3280 = vmatpush.msra.mxu0 0.0
        %3281 = vmatpush.msra.mxu0 0.0
        %3282 = vmatpush.msra.mxu0 0.0
        %v3283 = vand.u32 %v1418, 4294901760
        %v3284 = vsub.f32 %v1418, %v3283
        %v3285 = vand.u32 %v3284, 4294901760
        %v3286 = vsub.f32 %v3284, %v3285
        %v3287 = vand.u32 %v3286, 4294901760
        %3288 = vmatpush.msra.mxu0 %v3287
        %v3289 = vand.u32 %v1398, 4294901760
        %v3290 = vsub.f32 %v1398, %v3289
        %v3291 = vand.u32 %v3290, 4294901760
        %v3292 = vsub.f32 %v3290, %v3291
        %v3293 = vand.u32 %v3292, 4294901760
        %3294 = vmatpush.msra.mxu0 %v3293
        %v3295 = vand.u32 %v1378, 4294901760
        %v3296 = vsub.f32 %v1378, %v3295
        %v3297 = vand.u32 %v3296, 4294901760
        %v3298 = vsub.f32 %v3296, %v3297
        %v3299 = vand.u32 %v3298, 4294901760
        %3300 = vmatpush.msra.mxu0 %v3299
        %v3301 = vand.u32 %v1358, 4294901760
        %v3302 = vsub.f32 %v1358, %v3301
        %v3303 = vand.u32 %v3302, 4294901760
        %v3304 = vsub.f32 %v3302, %v3303
        %v3305 = vand.u32 %v3304, 4294901760
        %3306 = vmatpush.msra.mxu0 %v3305
        %v3307 = vand.u32 %v1338, 4294901760
        %v3308 = vsub.f32 %v1338, %v3307
        %v3309 = vand.u32 %v3308, 4294901760
        %v3310 = vsub.f32 %v3308, %v3309
        %v3311 = vand.u32 %v3310, 4294901760
        %3312 = vmatpush.msra.mxu0 %v3311
        %v3313 = vand.u32 %v1318, 4294901760
        %v3314 = vsub.f32 %v1318, %v3313
        %v3315 = vand.u32 %v3314, 4294901760
        %v3316 = vsub.f32 %v3314, %v3315
        %v3317 = vand.u32 %v3316, 4294901760
        %3318 = vmatpush.msra.mxu0 %v3317
        %v3319 = vand.u32 %v1552, 4294901760
        %3320 = vmatmul.f32.gmra.mxu0 %v3319
        %v3321 = vpop.f32.mrf.mxu0
        %v3322 = vadd.f32 %v3271, %v3321
        %3323 = vdwg.mxu0
        %3324 = vmatpush.msra.mxu0 0.0
        %3325 = vmatpush.msra.mxu0 0.0
        %3326 = vmatpush.msra.mxu0 0.0
        %3327 = vmatpush.msra.mxu0 0.0
        %3328 = vmatpush.msra.mxu0 0.0
        %3329 = vmatpush.msra.mxu0 0.0
        %3330 = vmatpush.msra.mxu0 0.0
        %3331 = vmatpush.msra.mxu0 0.0
        %3332 = vmatpush.msra.mxu0 0.0
        %3333 = vmatpush.msra.mxu0 0.0
        %v3334 = vand.u32 %v1418, 4294901760
        %v3335 = vsub.f32 %v1418, %v3334
        %3336 = vmatpush.msra.mxu0 %v3335
        %v3337 = vand.u32 %v1398, 4294901760
        %v3338 = vsub.f32 %v1398, %v3337
        %3339 = vmatpush.msra.mxu0 %v3338
        %v3340 = vand.u32 %v1378, 4294901760
        %v3341 = vsub.f32 %v1378, %v3340
        %3342 = vmatpush.msra.mxu0 %v3341
        %v3343 = vand.u32 %v1358, 4294901760
        %v3344 = vsub.f32 %v1358, %v3343
        %3345 = vmatpush.msra.mxu0 %v3344
        %v3346 = vand.u32 %v1338, 4294901760
        %v3347 = vsub.f32 %v1338, %v3346
        %3348 = vmatpush.msra.mxu0 %v3347
        %v3349 = vand.u32 %v1318, 4294901760
        %v3350 = vsub.f32 %v1318, %v3349
        %3351 = vmatpush.msra.mxu0 %v3350
        %v3352 = vand.u32 %v1552, 4294901760
        %v3353 = vsub.f32 %v1552, %v3352
        %3354 = vmatmul.f32.gmra.mxu0 %v3353
        %v3355 = vpop.f32.mrf.mxu0
        %v3356 = vadd.f32 %v3322, %v3355
        %3357 = vdwg.mxu0
        %3358 = vmatpush.msra.mxu0 0.0
        %3359 = vmatpush.msra.mxu0 0.0
        %3360 = vmatpush.msra.mxu0 0.0
        %3361 = vmatpush.msra.mxu0 0.0
        %3362 = vmatpush.msra.mxu0 0.0
        %3363 = vmatpush.msra.mxu0 0.0
        %3364 = vmatpush.msra.mxu0 0.0
        %3365 = vmatpush.msra.mxu0 0.0
        %3366 = vmatpush.msra.mxu0 0.0
        %3367 = vmatpush.msra.mxu0 0.0
        %v3368 = vand.u32 %v1418, 4294901760
        %3369 = vmatpush.msra.mxu0 %v3368
        %v3370 = vand.u32 %v1398, 4294901760
        %3371 = vmatpush.msra.mxu0 %v3370
        %v3372 = vand.u32 %v1378, 4294901760
        %3373 = vmatpush.msra.mxu0 %v3372
        %v3374 = vand.u32 %v1358, 4294901760
        %3375 = vmatpush.msra.mxu0 %v3374
        %v3376 = vand.u32 %v1338, 4294901760
        %3377 = vmatpush.msra.mxu0 %v3376
        %v3378 = vand.u32 %v1318, 4294901760
        %3379 = vmatpush.msra.mxu0 %v3378
        %v3380 = vand.u32 %v1552, 4294901760
        %v3381 = vsub.f32 %v1552, %v3380
        %v3382 = vand.u32 %v3381, 4294901760
        %3383 = vmatmul.f32.gmra.mxu0 %v3382
        %v3384 = vpop.f32.mrf.mxu0
        %v3385 = vadd.f32 %v3356, %v3384
        %3386 = vdwg.mxu0
        %3387 = vmatpush.msra.mxu0 0.0
        %3388 = vmatpush.msra.mxu0 0.0
        %3389 = vmatpush.msra.mxu0 0.0
        %3390 = vmatpush.msra.mxu0 0.0
        %3391 = vmatpush.msra.mxu0 0.0
        %3392 = vmatpush.msra.mxu0 0.0
        %3393 = vmatpush.msra.mxu0 0.0
        %3394 = vmatpush.msra.mxu0 0.0
        %3395 = vmatpush.msra.mxu0 0.0
        %3396 = vmatpush.msra.mxu0 0.0
        %v3397 = vand.u32 %v1418, 4294901760
        %v3398 = vsub.f32 %v1418, %v3397
        %v3399 = vand.u32 %v3398, 4294901760
        %3400 = vmatpush.msra.mxu0 %v3399
        %v3401 = vand.u32 %v1398, 4294901760
        %v3402 = vsub.f32 %v1398, %v3401
        %v3403 = vand.u32 %v3402, 4294901760
        %3404 = vmatpush.msra.mxu0 %v3403
        %v3405 = vand.u32 %v1378, 4294901760
        %v3406 = vsub.f32 %v1378, %v3405
        %v3407 = vand.u32 %v3406, 4294901760
        %3408 = vmatpush.msra.mxu0 %v3407
        %v3409 = vand.u32 %v1358, 4294901760
        %v3410 = vsub.f32 %v1358, %v3409
        %v3411 = vand.u32 %v3410, 4294901760
        %3412 = vmatpush.msra.mxu0 %v3411
        %v3413 = vand.u32 %v1338, 4294901760
        %v3414 = vsub.f32 %v1338, %v3413
        %v3415 = vand.u32 %v3414, 4294901760
        %3416 = vmatpush.msra.mxu0 %v3415
        %v3417 = vand.u32 %v1318, 4294901760
        %v3418 = vsub.f32 %v1318, %v3417
        %v3419 = vand.u32 %v3418, 4294901760
        %3420 = vmatpush.msra.mxu0 %v3419
        %v3421 = vand.u32 %v1552, 4294901760
        %3422 = vmatmul.f32.gmra.mxu0 %v3421
        %v3423 = vpop.f32.mrf.mxu0
        %v3424 = vadd.f32 %v3385, %v3423
        %3425 = vdwg.mxu0
        %3426 = vmatpush.msra.mxu0 0.0
        %3427 = vmatpush.msra.mxu0 0.0
        %3428 = vmatpush.msra.mxu0 0.0
        %3429 = vmatpush.msra.mxu0 0.0
        %3430 = vmatpush.msra.mxu0 0.0
        %3431 = vmatpush.msra.mxu0 0.0
        %3432 = vmatpush.msra.mxu0 0.0
        %3433 = vmatpush.msra.mxu0 0.0
        %3434 = vmatpush.msra.mxu0 0.0
        %3435 = vmatpush.msra.mxu0 0.0
        %v3436 = vand.u32 %v1418, 4294901760
        %3437 = vmatpush.msra.mxu0 %v3436
        %v3438 = vand.u32 %v1398, 4294901760
        %3439 = vmatpush.msra.mxu0 %v3438
        %v3440 = vand.u32 %v1378, 4294901760
        %3441 = vmatpush.msra.mxu0 %v3440
        %v3442 = vand.u32 %v1358, 4294901760
        %3443 = vmatpush.msra.mxu0 %v3442
        %v3444 = vand.u32 %v1338, 4294901760
        %3445 = vmatpush.msra.mxu0 %v3444
        %v3446 = vand.u32 %v1318, 4294901760
        %3447 = vmatpush.msra.mxu0 %v3446
        %v3448 = vand.u32 %v1552, 4294901760
        %3449 = vmatmul.f32.gmra.mxu0 %v3448
        %v3450 = vpop.f32.mrf.mxu0
        %v3451 = vadd.f32 %v3424, %v3450
        %3452 = vdwg.mxu0
        %3453 = vmatpush.msra.mxu0 0.0
        %3454 = vmatpush.msra.mxu0 0.0
        %3455 = vmatpush.msra.mxu0 0.0
        %3456 = vmatpush.msra.mxu0 0.0
        %3457 = vmatpush.msra.mxu0 0.0
        %3458 = vmatpush.msra.mxu0 0.0
        %3459 = vmatpush.msra.mxu0 0.0
        %3460 = vmatpush.msra.mxu0 0.0
        %3461 = vmatpush.msra.mxu0 0.0
        %3462 = vmatpush.msra.mxu0 0.0
        %v3463 = vand.u32 %v1419, 4294901760
        %3464 = vmatpush.msra.mxu0 %v3463
        %v3465 = vand.u32 %v1399, 4294901760
        %3466 = vmatpush.msra.mxu0 %v3465
        %v3467 = vand.u32 %v1379, 4294901760
        %3468 = vmatpush.msra.mxu0 %v3467
        %v3469 = vand.u32 %v1359, 4294901760
        %3470 = vmatpush.msra.mxu0 %v3469
        %v3471 = vand.u32 %v1339, 4294901760
        %3472 = vmatpush.msra.mxu0 %v3471
        %v3473 = vand.u32 %v1319, 4294901760
        %3474 = vmatpush.msra.mxu0 %v3473
        %v3475 = vand.u32 %v1552, 4294901760
        %v3476 = vsub.f32 %v1552, %v3475
        %v3477 = vand.u32 %v3476, 4294901760
        %v3478 = vsub.f32 %v3476, %v3477
        %v3479 = vand.u32 %v3478, 4294901760
        %3480 = vmatmul.f32.gmra.mxu0 %v3479
        %v3481 = vpop.f32.mrf.mxu0
        %v3482 = vadd.f32 %v1053, %v3481
        %3483 = vdwg.mxu0
        %3484 = vmatpush.msra.mxu0 0.0
        %3485 = vmatpush.msra.mxu0 0.0
        %3486 = vmatpush.msra.mxu0 0.0
        %3487 = vmatpush.msra.mxu0 0.0
        %3488 = vmatpush.msra.mxu0 0.0
        %3489 = vmatpush.msra.mxu0 0.0
        %3490 = vmatpush.msra.mxu0 0.0
        %3491 = vmatpush.msra.mxu0 0.0
        %3492 = vmatpush.msra.mxu0 0.0
        %3493 = vmatpush.msra.mxu0 0.0
        %v3494 = vand.u32 %v1419, 4294901760
        %v3495 = vsub.f32 %v1419, %v3494
        %v3496 = vand.u32 %v3495, 4294901760
        %v3497 = vsub.f32 %v3495, %v3496
        %v3498 = vand.u32 %v3497, 4294901760
        %3499 = vmatpush.msra.mxu0 %v3498
        %v3500 = vand.u32 %v1399, 4294901760
        %v3501 = vsub.f32 %v1399, %v3500
        %v3502 = vand.u32 %v3501, 4294901760
        %v3503 = vsub.f32 %v3501, %v3502
        %v3504 = vand.u32 %v3503, 4294901760
        %3505 = vmatpush.msra.mxu0 %v3504
        %v3506 = vand.u32 %v1379, 4294901760
        %v3507 = vsub.f32 %v1379, %v3506
        %v3508 = vand.u32 %v3507, 4294901760
        %v3509 = vsub.f32 %v3507, %v3508
        %v3510 = vand.u32 %v3509, 4294901760
        %3511 = vmatpush.msra.mxu0 %v3510
        %v3512 = vand.u32 %v1359, 4294901760
        %v3513 = vsub.f32 %v1359, %v3512
        %v3514 = vand.u32 %v3513, 4294901760
        %v3515 = vsub.f32 %v3513, %v3514
        %v3516 = vand.u32 %v3515, 4294901760
        %3517 = vmatpush.msra.mxu0 %v3516
        %v3518 = vand.u32 %v1339, 4294901760
        %v3519 = vsub.f32 %v1339, %v3518
        %v3520 = vand.u32 %v3519, 4294901760
        %v3521 = vsub.f32 %v3519, %v3520
        %v3522 = vand.u32 %v3521, 4294901760
        %3523 = vmatpush.msra.mxu0 %v3522
        %v3524 = vand.u32 %v1319, 4294901760
        %v3525 = vsub.f32 %v1319, %v3524
        %v3526 = vand.u32 %v3525, 4294901760
        %v3527 = vsub.f32 %v3525, %v3526
        %v3528 = vand.u32 %v3527, 4294901760
        %3529 = vmatpush.msra.mxu0 %v3528
        %v3530 = vand.u32 %v1552, 4294901760
        %3531 = vmatmul.f32.gmra.mxu0 %v3530
        %v3532 = vpop.f32.mrf.mxu0
        %v3533 = vadd.f32 %v3482, %v3532
        %3534 = vdwg.mxu0
        %3535 = vmatpush.msra.mxu0 0.0
        %3536 = vmatpush.msra.mxu0 0.0
        %3537 = vmatpush.msra.mxu0 0.0
        %3538 = vmatpush.msra.mxu0 0.0
        %3539 = vmatpush.msra.mxu0 0.0
        %3540 = vmatpush.msra.mxu0 0.0
        %3541 = vmatpush.msra.mxu0 0.0
        %3542 = vmatpush.msra.mxu0 0.0
        %3543 = vmatpush.msra.mxu0 0.0
        %3544 = vmatpush.msra.mxu0 0.0
        %v3545 = vand.u32 %v1419, 4294901760
        %v3546 = vsub.f32 %v1419, %v3545
        %3547 = vmatpush.msra.mxu0 %v3546
        %v3548 = vand.u32 %v1399, 4294901760
        %v3549 = vsub.f32 %v1399, %v3548
        %3550 = vmatpush.msra.mxu0 %v3549
        %v3551 = vand.u32 %v1379, 4294901760
        %v3552 = vsub.f32 %v1379, %v3551
        %3553 = vmatpush.msra.mxu0 %v3552
        %v3554 = vand.u32 %v1359, 4294901760
        %v3555 = vsub.f32 %v1359, %v3554
        %3556 = vmatpush.msra.mxu0 %v3555
        %v3557 = vand.u32 %v1339, 4294901760
        %v3558 = vsub.f32 %v1339, %v3557
        %3559 = vmatpush.msra.mxu0 %v3558
        %v3560 = vand.u32 %v1319, 4294901760
        %v3561 = vsub.f32 %v1319, %v3560
        %3562 = vmatpush.msra.mxu0 %v3561
        %v3563 = vand.u32 %v1552, 4294901760
        %v3564 = vsub.f32 %v1552, %v3563
        %3565 = vmatmul.f32.gmra.mxu0 %v3564
        %v3566 = vpop.f32.mrf.mxu0
        %v3567 = vadd.f32 %v3533, %v3566
        %3568 = vdwg.mxu0
        %3569 = vmatpush.msra.mxu0 0.0
        %3570 = vmatpush.msra.mxu0 0.0
        %3571 = vmatpush.msra.mxu0 0.0
        %3572 = vmatpush.msra.mxu0 0.0
        %3573 = vmatpush.msra.mxu0 0.0
        %3574 = vmatpush.msra.mxu0 0.0
        %3575 = vmatpush.msra.mxu0 0.0
        %3576 = vmatpush.msra.mxu0 0.0
        %3577 = vmatpush.msra.mxu0 0.0
        %3578 = vmatpush.msra.mxu0 0.0
        %v3579 = vand.u32 %v1419, 4294901760
        %3580 = vmatpush.msra.mxu0 %v3579
        %v3581 = vand.u32 %v1399, 4294901760
        %3582 = vmatpush.msra.mxu0 %v3581
        %v3583 = vand.u32 %v1379, 4294901760
        %3584 = vmatpush.msra.mxu0 %v3583
        %v3585 = vand.u32 %v1359, 4294901760
        %3586 = vmatpush.msra.mxu0 %v3585
        %v3587 = vand.u32 %v1339, 4294901760
        %3588 = vmatpush.msra.mxu0 %v3587
        %v3589 = vand.u32 %v1319, 4294901760
        %3590 = vmatpush.msra.mxu0 %v3589
        %v3591 = vand.u32 %v1552, 4294901760
        %v3592 = vsub.f32 %v1552, %v3591
        %v3593 = vand.u32 %v3592, 4294901760
        %3594 = vmatmul.f32.gmra.mxu0 %v3593
        %v3595 = vpop.f32.mrf.mxu0
        %v3596 = vadd.f32 %v3567, %v3595
        %3597 = vdwg.mxu0
        %3598 = vmatpush.msra.mxu0 0.0
        %3599 = vmatpush.msra.mxu0 0.0
        %3600 = vmatpush.msra.mxu0 0.0
        %3601 = vmatpush.msra.mxu0 0.0
        %3602 = vmatpush.msra.mxu0 0.0
        %3603 = vmatpush.msra.mxu0 0.0
        %3604 = vmatpush.msra.mxu0 0.0
        %3605 = vmatpush.msra.mxu0 0.0
        %3606 = vmatpush.msra.mxu0 0.0
        %3607 = vmatpush.msra.mxu0 0.0
        %v3608 = vand.u32 %v1419, 4294901760
        %v3609 = vsub.f32 %v1419, %v3608
        %v3610 = vand.u32 %v3609, 4294901760
        %3611 = vmatpush.msra.mxu0 %v3610
        %v3612 = vand.u32 %v1399, 4294901760
        %v3613 = vsub.f32 %v1399, %v3612
        %v3614 = vand.u32 %v3613, 4294901760
        %3615 = vmatpush.msra.mxu0 %v3614
        %v3616 = vand.u32 %v1379, 4294901760
        %v3617 = vsub.f32 %v1379, %v3616
        %v3618 = vand.u32 %v3617, 4294901760
        %3619 = vmatpush.msra.mxu0 %v3618
        %v3620 = vand.u32 %v1359, 4294901760
        %v3621 = vsub.f32 %v1359, %v3620
        %v3622 = vand.u32 %v3621, 4294901760
        %3623 = vmatpush.msra.mxu0 %v3622
        %v3624 = vand.u32 %v1339, 4294901760
        %v3625 = vsub.f32 %v1339, %v3624
        %v3626 = vand.u32 %v3625, 4294901760
        %3627 = vmatpush.msra.mxu0 %v3626
        %v3628 = vand.u32 %v1319, 4294901760
        %v3629 = vsub.f32 %v1319, %v3628
        %v3630 = vand.u32 %v3629, 4294901760
        %3631 = vmatpush.msra.mxu0 %v3630
        %v3632 = vand.u32 %v1552, 4294901760
        %3633 = vmatmul.f32.gmra.mxu0 %v3632
        %v3634 = vpop.f32.mrf.mxu0
        %v3635 = vadd.f32 %v3596, %v3634
        %3636 = vdwg.mxu0
        %3637 = vmatpush.msra.mxu0 0.0
        %3638 = vmatpush.msra.mxu0 0.0
        %3639 = vmatpush.msra.mxu0 0.0
        %3640 = vmatpush.msra.mxu0 0.0
        %3641 = vmatpush.msra.mxu0 0.0
        %3642 = vmatpush.msra.mxu0 0.0
        %3643 = vmatpush.msra.mxu0 0.0
        %3644 = vmatpush.msra.mxu0 0.0
        %3645 = vmatpush.msra.mxu0 0.0
        %3646 = vmatpush.msra.mxu0 0.0
        %v3647 = vand.u32 %v1419, 4294901760
        %3648 = vmatpush.msra.mxu0 %v3647
        %v3649 = vand.u32 %v1399, 4294901760
        %3650 = vmatpush.msra.mxu0 %v3649
        %v3651 = vand.u32 %v1379, 4294901760
        %3652 = vmatpush.msra.mxu0 %v3651
        %v3653 = vand.u32 %v1359, 4294901760
        %3654 = vmatpush.msra.mxu0 %v3653
        %v3655 = vand.u32 %v1339, 4294901760
        %3656 = vmatpush.msra.mxu0 %v3655
        %v3657 = vand.u32 %v1319, 4294901760
        %3658 = vmatpush.msra.mxu0 %v3657
        %v3659 = vand.u32 %v1552, 4294901760
        %3660 = vmatmul.f32.gmra.mxu0 %v3659
        %v3661 = vpop.f32.mrf.mxu0
        %v3662 = vadd.f32 %v3635, %v3661
        %3663 = vdwg.mxu0
        %3664 = vmatpush.msra.mxu0 0.0
        %3665 = vmatpush.msra.mxu0 0.0
        %3666 = vmatpush.msra.mxu0 0.0
        %3667 = vmatpush.msra.mxu0 0.0
        %3668 = vmatpush.msra.mxu0 0.0
        %3669 = vmatpush.msra.mxu0 0.0
        %3670 = vmatpush.msra.mxu0 0.0
        %3671 = vmatpush.msra.mxu0 0.0
        %3672 = vmatpush.msra.mxu0 0.0
        %3673 = vmatpush.msra.mxu0 0.0
        %v3674 = vand.u32 %v1420, 4294901760
        %3675 = vmatpush.msra.mxu0 %v3674
        %v3676 = vand.u32 %v1400, 4294901760
        %3677 = vmatpush.msra.mxu0 %v3676
        %v3678 = vand.u32 %v1380, 4294901760
        %3679 = vmatpush.msra.mxu0 %v3678
        %v3680 = vand.u32 %v1360, 4294901760
        %3681 = vmatpush.msra.mxu0 %v3680
        %v3682 = vand.u32 %v1340, 4294901760
        %3683 = vmatpush.msra.mxu0 %v3682
        %v3684 = vand.u32 %v1320, 4294901760
        %3685 = vmatpush.msra.mxu0 %v3684
        %v3686 = vand.u32 %v1552, 4294901760
        %v3687 = vsub.f32 %v1552, %v3686
        %v3688 = vand.u32 %v3687, 4294901760
        %v3689 = vsub.f32 %v3687, %v3688
        %v3690 = vand.u32 %v3689, 4294901760
        %3691 = vmatmul.f32.gmra.mxu0 %v3690
        %v3692 = vpop.f32.mrf.mxu0
        %v3693 = vadd.f32 %v1053, %v3692
        %3694 = vdwg.mxu0
        %3695 = vmatpush.msra.mxu0 0.0
        %3696 = vmatpush.msra.mxu0 0.0
        %3697 = vmatpush.msra.mxu0 0.0
        %3698 = vmatpush.msra.mxu0 0.0
        %3699 = vmatpush.msra.mxu0 0.0
        %3700 = vmatpush.msra.mxu0 0.0
        %3701 = vmatpush.msra.mxu0 0.0
        %3702 = vmatpush.msra.mxu0 0.0
        %3703 = vmatpush.msra.mxu0 0.0
        %3704 = vmatpush.msra.mxu0 0.0
        %v3705 = vand.u32 %v1420, 4294901760
        %v3706 = vsub.f32 %v1420, %v3705
        %v3707 = vand.u32 %v3706, 4294901760
        %v3708 = vsub.f32 %v3706, %v3707
        %v3709 = vand.u32 %v3708, 4294901760
        %3710 = vmatpush.msra.mxu0 %v3709
        %v3711 = vand.u32 %v1400, 4294901760
        %v3712 = vsub.f32 %v1400, %v3711
        %v3713 = vand.u32 %v3712, 4294901760
        %v3714 = vsub.f32 %v3712, %v3713
        %v3715 = vand.u32 %v3714, 4294901760
        %3716 = vmatpush.msra.mxu0 %v3715
        %v3717 = vand.u32 %v1380, 4294901760
        %v3718 = vsub.f32 %v1380, %v3717
        %v3719 = vand.u32 %v3718, 4294901760
        %v3720 = vsub.f32 %v3718, %v3719
        %v3721 = vand.u32 %v3720, 4294901760
        %3722 = vmatpush.msra.mxu0 %v3721
        %v3723 = vand.u32 %v1360, 4294901760
        %v3724 = vsub.f32 %v1360, %v3723
        %v3725 = vand.u32 %v3724, 4294901760
        %v3726 = vsub.f32 %v3724, %v3725
        %v3727 = vand.u32 %v3726, 4294901760
        %3728 = vmatpush.msra.mxu0 %v3727
        %v3729 = vand.u32 %v1340, 4294901760
        %v3730 = vsub.f32 %v1340, %v3729
        %v3731 = vand.u32 %v3730, 4294901760
        %v3732 = vsub.f32 %v3730, %v3731
        %v3733 = vand.u32 %v3732, 4294901760
        %3734 = vmatpush.msra.mxu0 %v3733
        %v3735 = vand.u32 %v1320, 4294901760
        %v3736 = vsub.f32 %v1320, %v3735
        %v3737 = vand.u32 %v3736, 4294901760
        %v3738 = vsub.f32 %v3736, %v3737
        %v3739 = vand.u32 %v3738, 4294901760
        %3740 = vmatpush.msra.mxu0 %v3739
        %v3741 = vand.u32 %v1552, 4294901760
        %3742 = vmatmul.f32.gmra.mxu0 %v3741
        %v3743 = vpop.f32.mrf.mxu0
        %v3744 = vadd.f32 %v3693, %v3743
        %3745 = vdwg.mxu0
        %3746 = vmatpush.msra.mxu0 0.0
        %3747 = vmatpush.msra.mxu0 0.0
        %3748 = vmatpush.msra.mxu0 0.0
        %3749 = vmatpush.msra.mxu0 0.0
        %3750 = vmatpush.msra.mxu0 0.0
        %3751 = vmatpush.msra.mxu0 0.0
        %3752 = vmatpush.msra.mxu0 0.0
        %3753 = vmatpush.msra.mxu0 0.0
        %3754 = vmatpush.msra.mxu0 0.0
        %3755 = vmatpush.msra.mxu0 0.0
        %v3756 = vand.u32 %v1420, 4294901760
        %v3757 = vsub.f32 %v1420, %v3756
        %3758 = vmatpush.msra.mxu0 %v3757
        %v3759 = vand.u32 %v1400, 4294901760
        %v3760 = vsub.f32 %v1400, %v3759
        %3761 = vmatpush.msra.mxu0 %v3760
        %v3762 = vand.u32 %v1380, 4294901760
        %v3763 = vsub.f32 %v1380, %v3762
        %3764 = vmatpush.msra.mxu0 %v3763
        %v3765 = vand.u32 %v1360, 4294901760
        %v3766 = vsub.f32 %v1360, %v3765
        %3767 = vmatpush.msra.mxu0 %v3766
        %v3768 = vand.u32 %v1340, 4294901760
        %v3769 = vsub.f32 %v1340, %v3768
        %3770 = vmatpush.msra.mxu0 %v3769
        %v3771 = vand.u32 %v1320, 4294901760
        %v3772 = vsub.f32 %v1320, %v3771
        %3773 = vmatpush.msra.mxu0 %v3772
        %v3774 = vand.u32 %v1552, 4294901760
        %v3775 = vsub.f32 %v1552, %v3774
        %3776 = vmatmul.f32.gmra.mxu0 %v3775
        %v3777 = vpop.f32.mrf.mxu0
        %v3778 = vadd.f32 %v3744, %v3777
        %3779 = vdwg.mxu0
        %3780 = vmatpush.msra.mxu0 0.0
        %3781 = vmatpush.msra.mxu0 0.0
        %3782 = vmatpush.msra.mxu0 0.0
        %3783 = vmatpush.msra.mxu0 0.0
        %3784 = vmatpush.msra.mxu0 0.0
        %3785 = vmatpush.msra.mxu0 0.0
        %3786 = vmatpush.msra.mxu0 0.0
        %3787 = vmatpush.msra.mxu0 0.0
        %3788 = vmatpush.msra.mxu0 0.0
        %3789 = vmatpush.msra.mxu0 0.0
        %v3790 = vand.u32 %v1420, 4294901760
        %3791 = vmatpush.msra.mxu0 %v3790
        %v3792 = vand.u32 %v1400, 4294901760
        %3793 = vmatpush.msra.mxu0 %v3792
        %v3794 = vand.u32 %v1380, 4294901760
        %3795 = vmatpush.msra.mxu0 %v3794
        %v3796 = vand.u32 %v1360, 4294901760
        %3797 = vmatpush.msra.mxu0 %v3796
        %v3798 = vand.u32 %v1340, 4294901760
        %3799 = vmatpush.msra.mxu0 %v3798
        %v3800 = vand.u32 %v1320, 4294901760
        %3801 = vmatpush.msra.mxu0 %v3800
        %v3802 = vand.u32 %v1552, 4294901760
        %v3803 = vsub.f32 %v1552, %v3802
        %v3804 = vand.u32 %v3803, 4294901760
        %3805 = vmatmul.f32.gmra.mxu0 %v3804
        %v3806 = vpop.f32.mrf.mxu0
        %v3807 = vadd.f32 %v3778, %v3806
        %3808 = vdwg.mxu0
        %3809 = vmatpush.msra.mxu0 0.0
        %3810 = vmatpush.msra.mxu0 0.0
        %3811 = vmatpush.msra.mxu0 0.0
        %3812 = vmatpush.msra.mxu0 0.0
        %3813 = vmatpush.msra.mxu0 0.0
        %3814 = vmatpush.msra.mxu0 0.0
        %3815 = vmatpush.msra.mxu0 0.0
        %3816 = vmatpush.msra.mxu0 0.0
        %3817 = vmatpush.msra.mxu0 0.0
        %3818 = vmatpush.msra.mxu0 0.0
        %v3819 = vand.u32 %v1420, 4294901760
        %v3820 = vsub.f32 %v1420, %v3819
        %v3821 = vand.u32 %v3820, 4294901760
        %3822 = vmatpush.msra.mxu0 %v3821
        %v3823 = vand.u32 %v1400, 4294901760
        %v3824 = vsub.f32 %v1400, %v3823
        %v3825 = vand.u32 %v3824, 4294901760
        %3826 = vmatpush.msra.mxu0 %v3825
        %v3827 = vand.u32 %v1380, 4294901760
        %v3828 = vsub.f32 %v1380, %v3827
        %v3829 = vand.u32 %v3828, 4294901760
        %3830 = vmatpush.msra.mxu0 %v3829
        %v3831 = vand.u32 %v1360, 4294901760
        %v3832 = vsub.f32 %v1360, %v3831
        %v3833 = vand.u32 %v3832, 4294901760
        %3834 = vmatpush.msra.mxu0 %v3833
        %v3835 = vand.u32 %v1340, 4294901760
        %v3836 = vsub.f32 %v1340, %v3835
        %v3837 = vand.u32 %v3836, 4294901760
        %3838 = vmatpush.msra.mxu0 %v3837
        %v3839 = vand.u32 %v1320, 4294901760
        %v3840 = vsub.f32 %v1320, %v3839
        %v3841 = vand.u32 %v3840, 4294901760
        %3842 = vmatpush.msra.mxu0 %v3841
        %v3843 = vand.u32 %v1552, 4294901760
        %3844 = vmatmul.f32.gmra.mxu0 %v3843
        %v3845 = vpop.f32.mrf.mxu0
        %v3846 = vadd.f32 %v3807, %v3845
        %3847 = vdwg.mxu0
        %3848 = vmatpush.msra.mxu0 0.0
        %3849 = vmatpush.msra.mxu0 0.0
        %3850 = vmatpush.msra.mxu0 0.0
        %3851 = vmatpush.msra.mxu0 0.0
        %3852 = vmatpush.msra.mxu0 0.0
        %3853 = vmatpush.msra.mxu0 0.0
        %3854 = vmatpush.msra.mxu0 0.0
        %3855 = vmatpush.msra.mxu0 0.0
        %3856 = vmatpush.msra.mxu0 0.0
        %3857 = vmatpush.msra.mxu0 0.0
        %v3858 = vand.u32 %v1420, 4294901760
        %3859 = vmatpush.msra.mxu0 %v3858
        %v3860 = vand.u32 %v1400, 4294901760
        %3861 = vmatpush.msra.mxu0 %v3860
        %v3862 = vand.u32 %v1380, 4294901760
        %3863 = vmatpush.msra.mxu0 %v3862
        %v3864 = vand.u32 %v1360, 4294901760
        %3865 = vmatpush.msra.mxu0 %v3864
        %v3866 = vand.u32 %v1340, 4294901760
        %3867 = vmatpush.msra.mxu0 %v3866
        %v3868 = vand.u32 %v1320, 4294901760
        %3869 = vmatpush.msra.mxu0 %v3868
        %v3870 = vand.u32 %v1552, 4294901760
        %3871 = vmatmul.f32.gmra.mxu0 %v3870
        %v3872 = vpop.f32.mrf.mxu0
        %v3873 = vadd.f32 %v3846, %v3872
        %3874 = vdwg.mxu0
        %3875 = vmatpush.msra.mxu0 0.0
        %3876 = vmatpush.msra.mxu0 0.0
        %3877 = vmatpush.msra.mxu0 0.0
        %3878 = vmatpush.msra.mxu0 0.0
        %3879 = vmatpush.msra.mxu0 0.0
        %3880 = vmatpush.msra.mxu0 0.0
        %3881 = vmatpush.msra.mxu0 0.0
        %3882 = vmatpush.msra.mxu0 0.0
        %3883 = vmatpush.msra.mxu0 0.0
        %3884 = vmatpush.msra.mxu0 0.0
        %v3885 = vand.u32 %v1421, 4294901760
        %3886 = vmatpush.msra.mxu0 %v3885
        %v3887 = vand.u32 %v1401, 4294901760
        %3888 = vmatpush.msra.mxu0 %v3887
        %v3889 = vand.u32 %v1381, 4294901760
        %3890 = vmatpush.msra.mxu0 %v3889
        %v3891 = vand.u32 %v1361, 4294901760
        %3892 = vmatpush.msra.mxu0 %v3891
        %v3893 = vand.u32 %v1341, 4294901760
        %3894 = vmatpush.msra.mxu0 %v3893
        %v3895 = vand.u32 %v1321, 4294901760
        %3896 = vmatpush.msra.mxu0 %v3895
        %v3897 = vand.u32 %v1552, 4294901760
        %v3898 = vsub.f32 %v1552, %v3897
        %v3899 = vand.u32 %v3898, 4294901760
        %v3900 = vsub.f32 %v3898, %v3899
        %v3901 = vand.u32 %v3900, 4294901760
        %3902 = vmatmul.f32.gmra.mxu0 %v3901
        %v3903 = vpop.f32.mrf.mxu0
        %v3904 = vadd.f32 %v1053, %v3903
        %3905 = vdwg.mxu0
        %3906 = vmatpush.msra.mxu0 0.0
        %3907 = vmatpush.msra.mxu0 0.0
        %3908 = vmatpush.msra.mxu0 0.0
        %3909 = vmatpush.msra.mxu0 0.0
        %3910 = vmatpush.msra.mxu0 0.0
        %3911 = vmatpush.msra.mxu0 0.0
        %3912 = vmatpush.msra.mxu0 0.0
        %3913 = vmatpush.msra.mxu0 0.0
        %3914 = vmatpush.msra.mxu0 0.0
        %3915 = vmatpush.msra.mxu0 0.0
        %v3916 = vand.u32 %v1421, 4294901760
        %v3917 = vsub.f32 %v1421, %v3916
        %v3918 = vand.u32 %v3917, 4294901760
        %v3919 = vsub.f32 %v3917, %v3918
        %v3920 = vand.u32 %v3919, 4294901760
        %3921 = vmatpush.msra.mxu0 %v3920
        %v3922 = vand.u32 %v1401, 4294901760
        %v3923 = vsub.f32 %v1401, %v3922
        %v3924 = vand.u32 %v3923, 4294901760
        %v3925 = vsub.f32 %v3923, %v3924
        %v3926 = vand.u32 %v3925, 4294901760
        %3927 = vmatpush.msra.mxu0 %v3926
        %v3928 = vand.u32 %v1381, 4294901760
        %v3929 = vsub.f32 %v1381, %v3928
        %v3930 = vand.u32 %v3929, 4294901760
        %v3931 = vsub.f32 %v3929, %v3930
        %v3932 = vand.u32 %v3931, 4294901760
        %3933 = vmatpush.msra.mxu0 %v3932
        %v3934 = vand.u32 %v1361, 4294901760
        %v3935 = vsub.f32 %v1361, %v3934
        %v3936 = vand.u32 %v3935, 4294901760
        %v3937 = vsub.f32 %v3935, %v3936
        %v3938 = vand.u32 %v3937, 4294901760
        %3939 = vmatpush.msra.mxu0 %v3938
        %v3940 = vand.u32 %v1341, 4294901760
        %v3941 = vsub.f32 %v1341, %v3940
        %v3942 = vand.u32 %v3941, 4294901760
        %v3943 = vsub.f32 %v3941, %v3942
        %v3944 = vand.u32 %v3943, 4294901760
        %3945 = vmatpush.msra.mxu0 %v3944
        %v3946 = vand.u32 %v1321, 4294901760
        %v3947 = vsub.f32 %v1321, %v3946
        %v3948 = vand.u32 %v3947, 4294901760
        %v3949 = vsub.f32 %v3947, %v3948
        %v3950 = vand.u32 %v3949, 4294901760
        %3951 = vmatpush.msra.mxu0 %v3950
        %v3952 = vand.u32 %v1552, 4294901760
        %3953 = vmatmul.f32.gmra.mxu0 %v3952
        %v3954 = vpop.f32.mrf.mxu0
        %v3955 = vadd.f32 %v3904, %v3954
        %3956 = vdwg.mxu0
        %3957 = vmatpush.msra.mxu0 0.0
        %3958 = vmatpush.msra.mxu0 0.0
        %3959 = vmatpush.msra.mxu0 0.0
        %3960 = vmatpush.msra.mxu0 0.0
        %3961 = vmatpush.msra.mxu0 0.0
        %3962 = vmatpush.msra.mxu0 0.0
        %3963 = vmatpush.msra.mxu0 0.0
        %3964 = vmatpush.msra.mxu0 0.0
        %3965 = vmatpush.msra.mxu0 0.0
        %3966 = vmatpush.msra.mxu0 0.0
        %v3967 = vand.u32 %v1421, 4294901760
        %v3968 = vsub.f32 %v1421, %v3967
        %3969 = vmatpush.msra.mxu0 %v3968
        %v3970 = vand.u32 %v1401, 4294901760
        %v3971 = vsub.f32 %v1401, %v3970
        %3972 = vmatpush.msra.mxu0 %v3971
        %v3973 = vand.u32 %v1381, 4294901760
        %v3974 = vsub.f32 %v1381, %v3973
        %3975 = vmatpush.msra.mxu0 %v3974
        %v3976 = vand.u32 %v1361, 4294901760
        %v3977 = vsub.f32 %v1361, %v3976
        %3978 = vmatpush.msra.mxu0 %v3977
        %v3979 = vand.u32 %v1341, 4294901760
        %v3980 = vsub.f32 %v1341, %v3979
        %3981 = vmatpush.msra.mxu0 %v3980
        %v3982 = vand.u32 %v1321, 4294901760
        %v3983 = vsub.f32 %v1321, %v3982
        %3984 = vmatpush.msra.mxu0 %v3983
        %v3985 = vand.u32 %v1552, 4294901760
        %v3986 = vsub.f32 %v1552, %v3985
        %3987 = vmatmul.f32.gmra.mxu0 %v3986
        %v3988 = vpop.f32.mrf.mxu0
        %v3989 = vadd.f32 %v3955, %v3988
        %3990 = vdwg.mxu0
        %3991 = vmatpush.msra.mxu0 0.0
        %3992 = vmatpush.msra.mxu0 0.0
        %3993 = vmatpush.msra.mxu0 0.0
        %3994 = vmatpush.msra.mxu0 0.0
        %3995 = vmatpush.msra.mxu0 0.0
        %3996 = vmatpush.msra.mxu0 0.0
        %3997 = vmatpush.msra.mxu0 0.0
        %3998 = vmatpush.msra.mxu0 0.0
        %3999 = vmatpush.msra.mxu0 0.0
        %4000 = vmatpush.msra.mxu0 0.0
        %v4001 = vand.u32 %v1421, 4294901760
        %4002 = vmatpush.msra.mxu0 %v4001
        %v4003 = vand.u32 %v1401, 4294901760
        %4004 = vmatpush.msra.mxu0 %v4003
        %v4005 = vand.u32 %v1381, 4294901760
        %4006 = vmatpush.msra.mxu0 %v4005
        %v4007 = vand.u32 %v1361, 4294901760
        %4008 = vmatpush.msra.mxu0 %v4007
        %v4009 = vand.u32 %v1341, 4294901760
        %4010 = vmatpush.msra.mxu0 %v4009
        %v4011 = vand.u32 %v1321, 4294901760
        %4012 = vmatpush.msra.mxu0 %v4011
        %v4013 = vand.u32 %v1552, 4294901760
        %v4014 = vsub.f32 %v1552, %v4013
        %v4015 = vand.u32 %v4014, 4294901760
        %4016 = vmatmul.f32.gmra.mxu0 %v4015
        %v4017 = vpop.f32.mrf.mxu0
        %v4018 = vadd.f32 %v3989, %v4017
        %4019 = vdwg.mxu0
        %4020 = vmatpush.msra.mxu0 0.0
        %4021 = vmatpush.msra.mxu0 0.0
        %4022 = vmatpush.msra.mxu0 0.0
        %4023 = vmatpush.msra.mxu0 0.0
        %4024 = vmatpush.msra.mxu0 0.0
        %4025 = vmatpush.msra.mxu0 0.0
        %4026 = vmatpush.msra.mxu0 0.0
        %4027 = vmatpush.msra.mxu0 0.0
        %4028 = vmatpush.msra.mxu0 0.0
        %4029 = vmatpush.msra.mxu0 0.0
        %v4030 = vand.u32 %v1421, 4294901760
        %v4031 = vsub.f32 %v1421, %v4030
        %v4032 = vand.u32 %v4031, 4294901760
        %4033 = vmatpush.msra.mxu0 %v4032
        %v4034 = vand.u32 %v1401, 4294901760
        %v4035 = vsub.f32 %v1401, %v4034
        %v4036 = vand.u32 %v4035, 4294901760
        %4037 = vmatpush.msra.mxu0 %v4036
        %v4038 = vand.u32 %v1381, 4294901760
        %v4039 = vsub.f32 %v1381, %v4038
        %v4040 = vand.u32 %v4039, 4294901760
        %4041 = vmatpush.msra.mxu0 %v4040
        %v4042 = vand.u32 %v1361, 4294901760
        %v4043 = vsub.f32 %v1361, %v4042
        %v4044 = vand.u32 %v4043, 4294901760
        %4045 = vmatpush.msra.mxu0 %v4044
        %v4046 = vand.u32 %v1341, 4294901760
        %v4047 = vsub.f32 %v1341, %v4046
        %v4048 = vand.u32 %v4047, 4294901760
        %4049 = vmatpush.msra.mxu0 %v4048
        %v4050 = vand.u32 %v1321, 4294901760
        %v4051 = vsub.f32 %v1321, %v4050
        %v4052 = vand.u32 %v4051, 4294901760
        %4053 = vmatpush.msra.mxu0 %v4052
        %v4054 = vand.u32 %v1552, 4294901760
        %4055 = vmatmul.f32.gmra.mxu0 %v4054
        %v4056 = vpop.f32.mrf.mxu0
        %v4057 = vadd.f32 %v4018, %v4056
        %4058 = vdwg.mxu0
        %4059 = vmatpush.msra.mxu0 0.0
        %4060 = vmatpush.msra.mxu0 0.0
        %4061 = vmatpush.msra.mxu0 0.0
        %4062 = vmatpush.msra.mxu0 0.0
        %4063 = vmatpush.msra.mxu0 0.0
        %4064 = vmatpush.msra.mxu0 0.0
        %4065 = vmatpush.msra.mxu0 0.0
        %4066 = vmatpush.msra.mxu0 0.0
        %4067 = vmatpush.msra.mxu0 0.0
        %4068 = vmatpush.msra.mxu0 0.0
        %v4069 = vand.u32 %v1421, 4294901760
        %4070 = vmatpush.msra.mxu0 %v4069
        %v4071 = vand.u32 %v1401, 4294901760
        %4072 = vmatpush.msra.mxu0 %v4071
        %v4073 = vand.u32 %v1381, 4294901760
        %4074 = vmatpush.msra.mxu0 %v4073
        %v4075 = vand.u32 %v1361, 4294901760
        %4076 = vmatpush.msra.mxu0 %v4075
        %v4077 = vand.u32 %v1341, 4294901760
        %4078 = vmatpush.msra.mxu0 %v4077
        %v4079 = vand.u32 %v1321, 4294901760
        %4080 = vmatpush.msra.mxu0 %v4079
        %v4081 = vand.u32 %v1552, 4294901760
        %4082 = vmatmul.f32.gmra.mxu0 %v4081
        %v4083 = vpop.f32.mrf.mxu0
        %v4084 = vadd.f32 %v4057, %v4083
        %4085 = vdwg.mxu0
        %4086 = vmatpush.msra.mxu0 0.0
        %4087 = vmatpush.msra.mxu0 0.0
        %4088 = vmatpush.msra.mxu0 0.0
        %4089 = vmatpush.msra.mxu0 0.0
        %4090 = vmatpush.msra.mxu0 0.0
        %4091 = vmatpush.msra.mxu0 0.0
        %4092 = vmatpush.msra.mxu0 0.0
        %4093 = vmatpush.msra.mxu0 0.0
        %4094 = vmatpush.msra.mxu0 0.0
        %4095 = vmatpush.msra.mxu0 0.0
        %v4096 = vand.u32 %v1422, 4294901760
        %4097 = vmatpush.msra.mxu0 %v4096
        %v4098 = vand.u32 %v1402, 4294901760
        %4099 = vmatpush.msra.mxu0 %v4098
        %v4100 = vand.u32 %v1382, 4294901760
        %4101 = vmatpush.msra.mxu0 %v4100
        %v4102 = vand.u32 %v1362, 4294901760
        %4103 = vmatpush.msra.mxu0 %v4102
        %v4104 = vand.u32 %v1342, 4294901760
        %4105 = vmatpush.msra.mxu0 %v4104
        %v4106 = vand.u32 %v1322, 4294901760
        %4107 = vmatpush.msra.mxu0 %v4106
        %v4108 = vand.u32 %v1552, 4294901760
        %v4109 = vsub.f32 %v1552, %v4108
        %v4110 = vand.u32 %v4109, 4294901760
        %v4111 = vsub.f32 %v4109, %v4110
        %v4112 = vand.u32 %v4111, 4294901760
        %4113 = vmatmul.f32.gmra.mxu0 %v4112
        %v4114 = vpop.f32.mrf.mxu0
        %v4115 = vadd.f32 %v1053, %v4114
        %4116 = vdwg.mxu0
        %4117 = vmatpush.msra.mxu0 0.0
        %4118 = vmatpush.msra.mxu0 0.0
        %4119 = vmatpush.msra.mxu0 0.0
        %4120 = vmatpush.msra.mxu0 0.0
        %4121 = vmatpush.msra.mxu0 0.0
        %4122 = vmatpush.msra.mxu0 0.0
        %4123 = vmatpush.msra.mxu0 0.0
        %4124 = vmatpush.msra.mxu0 0.0
        %4125 = vmatpush.msra.mxu0 0.0
        %4126 = vmatpush.msra.mxu0 0.0
        %v4127 = vand.u32 %v1422, 4294901760
        %v4128 = vsub.f32 %v1422, %v4127
        %v4129 = vand.u32 %v4128, 4294901760
        %v4130 = vsub.f32 %v4128, %v4129
        %v4131 = vand.u32 %v4130, 4294901760
        %4132 = vmatpush.msra.mxu0 %v4131
        %v4133 = vand.u32 %v1402, 4294901760
        %v4134 = vsub.f32 %v1402, %v4133
        %v4135 = vand.u32 %v4134, 4294901760
        %v4136 = vsub.f32 %v4134, %v4135
        %v4137 = vand.u32 %v4136, 4294901760
        %4138 = vmatpush.msra.mxu0 %v4137
        %v4139 = vand.u32 %v1382, 4294901760
        %v4140 = vsub.f32 %v1382, %v4139
        %v4141 = vand.u32 %v4140, 4294901760
        %v4142 = vsub.f32 %v4140, %v4141
        %v4143 = vand.u32 %v4142, 4294901760
        %4144 = vmatpush.msra.mxu0 %v4143
        %v4145 = vand.u32 %v1362, 4294901760
        %v4146 = vsub.f32 %v1362, %v4145
        %v4147 = vand.u32 %v4146, 4294901760
        %v4148 = vsub.f32 %v4146, %v4147
        %v4149 = vand.u32 %v4148, 4294901760
        %4150 = vmatpush.msra.mxu0 %v4149
        %v4151 = vand.u32 %v1342, 4294901760
        %v4152 = vsub.f32 %v1342, %v4151
        %v4153 = vand.u32 %v4152, 4294901760
        %v4154 = vsub.f32 %v4152, %v4153
        %v4155 = vand.u32 %v4154, 4294901760
        %4156 = vmatpush.msra.mxu0 %v4155
        %v4157 = vand.u32 %v1322, 4294901760
        %v4158 = vsub.f32 %v1322, %v4157
        %v4159 = vand.u32 %v4158, 4294901760
        %v4160 = vsub.f32 %v4158, %v4159
        %v4161 = vand.u32 %v4160, 4294901760
        %4162 = vmatpush.msra.mxu0 %v4161
        %v4163 = vand.u32 %v1552, 4294901760
        %4164 = vmatmul.f32.gmra.mxu0 %v4163
        %v4165 = vpop.f32.mrf.mxu0
        %v4166 = vadd.f32 %v4115, %v4165
        %4167 = vdwg.mxu0
        %4168 = vmatpush.msra.mxu0 0.0
        %4169 = vmatpush.msra.mxu0 0.0
        %4170 = vmatpush.msra.mxu0 0.0
        %4171 = vmatpush.msra.mxu0 0.0
        %4172 = vmatpush.msra.mxu0 0.0
        %4173 = vmatpush.msra.mxu0 0.0
        %4174 = vmatpush.msra.mxu0 0.0
        %4175 = vmatpush.msra.mxu0 0.0
        %4176 = vmatpush.msra.mxu0 0.0
        %4177 = vmatpush.msra.mxu0 0.0
        %v4178 = vand.u32 %v1422, 4294901760
        %v4179 = vsub.f32 %v1422, %v4178
        %4180 = vmatpush.msra.mxu0 %v4179
        %v4181 = vand.u32 %v1402, 4294901760
        %v4182 = vsub.f32 %v1402, %v4181
        %4183 = vmatpush.msra.mxu0 %v4182
        %v4184 = vand.u32 %v1382, 4294901760
        %v4185 = vsub.f32 %v1382, %v4184
        %4186 = vmatpush.msra.mxu0 %v4185
        %v4187 = vand.u32 %v1362, 4294901760
        %v4188 = vsub.f32 %v1362, %v4187
        %4189 = vmatpush.msra.mxu0 %v4188
        %v4190 = vand.u32 %v1342, 4294901760
        %v4191 = vsub.f32 %v1342, %v4190
        %4192 = vmatpush.msra.mxu0 %v4191
        %v4193 = vand.u32 %v1322, 4294901760
        %v4194 = vsub.f32 %v1322, %v4193
        %4195 = vmatpush.msra.mxu0 %v4194
        %v4196 = vand.u32 %v1552, 4294901760
        %v4197 = vsub.f32 %v1552, %v4196
        %4198 = vmatmul.f32.gmra.mxu0 %v4197
        %v4199 = vpop.f32.mrf.mxu0
        %v4200 = vadd.f32 %v4166, %v4199
        %4201 = vdwg.mxu0
        %4202 = vmatpush.msra.mxu0 0.0
        %4203 = vmatpush.msra.mxu0 0.0
        %4204 = vmatpush.msra.mxu0 0.0
        %4205 = vmatpush.msra.mxu0 0.0
        %4206 = vmatpush.msra.mxu0 0.0
        %4207 = vmatpush.msra.mxu0 0.0
        %4208 = vmatpush.msra.mxu0 0.0
        %4209 = vmatpush.msra.mxu0 0.0
        %4210 = vmatpush.msra.mxu0 0.0
        %4211 = vmatpush.msra.mxu0 0.0
        %v4212 = vand.u32 %v1422, 4294901760
        %4213 = vmatpush.msra.mxu0 %v4212
        %v4214 = vand.u32 %v1402, 4294901760
        %4215 = vmatpush.msra.mxu0 %v4214
        %v4216 = vand.u32 %v1382, 4294901760
        %4217 = vmatpush.msra.mxu0 %v4216
        %v4218 = vand.u32 %v1362, 4294901760
        %4219 = vmatpush.msra.mxu0 %v4218
        %v4220 = vand.u32 %v1342, 4294901760
        %4221 = vmatpush.msra.mxu0 %v4220
        %v4222 = vand.u32 %v1322, 4294901760
        %4223 = vmatpush.msra.mxu0 %v4222
        %v4224 = vand.u32 %v1552, 4294901760
        %v4225 = vsub.f32 %v1552, %v4224
        %v4226 = vand.u32 %v4225, 4294901760
        %4227 = vmatmul.f32.gmra.mxu0 %v4226
        %v4228 = vpop.f32.mrf.mxu0
        %v4229 = vadd.f32 %v4200, %v4228
        %4230 = vdwg.mxu0
        %4231 = vmatpush.msra.mxu0 0.0
        %4232 = vmatpush.msra.mxu0 0.0
        %4233 = vmatpush.msra.mxu0 0.0
        %4234 = vmatpush.msra.mxu0 0.0
        %4235 = vmatpush.msra.mxu0 0.0
        %4236 = vmatpush.msra.mxu0 0.0
        %4237 = vmatpush.msra.mxu0 0.0
        %4238 = vmatpush.msra.mxu0 0.0
        %4239 = vmatpush.msra.mxu0 0.0
        %4240 = vmatpush.msra.mxu0 0.0
        %v4241 = vand.u32 %v1422, 4294901760
        %v4242 = vsub.f32 %v1422, %v4241
        %v4243 = vand.u32 %v4242, 4294901760
        %4244 = vmatpush.msra.mxu0 %v4243
        %v4245 = vand.u32 %v1402, 4294901760
        %v4246 = vsub.f32 %v1402, %v4245
        %v4247 = vand.u32 %v4246, 4294901760
        %4248 = vmatpush.msra.mxu0 %v4247
        %v4249 = vand.u32 %v1382, 4294901760
        %v4250 = vsub.f32 %v1382, %v4249
        %v4251 = vand.u32 %v4250, 4294901760
        %4252 = vmatpush.msra.mxu0 %v4251
        %v4253 = vand.u32 %v1362, 4294901760
        %v4254 = vsub.f32 %v1362, %v4253
        %v4255 = vand.u32 %v4254, 4294901760
        %4256 = vmatpush.msra.mxu0 %v4255
        %v4257 = vand.u32 %v1342, 4294901760
        %v4258 = vsub.f32 %v1342, %v4257
        %v4259 = vand.u32 %v4258, 4294901760
        %4260 = vmatpush.msra.mxu0 %v4259
        %v4261 = vand.u32 %v1322, 4294901760
        %v4262 = vsub.f32 %v1322, %v4261
        %v4263 = vand.u32 %v4262, 4294901760
        %4264 = vmatpush.msra.mxu0 %v4263
        %v4265 = vand.u32 %v1552, 4294901760
        %4266 = vmatmul.f32.gmra.mxu0 %v4265
        %v4267 = vpop.f32.mrf.mxu0
        %v4268 = vadd.f32 %v4229, %v4267
        %4269 = vdwg.mxu0
        %4270 = vmatpush.msra.mxu0 0.0
        %4271 = vmatpush.msra.mxu0 0.0
        %4272 = vmatpush.msra.mxu0 0.0
        %4273 = vmatpush.msra.mxu0 0.0
        %4274 = vmatpush.msra.mxu0 0.0
        %4275 = vmatpush.msra.mxu0 0.0
        %4276 = vmatpush.msra.mxu0 0.0
        %4277 = vmatpush.msra.mxu0 0.0
        %4278 = vmatpush.msra.mxu0 0.0
        %4279 = vmatpush.msra.mxu0 0.0
        %v4280 = vand.u32 %v1422, 4294901760
        %4281 = vmatpush.msra.mxu0 %v4280
        %v4282 = vand.u32 %v1402, 4294901760
        %4283 = vmatpush.msra.mxu0 %v4282
        %v4284 = vand.u32 %v1382, 4294901760
        %4285 = vmatpush.msra.mxu0 %v4284
        %v4286 = vand.u32 %v1362, 4294901760
        %4287 = vmatpush.msra.mxu0 %v4286
        %v4288 = vand.u32 %v1342, 4294901760
        %4289 = vmatpush.msra.mxu0 %v4288
        %v4290 = vand.u32 %v1322, 4294901760
        %4291 = vmatpush.msra.mxu0 %v4290
        %v4292 = vand.u32 %v1552, 4294901760
        %4293 = vmatmul.f32.gmra.mxu0 %v4292
        %v4294 = vpop.f32.mrf.mxu0
        %v4295 = vadd.f32 %v4268, %v4294
        %4296 = vdwg.mxu0
        %4297 = vmatpush.msra.mxu0 0.0
        %4298 = vmatpush.msra.mxu0 0.0
        %4299 = vmatpush.msra.mxu0 0.0
        %4300 = vmatpush.msra.mxu0 0.0
        %4301 = vmatpush.msra.mxu0 0.0
        %4302 = vmatpush.msra.mxu0 0.0
        %4303 = vmatpush.msra.mxu0 0.0
        %4304 = vmatpush.msra.mxu0 0.0
        %4305 = vmatpush.msra.mxu0 0.0
        %4306 = vmatpush.msra.mxu0 0.0
        %v4307 = vand.u32 %v1423, 4294901760
        %4308 = vmatpush.msra.mxu0 %v4307
        %v4309 = vand.u32 %v1403, 4294901760
        %4310 = vmatpush.msra.mxu0 %v4309
        %v4311 = vand.u32 %v1383, 4294901760
        %4312 = vmatpush.msra.mxu0 %v4311
        %v4313 = vand.u32 %v1363, 4294901760
        %4314 = vmatpush.msra.mxu0 %v4313
        %v4315 = vand.u32 %v1343, 4294901760
        %4316 = vmatpush.msra.mxu0 %v4315
        %v4317 = vand.u32 %v1323, 4294901760
        %4318 = vmatpush.msra.mxu0 %v4317
        %v4319 = vand.u32 %v1552, 4294901760
        %v4320 = vsub.f32 %v1552, %v4319
        %v4321 = vand.u32 %v4320, 4294901760
        %v4322 = vsub.f32 %v4320, %v4321
        %v4323 = vand.u32 %v4322, 4294901760
        %4324 = vmatmul.f32.gmra.mxu0 %v4323
        %v4325 = vpop.f32.mrf.mxu0
        %v4326 = vadd.f32 %v1053, %v4325
        %4327 = vdwg.mxu0
        %4328 = vmatpush.msra.mxu0 0.0
        %4329 = vmatpush.msra.mxu0 0.0
        %4330 = vmatpush.msra.mxu0 0.0
        %4331 = vmatpush.msra.mxu0 0.0
        %4332 = vmatpush.msra.mxu0 0.0
        %4333 = vmatpush.msra.mxu0 0.0
        %4334 = vmatpush.msra.mxu0 0.0
        %4335 = vmatpush.msra.mxu0 0.0
        %4336 = vmatpush.msra.mxu0 0.0
        %4337 = vmatpush.msra.mxu0 0.0
        %v4338 = vand.u32 %v1423, 4294901760
        %v4339 = vsub.f32 %v1423, %v4338
        %v4340 = vand.u32 %v4339, 4294901760
        %v4341 = vsub.f32 %v4339, %v4340
        %v4342 = vand.u32 %v4341, 4294901760
        %4343 = vmatpush.msra.mxu0 %v4342
        %v4344 = vand.u32 %v1403, 4294901760
        %v4345 = vsub.f32 %v1403, %v4344
        %v4346 = vand.u32 %v4345, 4294901760
        %v4347 = vsub.f32 %v4345, %v4346
        %v4348 = vand.u32 %v4347, 4294901760
        %4349 = vmatpush.msra.mxu0 %v4348
        %v4350 = vand.u32 %v1383, 4294901760
        %v4351 = vsub.f32 %v1383, %v4350
        %v4352 = vand.u32 %v4351, 4294901760
        %v4353 = vsub.f32 %v4351, %v4352
        %v4354 = vand.u32 %v4353, 4294901760
        %4355 = vmatpush.msra.mxu0 %v4354
        %v4356 = vand.u32 %v1363, 4294901760
        %v4357 = vsub.f32 %v1363, %v4356
        %v4358 = vand.u32 %v4357, 4294901760
        %v4359 = vsub.f32 %v4357, %v4358
        %v4360 = vand.u32 %v4359, 4294901760
        %4361 = vmatpush.msra.mxu0 %v4360
        %v4362 = vand.u32 %v1343, 4294901760
        %v4363 = vsub.f32 %v1343, %v4362
        %v4364 = vand.u32 %v4363, 4294901760
        %v4365 = vsub.f32 %v4363, %v4364
        %v4366 = vand.u32 %v4365, 4294901760
        %4367 = vmatpush.msra.mxu0 %v4366
        %v4368 = vand.u32 %v1323, 4294901760
        %v4369 = vsub.f32 %v1323, %v4368
        %v4370 = vand.u32 %v4369, 4294901760
        %v4371 = vsub.f32 %v4369, %v4370
        %v4372 = vand.u32 %v4371, 4294901760
        %4373 = vmatpush.msra.mxu0 %v4372
        %v4374 = vand.u32 %v1552, 4294901760
        %4375 = vmatmul.f32.gmra.mxu0 %v4374
        %v4376 = vpop.f32.mrf.mxu0
        %v4377 = vadd.f32 %v4326, %v4376
        %4378 = vdwg.mxu0
        %4379 = vmatpush.msra.mxu0 0.0
        %4380 = vmatpush.msra.mxu0 0.0
        %4381 = vmatpush.msra.mxu0 0.0
        %4382 = vmatpush.msra.mxu0 0.0
        %4383 = vmatpush.msra.mxu0 0.0
        %4384 = vmatpush.msra.mxu0 0.0
        %4385 = vmatpush.msra.mxu0 0.0
        %4386 = vmatpush.msra.mxu0 0.0
        %4387 = vmatpush.msra.mxu0 0.0
        %4388 = vmatpush.msra.mxu0 0.0
        %v4389 = vand.u32 %v1423, 4294901760
        %v4390 = vsub.f32 %v1423, %v4389
        %4391 = vmatpush.msra.mxu0 %v4390
        %v4392 = vand.u32 %v1403, 4294901760
        %v4393 = vsub.f32 %v1403, %v4392
        %4394 = vmatpush.msra.mxu0 %v4393
        %v4395 = vand.u32 %v1383, 4294901760
        %v4396 = vsub.f32 %v1383, %v4395
        %4397 = vmatpush.msra.mxu0 %v4396
        %v4398 = vand.u32 %v1363, 4294901760
        %v4399 = vsub.f32 %v1363, %v4398
        %4400 = vmatpush.msra.mxu0 %v4399
        %v4401 = vand.u32 %v1343, 4294901760
        %v4402 = vsub.f32 %v1343, %v4401
        %4403 = vmatpush.msra.mxu0 %v4402
        %v4404 = vand.u32 %v1323, 4294901760
        %v4405 = vsub.f32 %v1323, %v4404
        %4406 = vmatpush.msra.mxu0 %v4405
        %v4407 = vand.u32 %v1552, 4294901760
        %v4408 = vsub.f32 %v1552, %v4407
        %4409 = vmatmul.f32.gmra.mxu0 %v4408
        %v4410 = vpop.f32.mrf.mxu0
        %v4411 = vadd.f32 %v4377, %v4410
        %4412 = vdwg.mxu0
        %4413 = vmatpush.msra.mxu0 0.0
        %4414 = vmatpush.msra.mxu0 0.0
        %4415 = vmatpush.msra.mxu0 0.0
        %4416 = vmatpush.msra.mxu0 0.0
        %4417 = vmatpush.msra.mxu0 0.0
        %4418 = vmatpush.msra.mxu0 0.0
        %4419 = vmatpush.msra.mxu0 0.0
        %4420 = vmatpush.msra.mxu0 0.0
        %4421 = vmatpush.msra.mxu0 0.0
        %4422 = vmatpush.msra.mxu0 0.0
        %v4423 = vand.u32 %v1423, 4294901760
        %4424 = vmatpush.msra.mxu0 %v4423
        %v4425 = vand.u32 %v1403, 4294901760
        %4426 = vmatpush.msra.mxu0 %v4425
        %v4427 = vand.u32 %v1383, 4294901760
        %4428 = vmatpush.msra.mxu0 %v4427
        %v4429 = vand.u32 %v1363, 4294901760
        %4430 = vmatpush.msra.mxu0 %v4429
        %v4431 = vand.u32 %v1343, 4294901760
        %4432 = vmatpush.msra.mxu0 %v4431
        %v4433 = vand.u32 %v1323, 4294901760
        %4434 = vmatpush.msra.mxu0 %v4433
        %v4435 = vand.u32 %v1552, 4294901760
        %v4436 = vsub.f32 %v1552, %v4435
        %v4437 = vand.u32 %v4436, 4294901760
        %4438 = vmatmul.f32.gmra.mxu0 %v4437
        %v4439 = vpop.f32.mrf.mxu0
        %v4440 = vadd.f32 %v4411, %v4439
        %4441 = vdwg.mxu0
        %4442 = vmatpush.msra.mxu0 0.0
        %4443 = vmatpush.msra.mxu0 0.0
        %4444 = vmatpush.msra.mxu0 0.0
        %4445 = vmatpush.msra.mxu0 0.0
        %4446 = vmatpush.msra.mxu0 0.0
        %4447 = vmatpush.msra.mxu0 0.0
        %4448 = vmatpush.msra.mxu0 0.0
        %4449 = vmatpush.msra.mxu0 0.0
        %4450 = vmatpush.msra.mxu0 0.0
        %4451 = vmatpush.msra.mxu0 0.0
        %v4452 = vand.u32 %v1423, 4294901760
        %v4453 = vsub.f32 %v1423, %v4452
        %v4454 = vand.u32 %v4453, 4294901760
        %4455 = vmatpush.msra.mxu0 %v4454
        %v4456 = vand.u32 %v1403, 4294901760
        %v4457 = vsub.f32 %v1403, %v4456
        %v4458 = vand.u32 %v4457, 4294901760
        %4459 = vmatpush.msra.mxu0 %v4458
        %v4460 = vand.u32 %v1383, 4294901760
        %v4461 = vsub.f32 %v1383, %v4460
        %v4462 = vand.u32 %v4461, 4294901760
        %4463 = vmatpush.msra.mxu0 %v4462
        %v4464 = vand.u32 %v1363, 4294901760
        %v4465 = vsub.f32 %v1363, %v4464
        %v4466 = vand.u32 %v4465, 4294901760
        %4467 = vmatpush.msra.mxu0 %v4466
        %v4468 = vand.u32 %v1343, 4294901760
        %v4469 = vsub.f32 %v1343, %v4468
        %v4470 = vand.u32 %v4469, 4294901760
        %4471 = vmatpush.msra.mxu0 %v4470
        %v4472 = vand.u32 %v1323, 4294901760
        %v4473 = vsub.f32 %v1323, %v4472
        %v4474 = vand.u32 %v4473, 4294901760
        %4475 = vmatpush.msra.mxu0 %v4474
        %v4476 = vand.u32 %v1552, 4294901760
        %4477 = vmatmul.f32.gmra.mxu0 %v4476
        %v4478 = vpop.f32.mrf.mxu0
        %v4479 = vadd.f32 %v4440, %v4478
        %4480 = vdwg.mxu0
        %4481 = vmatpush.msra.mxu0 0.0
        %4482 = vmatpush.msra.mxu0 0.0
        %4483 = vmatpush.msra.mxu0 0.0
        %4484 = vmatpush.msra.mxu0 0.0
        %4485 = vmatpush.msra.mxu0 0.0
        %4486 = vmatpush.msra.mxu0 0.0
        %4487 = vmatpush.msra.mxu0 0.0
        %4488 = vmatpush.msra.mxu0 0.0
        %4489 = vmatpush.msra.mxu0 0.0
        %4490 = vmatpush.msra.mxu0 0.0
        %v4491 = vand.u32 %v1423, 4294901760
        %4492 = vmatpush.msra.mxu0 %v4491
        %v4493 = vand.u32 %v1403, 4294901760
        %4494 = vmatpush.msra.mxu0 %v4493
        %v4495 = vand.u32 %v1383, 4294901760
        %4496 = vmatpush.msra.mxu0 %v4495
        %v4497 = vand.u32 %v1363, 4294901760
        %4498 = vmatpush.msra.mxu0 %v4497
        %v4499 = vand.u32 %v1343, 4294901760
        %4500 = vmatpush.msra.mxu0 %v4499
        %v4501 = vand.u32 %v1323, 4294901760
        %4502 = vmatpush.msra.mxu0 %v4501
        %v4503 = vand.u32 %v1552, 4294901760
        %4504 = vmatmul.f32.gmra.mxu0 %v4503
        %v4505 = vpop.f32.mrf.mxu0
        %v4506 = vadd.f32 %v4479, %v4505
        %4507 = vdwg.mxu0
        %4508 = vmatpush.msra.mxu0 0.0
        %4509 = vmatpush.msra.mxu0 0.0
        %4510 = vmatpush.msra.mxu0 0.0
        %4511 = vmatpush.msra.mxu0 0.0
        %4512 = vmatpush.msra.mxu0 0.0
        %4513 = vmatpush.msra.mxu0 0.0
        %4514 = vmatpush.msra.mxu0 0.0
        %4515 = vmatpush.msra.mxu0 0.0
        %4516 = vmatpush.msra.mxu0 0.0
        %4517 = vmatpush.msra.mxu0 0.0
        %v4518 = vand.u32 %v1424, 4294901760
        %4519 = vmatpush.msra.mxu0 %v4518
        %v4520 = vand.u32 %v1404, 4294901760
        %4521 = vmatpush.msra.mxu0 %v4520
        %v4522 = vand.u32 %v1384, 4294901760
        %4523 = vmatpush.msra.mxu0 %v4522
        %v4524 = vand.u32 %v1364, 4294901760
        %4525 = vmatpush.msra.mxu0 %v4524
        %v4526 = vand.u32 %v1344, 4294901760
        %4527 = vmatpush.msra.mxu0 %v4526
        %v4528 = vand.u32 %v1324, 4294901760
        %4529 = vmatpush.msra.mxu0 %v4528
        %v4530 = vand.u32 %v1552, 4294901760
        %v4531 = vsub.f32 %v1552, %v4530
        %v4532 = vand.u32 %v4531, 4294901760
        %v4533 = vsub.f32 %v4531, %v4532
        %v4534 = vand.u32 %v4533, 4294901760
        %4535 = vmatmul.f32.gmra.mxu0 %v4534
        %v4536 = vpop.f32.mrf.mxu0
        %v4537 = vadd.f32 %v1053, %v4536
        %4538 = vdwg.mxu0
        %4539 = vmatpush.msra.mxu0 0.0
        %4540 = vmatpush.msra.mxu0 0.0
        %4541 = vmatpush.msra.mxu0 0.0
        %4542 = vmatpush.msra.mxu0 0.0
        %4543 = vmatpush.msra.mxu0 0.0
        %4544 = vmatpush.msra.mxu0 0.0
        %4545 = vmatpush.msra.mxu0 0.0
        %4546 = vmatpush.msra.mxu0 0.0
        %4547 = vmatpush.msra.mxu0 0.0
        %4548 = vmatpush.msra.mxu0 0.0
        %v4549 = vand.u32 %v1424, 4294901760
        %v4550 = vsub.f32 %v1424, %v4549
        %v4551 = vand.u32 %v4550, 4294901760
        %v4552 = vsub.f32 %v4550, %v4551
        %v4553 = vand.u32 %v4552, 4294901760
        %4554 = vmatpush.msra.mxu0 %v4553
        %v4555 = vand.u32 %v1404, 4294901760
        %v4556 = vsub.f32 %v1404, %v4555
        %v4557 = vand.u32 %v4556, 4294901760
        %v4558 = vsub.f32 %v4556, %v4557
        %v4559 = vand.u32 %v4558, 4294901760
        %4560 = vmatpush.msra.mxu0 %v4559
        %v4561 = vand.u32 %v1384, 4294901760
        %v4562 = vsub.f32 %v1384, %v4561
        %v4563 = vand.u32 %v4562, 4294901760
        %v4564 = vsub.f32 %v4562, %v4563
        %v4565 = vand.u32 %v4564, 4294901760
        %4566 = vmatpush.msra.mxu0 %v4565
        %v4567 = vand.u32 %v1364, 4294901760
        %v4568 = vsub.f32 %v1364, %v4567
        %v4569 = vand.u32 %v4568, 4294901760
        %v4570 = vsub.f32 %v4568, %v4569
        %v4571 = vand.u32 %v4570, 4294901760
        %4572 = vmatpush.msra.mxu0 %v4571
        %v4573 = vand.u32 %v1344, 4294901760
        %v4574 = vsub.f32 %v1344, %v4573
        %v4575 = vand.u32 %v4574, 4294901760
        %v4576 = vsub.f32 %v4574, %v4575
        %v4577 = vand.u32 %v4576, 4294901760
        %4578 = vmatpush.msra.mxu0 %v4577
        %v4579 = vand.u32 %v1324, 4294901760
        %v4580 = vsub.f32 %v1324, %v4579
        %v4581 = vand.u32 %v4580, 4294901760
        %v4582 = vsub.f32 %v4580, %v4581
        %v4583 = vand.u32 %v4582, 4294901760
        %4584 = vmatpush.msra.mxu0 %v4583
        %v4585 = vand.u32 %v1552, 4294901760
        %4586 = vmatmul.f32.gmra.mxu0 %v4585
        %v4587 = vpop.f32.mrf.mxu0
        %v4588 = vadd.f32 %v4537, %v4587
        %4589 = vdwg.mxu0
        %4590 = vmatpush.msra.mxu0 0.0
        %4591 = vmatpush.msra.mxu0 0.0
        %4592 = vmatpush.msra.mxu0 0.0
        %4593 = vmatpush.msra.mxu0 0.0
        %4594 = vmatpush.msra.mxu0 0.0
        %4595 = vmatpush.msra.mxu0 0.0
        %4596 = vmatpush.msra.mxu0 0.0
        %4597 = vmatpush.msra.mxu0 0.0
        %4598 = vmatpush.msra.mxu0 0.0
        %4599 = vmatpush.msra.mxu0 0.0
        %v4600 = vand.u32 %v1424, 4294901760
        %v4601 = vsub.f32 %v1424, %v4600
        %4602 = vmatpush.msra.mxu0 %v4601
        %v4603 = vand.u32 %v1404, 4294901760
        %v4604 = vsub.f32 %v1404, %v4603
        %4605 = vmatpush.msra.mxu0 %v4604
        %v4606 = vand.u32 %v1384, 4294901760
        %v4607 = vsub.f32 %v1384, %v4606
        %4608 = vmatpush.msra.mxu0 %v4607
        %v4609 = vand.u32 %v1364, 4294901760
        %v4610 = vsub.f32 %v1364, %v4609
        %4611 = vmatpush.msra.mxu0 %v4610
        %v4612 = vand.u32 %v1344, 4294901760
        %v4613 = vsub.f32 %v1344, %v4612
        %4614 = vmatpush.msra.mxu0 %v4613
        %v4615 = vand.u32 %v1324, 4294901760
        %v4616 = vsub.f32 %v1324, %v4615
        %4617 = vmatpush.msra.mxu0 %v4616
        %v4618 = vand.u32 %v1552, 4294901760
        %v4619 = vsub.f32 %v1552, %v4618
        %4620 = vmatmul.f32.gmra.mxu0 %v4619
        %v4621 = vpop.f32.mrf.mxu0
        %v4622 = vadd.f32 %v4588, %v4621
        %4623 = vdwg.mxu0
        %4624 = vmatpush.msra.mxu0 0.0
        %4625 = vmatpush.msra.mxu0 0.0
        %4626 = vmatpush.msra.mxu0 0.0
        %4627 = vmatpush.msra.mxu0 0.0
        %4628 = vmatpush.msra.mxu0 0.0
        %4629 = vmatpush.msra.mxu0 0.0
        %4630 = vmatpush.msra.mxu0 0.0
        %4631 = vmatpush.msra.mxu0 0.0
        %4632 = vmatpush.msra.mxu0 0.0
        %4633 = vmatpush.msra.mxu0 0.0
        %v4634 = vand.u32 %v1424, 4294901760
        %4635 = vmatpush.msra.mxu0 %v4634
        %v4636 = vand.u32 %v1404, 4294901760
        %4637 = vmatpush.msra.mxu0 %v4636
        %v4638 = vand.u32 %v1384, 4294901760
        %4639 = vmatpush.msra.mxu0 %v4638
        %v4640 = vand.u32 %v1364, 4294901760
        %4641 = vmatpush.msra.mxu0 %v4640
        %v4642 = vand.u32 %v1344, 4294901760
        %4643 = vmatpush.msra.mxu0 %v4642
        %v4644 = vand.u32 %v1324, 4294901760
        %4645 = vmatpush.msra.mxu0 %v4644
        %v4646 = vand.u32 %v1552, 4294901760
        %v4647 = vsub.f32 %v1552, %v4646
        %v4648 = vand.u32 %v4647, 4294901760
        %4649 = vmatmul.f32.gmra.mxu0 %v4648
        %v4650 = vpop.f32.mrf.mxu0
        %v4651 = vadd.f32 %v4622, %v4650
        %4652 = vdwg.mxu0
        %4653 = vmatpush.msra.mxu0 0.0
        %4654 = vmatpush.msra.mxu0 0.0
        %4655 = vmatpush.msra.mxu0 0.0
        %4656 = vmatpush.msra.mxu0 0.0
        %4657 = vmatpush.msra.mxu0 0.0
        %4658 = vmatpush.msra.mxu0 0.0
        %4659 = vmatpush.msra.mxu0 0.0
        %4660 = vmatpush.msra.mxu0 0.0
        %4661 = vmatpush.msra.mxu0 0.0
        %4662 = vmatpush.msra.mxu0 0.0
        %v4663 = vand.u32 %v1424, 4294901760
        %v4664 = vsub.f32 %v1424, %v4663
        %v4665 = vand.u32 %v4664, 4294901760
        %4666 = vmatpush.msra.mxu0 %v4665
        %v4667 = vand.u32 %v1404, 4294901760
        %v4668 = vsub.f32 %v1404, %v4667
        %v4669 = vand.u32 %v4668, 4294901760
        %4670 = vmatpush.msra.mxu0 %v4669
        %v4671 = vand.u32 %v1384, 4294901760
        %v4672 = vsub.f32 %v1384, %v4671
        %v4673 = vand.u32 %v4672, 4294901760
        %4674 = vmatpush.msra.mxu0 %v4673
        %v4675 = vand.u32 %v1364, 4294901760
        %v4676 = vsub.f32 %v1364, %v4675
        %v4677 = vand.u32 %v4676, 4294901760
        %4678 = vmatpush.msra.mxu0 %v4677
        %v4679 = vand.u32 %v1344, 4294901760
        %v4680 = vsub.f32 %v1344, %v4679
        %v4681 = vand.u32 %v4680, 4294901760
        %4682 = vmatpush.msra.mxu0 %v4681
        %v4683 = vand.u32 %v1324, 4294901760
        %v4684 = vsub.f32 %v1324, %v4683
        %v4685 = vand.u32 %v4684, 4294901760
        %4686 = vmatpush.msra.mxu0 %v4685
        %v4687 = vand.u32 %v1552, 4294901760
        %4688 = vmatmul.f32.gmra.mxu0 %v4687
        %v4689 = vpop.f32.mrf.mxu0
        %v4690 = vadd.f32 %v4651, %v4689
        %4691 = vdwg.mxu0
        %4692 = vmatpush.msra.mxu0 0.0
        %4693 = vmatpush.msra.mxu0 0.0
        %4694 = vmatpush.msra.mxu0 0.0
        %4695 = vmatpush.msra.mxu0 0.0
        %4696 = vmatpush.msra.mxu0 0.0
        %4697 = vmatpush.msra.mxu0 0.0
        %4698 = vmatpush.msra.mxu0 0.0
        %4699 = vmatpush.msra.mxu0 0.0
        %4700 = vmatpush.msra.mxu0 0.0
        %4701 = vmatpush.msra.mxu0 0.0
        %v4702 = vand.u32 %v1424, 4294901760
        %4703 = vmatpush.msra.mxu0 %v4702
        %v4704 = vand.u32 %v1404, 4294901760
        %4705 = vmatpush.msra.mxu0 %v4704
        %v4706 = vand.u32 %v1384, 4294901760
        %4707 = vmatpush.msra.mxu0 %v4706
        %v4708 = vand.u32 %v1364, 4294901760
        %4709 = vmatpush.msra.mxu0 %v4708
        %v4710 = vand.u32 %v1344, 4294901760
        %4711 = vmatpush.msra.mxu0 %v4710
        %v4712 = vand.u32 %v1324, 4294901760
        %4713 = vmatpush.msra.mxu0 %v4712
        %v4714 = vand.u32 %v1552, 4294901760
        %4715 = vmatmul.f32.gmra.mxu0 %v4714
        %v4716 = vpop.f32.mrf.mxu0
        %v4717 = vadd.f32 %v4690, %v4716
        %4718 = vdwg.mxu0
        %4719 = vmatpush.msra.mxu0 0.0
        %4720 = vmatpush.msra.mxu0 0.0
        %4721 = vmatpush.msra.mxu0 0.0
        %4722 = vmatpush.msra.mxu0 0.0
        %4723 = vmatpush.msra.mxu0 0.0
        %4724 = vmatpush.msra.mxu0 0.0
        %4725 = vmatpush.msra.mxu0 0.0
        %4726 = vmatpush.msra.mxu0 0.0
        %4727 = vmatpush.msra.mxu0 0.0
        %4728 = vmatpush.msra.mxu0 0.0
        %v4729 = vand.u32 %v1425, 4294901760
        %4730 = vmatpush.msra.mxu0 %v4729
        %v4731 = vand.u32 %v1405, 4294901760
        %4732 = vmatpush.msra.mxu0 %v4731
        %v4733 = vand.u32 %v1385, 4294901760
        %4734 = vmatpush.msra.mxu0 %v4733
        %v4735 = vand.u32 %v1365, 4294901760
        %4736 = vmatpush.msra.mxu0 %v4735
        %v4737 = vand.u32 %v1345, 4294901760
        %4738 = vmatpush.msra.mxu0 %v4737
        %v4739 = vand.u32 %v1325, 4294901760
        %4740 = vmatpush.msra.mxu0 %v4739
        %v4741 = vand.u32 %v1552, 4294901760
        %v4742 = vsub.f32 %v1552, %v4741
        %v4743 = vand.u32 %v4742, 4294901760
        %v4744 = vsub.f32 %v4742, %v4743
        %v4745 = vand.u32 %v4744, 4294901760
        %4746 = vmatmul.f32.gmra.mxu0 %v4745
        %v4747 = vpop.f32.mrf.mxu0
        %v4748 = vadd.f32 %v1053, %v4747
        %4749 = vdwg.mxu0
        %4750 = vmatpush.msra.mxu0 0.0
        %4751 = vmatpush.msra.mxu0 0.0
        %4752 = vmatpush.msra.mxu0 0.0
        %4753 = vmatpush.msra.mxu0 0.0
        %4754 = vmatpush.msra.mxu0 0.0
        %4755 = vmatpush.msra.mxu0 0.0
        %4756 = vmatpush.msra.mxu0 0.0
        %4757 = vmatpush.msra.mxu0 0.0
        %4758 = vmatpush.msra.mxu0 0.0
        %4759 = vmatpush.msra.mxu0 0.0
        %v4760 = vand.u32 %v1425, 4294901760
        %v4761 = vsub.f32 %v1425, %v4760
        %v4762 = vand.u32 %v4761, 4294901760
        %v4763 = vsub.f32 %v4761, %v4762
        %v4764 = vand.u32 %v4763, 4294901760
        %4765 = vmatpush.msra.mxu0 %v4764
        %v4766 = vand.u32 %v1405, 4294901760
        %v4767 = vsub.f32 %v1405, %v4766
        %v4768 = vand.u32 %v4767, 4294901760
        %v4769 = vsub.f32 %v4767, %v4768
        %v4770 = vand.u32 %v4769, 4294901760
        %4771 = vmatpush.msra.mxu0 %v4770
        %v4772 = vand.u32 %v1385, 4294901760
        %v4773 = vsub.f32 %v1385, %v4772
        %v4774 = vand.u32 %v4773, 4294901760
        %v4775 = vsub.f32 %v4773, %v4774
        %v4776 = vand.u32 %v4775, 4294901760
        %4777 = vmatpush.msra.mxu0 %v4776
        %v4778 = vand.u32 %v1365, 4294901760
        %v4779 = vsub.f32 %v1365, %v4778
        %v4780 = vand.u32 %v4779, 4294901760
        %v4781 = vsub.f32 %v4779, %v4780
        %v4782 = vand.u32 %v4781, 4294901760
        %4783 = vmatpush.msra.mxu0 %v4782
        %v4784 = vand.u32 %v1345, 4294901760
        %v4785 = vsub.f32 %v1345, %v4784
        %v4786 = vand.u32 %v4785, 4294901760
        %v4787 = vsub.f32 %v4785, %v4786
        %v4788 = vand.u32 %v4787, 4294901760
        %4789 = vmatpush.msra.mxu0 %v4788
        %v4790 = vand.u32 %v1325, 4294901760
        %v4791 = vsub.f32 %v1325, %v4790
        %v4792 = vand.u32 %v4791, 4294901760
        %v4793 = vsub.f32 %v4791, %v4792
        %v4794 = vand.u32 %v4793, 4294901760
        %4795 = vmatpush.msra.mxu0 %v4794
        %v4796 = vand.u32 %v1552, 4294901760
        %4797 = vmatmul.f32.gmra.mxu0 %v4796
        %v4798 = vpop.f32.mrf.mxu0
        %v4799 = vadd.f32 %v4748, %v4798
        %4800 = vdwg.mxu0
        %4801 = vmatpush.msra.mxu0 0.0
        %4802 = vmatpush.msra.mxu0 0.0
        %4803 = vmatpush.msra.mxu0 0.0
        %4804 = vmatpush.msra.mxu0 0.0
        %4805 = vmatpush.msra.mxu0 0.0
        %4806 = vmatpush.msra.mxu0 0.0
        %4807 = vmatpush.msra.mxu0 0.0
        %4808 = vmatpush.msra.mxu0 0.0
        %4809 = vmatpush.msra.mxu0 0.0
        %4810 = vmatpush.msra.mxu0 0.0
        %v4811 = vand.u32 %v1425, 4294901760
        %v4812 = vsub.f32 %v1425, %v4811
        %4813 = vmatpush.msra.mxu0 %v4812
        %v4814 = vand.u32 %v1405, 4294901760
        %v4815 = vsub.f32 %v1405, %v4814
        %4816 = vmatpush.msra.mxu0 %v4815
        %v4817 = vand.u32 %v1385, 4294901760
        %v4818 = vsub.f32 %v1385, %v4817
        %4819 = vmatpush.msra.mxu0 %v4818
        %v4820 = vand.u32 %v1365, 4294901760
        %v4821 = vsub.f32 %v1365, %v4820
        %4822 = vmatpush.msra.mxu0 %v4821
        %v4823 = vand.u32 %v1345, 4294901760
        %v4824 = vsub.f32 %v1345, %v4823
        %4825 = vmatpush.msra.mxu0 %v4824
        %v4826 = vand.u32 %v1325, 4294901760
        %v4827 = vsub.f32 %v1325, %v4826
        %4828 = vmatpush.msra.mxu0 %v4827
        %v4829 = vand.u32 %v1552, 4294901760
        %v4830 = vsub.f32 %v1552, %v4829
        %4831 = vmatmul.f32.gmra.mxu0 %v4830
        %v4832 = vpop.f32.mrf.mxu0
        %v4833 = vadd.f32 %v4799, %v4832
        %4834 = vdwg.mxu0
        %4835 = vmatpush.msra.mxu0 0.0
        %4836 = vmatpush.msra.mxu0 0.0
        %4837 = vmatpush.msra.mxu0 0.0
        %4838 = vmatpush.msra.mxu0 0.0
        %4839 = vmatpush.msra.mxu0 0.0
        %4840 = vmatpush.msra.mxu0 0.0
        %4841 = vmatpush.msra.mxu0 0.0
        %4842 = vmatpush.msra.mxu0 0.0
        %4843 = vmatpush.msra.mxu0 0.0
        %4844 = vmatpush.msra.mxu0 0.0
        %v4845 = vand.u32 %v1425, 4294901760
        %4846 = vmatpush.msra.mxu0 %v4845
        %v4847 = vand.u32 %v1405, 4294901760
        %4848 = vmatpush.msra.mxu0 %v4847
        %v4849 = vand.u32 %v1385, 4294901760
        %4850 = vmatpush.msra.mxu0 %v4849
        %v4851 = vand.u32 %v1365, 4294901760
        %4852 = vmatpush.msra.mxu0 %v4851
        %v4853 = vand.u32 %v1345, 4294901760
        %4854 = vmatpush.msra.mxu0 %v4853
        %v4855 = vand.u32 %v1325, 4294901760
        %4856 = vmatpush.msra.mxu0 %v4855
        %v4857 = vand.u32 %v1552, 4294901760
        %v4858 = vsub.f32 %v1552, %v4857
        %v4859 = vand.u32 %v4858, 4294901760
        %4860 = vmatmul.f32.gmra.mxu0 %v4859
        %v4861 = vpop.f32.mrf.mxu0
        %v4862 = vadd.f32 %v4833, %v4861
        %4863 = vdwg.mxu0
        %4864 = vmatpush.msra.mxu0 0.0
        %4865 = vmatpush.msra.mxu0 0.0
        %4866 = vmatpush.msra.mxu0 0.0
        %4867 = vmatpush.msra.mxu0 0.0
        %4868 = vmatpush.msra.mxu0 0.0
        %4869 = vmatpush.msra.mxu0 0.0
        %4870 = vmatpush.msra.mxu0 0.0
        %4871 = vmatpush.msra.mxu0 0.0
        %4872 = vmatpush.msra.mxu0 0.0
        %4873 = vmatpush.msra.mxu0 0.0
        %v4874 = vand.u32 %v1425, 4294901760
        %v4875 = vsub.f32 %v1425, %v4874
        %v4876 = vand.u32 %v4875, 4294901760
        %4877 = vmatpush.msra.mxu0 %v4876
        %v4878 = vand.u32 %v1405, 4294901760
        %v4879 = vsub.f32 %v1405, %v4878
        %v4880 = vand.u32 %v4879, 4294901760
        %4881 = vmatpush.msra.mxu0 %v4880
        %v4882 = vand.u32 %v1385, 4294901760
        %v4883 = vsub.f32 %v1385, %v4882
        %v4884 = vand.u32 %v4883, 4294901760
        %4885 = vmatpush.msra.mxu0 %v4884
        %v4886 = vand.u32 %v1365, 4294901760
        %v4887 = vsub.f32 %v1365, %v4886
        %v4888 = vand.u32 %v4887, 4294901760
        %4889 = vmatpush.msra.mxu0 %v4888
        %v4890 = vand.u32 %v1345, 4294901760
        %v4891 = vsub.f32 %v1345, %v4890
        %v4892 = vand.u32 %v4891, 4294901760
        %4893 = vmatpush.msra.mxu0 %v4892
        %v4894 = vand.u32 %v1325, 4294901760
        %v4895 = vsub.f32 %v1325, %v4894
        %v4896 = vand.u32 %v4895, 4294901760
        %4897 = vmatpush.msra.mxu0 %v4896
        %v4898 = vand.u32 %v1552, 4294901760
        %4899 = vmatmul.f32.gmra.mxu0 %v4898
        %v4900 = vpop.f32.mrf.mxu0
        %v4901 = vadd.f32 %v4862, %v4900
        %4902 = vdwg.mxu0
        %4903 = vmatpush.msra.mxu0 0.0
        %4904 = vmatpush.msra.mxu0 0.0
        %4905 = vmatpush.msra.mxu0 0.0
        %4906 = vmatpush.msra.mxu0 0.0
        %4907 = vmatpush.msra.mxu0 0.0
        %4908 = vmatpush.msra.mxu0 0.0
        %4909 = vmatpush.msra.mxu0 0.0
        %4910 = vmatpush.msra.mxu0 0.0
        %4911 = vmatpush.msra.mxu0 0.0
        %4912 = vmatpush.msra.mxu0 0.0
        %v4913 = vand.u32 %v1425, 4294901760
        %4914 = vmatpush.msra.mxu0 %v4913
        %v4915 = vand.u32 %v1405, 4294901760
        %4916 = vmatpush.msra.mxu0 %v4915
        %v4917 = vand.u32 %v1385, 4294901760
        %4918 = vmatpush.msra.mxu0 %v4917
        %v4919 = vand.u32 %v1365, 4294901760
        %4920 = vmatpush.msra.mxu0 %v4919
        %v4921 = vand.u32 %v1345, 4294901760
        %4922 = vmatpush.msra.mxu0 %v4921
        %v4923 = vand.u32 %v1325, 4294901760
        %4924 = vmatpush.msra.mxu0 %v4923
        %v4925 = vand.u32 %v1552, 4294901760
        %4926 = vmatmul.f32.gmra.mxu0 %v4925
        %v4927 = vpop.f32.mrf.mxu0
        %v4928 = vadd.f32 %v4901, %v4927
        %4929 = vdwg.mxu0
        %4930 = vmatpush.msra.mxu0 0.0
        %4931 = vmatpush.msra.mxu0 0.0
        %4932 = vmatpush.msra.mxu0 0.0
        %4933 = vmatpush.msra.mxu0 0.0
        %4934 = vmatpush.msra.mxu0 0.0
        %4935 = vmatpush.msra.mxu0 0.0
        %4936 = vmatpush.msra.mxu0 0.0
        %4937 = vmatpush.msra.mxu0 0.0
        %4938 = vmatpush.msra.mxu0 0.0
        %4939 = vmatpush.msra.mxu0 0.0
        %v4940 = vand.u32 %v1426, 4294901760
        %4941 = vmatpush.msra.mxu0 %v4940
        %v4942 = vand.u32 %v1406, 4294901760
        %4943 = vmatpush.msra.mxu0 %v4942
        %v4944 = vand.u32 %v1386, 4294901760
        %4945 = vmatpush.msra.mxu0 %v4944
        %v4946 = vand.u32 %v1366, 4294901760
        %4947 = vmatpush.msra.mxu0 %v4946
        %v4948 = vand.u32 %v1346, 4294901760
        %4949 = vmatpush.msra.mxu0 %v4948
        %v4950 = vand.u32 %v1326, 4294901760
        %4951 = vmatpush.msra.mxu0 %v4950
        %v4952 = vand.u32 %v1552, 4294901760
        %v4953 = vsub.f32 %v1552, %v4952
        %v4954 = vand.u32 %v4953, 4294901760
        %v4955 = vsub.f32 %v4953, %v4954
        %v4956 = vand.u32 %v4955, 4294901760
        %4957 = vmatmul.f32.gmra.mxu0 %v4956
        %v4958 = vpop.f32.mrf.mxu0
        %v4959 = vadd.f32 %v1053, %v4958
        %4960 = vdwg.mxu0
        %4961 = vmatpush.msra.mxu0 0.0
        %4962 = vmatpush.msra.mxu0 0.0
        %4963 = vmatpush.msra.mxu0 0.0
        %4964 = vmatpush.msra.mxu0 0.0
        %4965 = vmatpush.msra.mxu0 0.0
        %4966 = vmatpush.msra.mxu0 0.0
        %4967 = vmatpush.msra.mxu0 0.0
        %4968 = vmatpush.msra.mxu0 0.0
        %4969 = vmatpush.msra.mxu0 0.0
        %4970 = vmatpush.msra.mxu0 0.0
        %v4971 = vand.u32 %v1426, 4294901760
        %v4972 = vsub.f32 %v1426, %v4971
        %v4973 = vand.u32 %v4972, 4294901760
        %v4974 = vsub.f32 %v4972, %v4973
        %v4975 = vand.u32 %v4974, 4294901760
        %4976 = vmatpush.msra.mxu0 %v4975
        %v4977 = vand.u32 %v1406, 4294901760
        %v4978 = vsub.f32 %v1406, %v4977
        %v4979 = vand.u32 %v4978, 4294901760
        %v4980 = vsub.f32 %v4978, %v4979
        %v4981 = vand.u32 %v4980, 4294901760
        %4982 = vmatpush.msra.mxu0 %v4981
        %v4983 = vand.u32 %v1386, 4294901760
        %v4984 = vsub.f32 %v1386, %v4983
        %v4985 = vand.u32 %v4984, 4294901760
        %v4986 = vsub.f32 %v4984, %v4985
        %v4987 = vand.u32 %v4986, 4294901760
        %4988 = vmatpush.msra.mxu0 %v4987
        %v4989 = vand.u32 %v1366, 4294901760
        %v4990 = vsub.f32 %v1366, %v4989
        %v4991 = vand.u32 %v4990, 4294901760
        %v4992 = vsub.f32 %v4990, %v4991
        %v4993 = vand.u32 %v4992, 4294901760
        %4994 = vmatpush.msra.mxu0 %v4993
        %v4995 = vand.u32 %v1346, 4294901760
        %v4996 = vsub.f32 %v1346, %v4995
        %v4997 = vand.u32 %v4996, 4294901760
        %v4998 = vsub.f32 %v4996, %v4997
        %v4999 = vand.u32 %v4998, 4294901760
        %5000 = vmatpush.msra.mxu0 %v4999
        %v5001 = vand.u32 %v1326, 4294901760
        %v5002 = vsub.f32 %v1326, %v5001
        %v5003 = vand.u32 %v5002, 4294901760
        %v5004 = vsub.f32 %v5002, %v5003
        %v5005 = vand.u32 %v5004, 4294901760
        %5006 = vmatpush.msra.mxu0 %v5005
        %v5007 = vand.u32 %v1552, 4294901760
        %5008 = vmatmul.f32.gmra.mxu0 %v5007
        %v5009 = vpop.f32.mrf.mxu0
        %v5010 = vadd.f32 %v4959, %v5009
        %5011 = vdwg.mxu0
        %5012 = vmatpush.msra.mxu0 0.0
        %5013 = vmatpush.msra.mxu0 0.0
        %5014 = vmatpush.msra.mxu0 0.0
        %5015 = vmatpush.msra.mxu0 0.0
        %5016 = vmatpush.msra.mxu0 0.0
        %5017 = vmatpush.msra.mxu0 0.0
        %5018 = vmatpush.msra.mxu0 0.0
        %5019 = vmatpush.msra.mxu0 0.0
        %5020 = vmatpush.msra.mxu0 0.0
        %5021 = vmatpush.msra.mxu0 0.0
        %v5022 = vand.u32 %v1426, 4294901760
        %v5023 = vsub.f32 %v1426, %v5022
        %5024 = vmatpush.msra.mxu0 %v5023
        %v5025 = vand.u32 %v1406, 4294901760
        %v5026 = vsub.f32 %v1406, %v5025
        %5027 = vmatpush.msra.mxu0 %v5026
        %v5028 = vand.u32 %v1386, 4294901760
        %v5029 = vsub.f32 %v1386, %v5028
        %5030 = vmatpush.msra.mxu0 %v5029
        %v5031 = vand.u32 %v1366, 4294901760
        %v5032 = vsub.f32 %v1366, %v5031
        %5033 = vmatpush.msra.mxu0 %v5032
        %v5034 = vand.u32 %v1346, 4294901760
        %v5035 = vsub.f32 %v1346, %v5034
        %5036 = vmatpush.msra.mxu0 %v5035
        %v5037 = vand.u32 %v1326, 4294901760
        %v5038 = vsub.f32 %v1326, %v5037
        %5039 = vmatpush.msra.mxu0 %v5038
        %v5040 = vand.u32 %v1552, 4294901760
        %v5041 = vsub.f32 %v1552, %v5040
        %5042 = vmatmul.f32.gmra.mxu0 %v5041
        %v5043 = vpop.f32.mrf.mxu0
        %v5044 = vadd.f32 %v5010, %v5043
        %5045 = vdwg.mxu0
        %5046 = vmatpush.msra.mxu0 0.0
        %5047 = vmatpush.msra.mxu0 0.0
        %5048 = vmatpush.msra.mxu0 0.0
        %5049 = vmatpush.msra.mxu0 0.0
        %5050 = vmatpush.msra.mxu0 0.0
        %5051 = vmatpush.msra.mxu0 0.0
        %5052 = vmatpush.msra.mxu0 0.0
        %5053 = vmatpush.msra.mxu0 0.0
        %5054 = vmatpush.msra.mxu0 0.0
        %5055 = vmatpush.msra.mxu0 0.0
        %v5056 = vand.u32 %v1426, 4294901760
        %5057 = vmatpush.msra.mxu0 %v5056
        %v5058 = vand.u32 %v1406, 4294901760
        %5059 = vmatpush.msra.mxu0 %v5058
        %v5060 = vand.u32 %v1386, 4294901760
        %5061 = vmatpush.msra.mxu0 %v5060
        %v5062 = vand.u32 %v1366, 4294901760
        %5063 = vmatpush.msra.mxu0 %v5062
        %v5064 = vand.u32 %v1346, 4294901760
        %5065 = vmatpush.msra.mxu0 %v5064
        %v5066 = vand.u32 %v1326, 4294901760
        %5067 = vmatpush.msra.mxu0 %v5066
        %v5068 = vand.u32 %v1552, 4294901760
        %v5069 = vsub.f32 %v1552, %v5068
        %v5070 = vand.u32 %v5069, 4294901760
        %5071 = vmatmul.f32.gmra.mxu0 %v5070
        %v5072 = vpop.f32.mrf.mxu0
        %v5073 = vadd.f32 %v5044, %v5072
        %5074 = vdwg.mxu0
        %5075 = vmatpush.msra.mxu0 0.0
        %5076 = vmatpush.msra.mxu0 0.0
        %5077 = vmatpush.msra.mxu0 0.0
        %5078 = vmatpush.msra.mxu0 0.0
        %5079 = vmatpush.msra.mxu0 0.0
        %5080 = vmatpush.msra.mxu0 0.0
        %5081 = vmatpush.msra.mxu0 0.0
        %5082 = vmatpush.msra.mxu0 0.0
        %5083 = vmatpush.msra.mxu0 0.0
        %5084 = vmatpush.msra.mxu0 0.0
        %v5085 = vand.u32 %v1426, 4294901760
        %v5086 = vsub.f32 %v1426, %v5085
        %v5087 = vand.u32 %v5086, 4294901760
        %5088 = vmatpush.msra.mxu0 %v5087
        %v5089 = vand.u32 %v1406, 4294901760
        %v5090 = vsub.f32 %v1406, %v5089
        %v5091 = vand.u32 %v5090, 4294901760
        %5092 = vmatpush.msra.mxu0 %v5091
        %v5093 = vand.u32 %v1386, 4294901760
        %v5094 = vsub.f32 %v1386, %v5093
        %v5095 = vand.u32 %v5094, 4294901760
        %5096 = vmatpush.msra.mxu0 %v5095
        %v5097 = vand.u32 %v1366, 4294901760
        %v5098 = vsub.f32 %v1366, %v5097
        %v5099 = vand.u32 %v5098, 4294901760
        %5100 = vmatpush.msra.mxu0 %v5099
        %v5101 = vand.u32 %v1346, 4294901760
        %v5102 = vsub.f32 %v1346, %v5101
        %v5103 = vand.u32 %v5102, 4294901760
        %5104 = vmatpush.msra.mxu0 %v5103
        %v5105 = vand.u32 %v1326, 4294901760
        %v5106 = vsub.f32 %v1326, %v5105
        %v5107 = vand.u32 %v5106, 4294901760
        %5108 = vmatpush.msra.mxu0 %v5107
        %v5109 = vand.u32 %v1552, 4294901760
        %5110 = vmatmul.f32.gmra.mxu0 %v5109
        %v5111 = vpop.f32.mrf.mxu0
        %v5112 = vadd.f32 %v5073, %v5111
        %5113 = vdwg.mxu0
        %5114 = vmatpush.msra.mxu0 0.0
        %5115 = vmatpush.msra.mxu0 0.0
        %5116 = vmatpush.msra.mxu0 0.0
        %5117 = vmatpush.msra.mxu0 0.0
        %5118 = vmatpush.msra.mxu0 0.0
        %5119 = vmatpush.msra.mxu0 0.0
        %5120 = vmatpush.msra.mxu0 0.0
        %5121 = vmatpush.msra.mxu0 0.0
        %5122 = vmatpush.msra.mxu0 0.0
        %5123 = vmatpush.msra.mxu0 0.0
        %v5124 = vand.u32 %v1426, 4294901760
        %5125 = vmatpush.msra.mxu0 %v5124
        %v5126 = vand.u32 %v1406, 4294901760
        %5127 = vmatpush.msra.mxu0 %v5126
        %v5128 = vand.u32 %v1386, 4294901760
        %5129 = vmatpush.msra.mxu0 %v5128
        %v5130 = vand.u32 %v1366, 4294901760
        %5131 = vmatpush.msra.mxu0 %v5130
        %v5132 = vand.u32 %v1346, 4294901760
        %5133 = vmatpush.msra.mxu0 %v5132
        %v5134 = vand.u32 %v1326, 4294901760
        %5135 = vmatpush.msra.mxu0 %v5134
        %v5136 = vand.u32 %v1552, 4294901760
        %5137 = vmatmul.f32.gmra.mxu0 %v5136
        %v5138 = vpop.f32.mrf.mxu0
        %v5139 = vadd.f32 %v5112, %v5138
        %5140 = vdwg.mxu0
        %5141 = vmatpush.msra.mxu0 0.0
        %5142 = vmatpush.msra.mxu0 0.0
        %5143 = vmatpush.msra.mxu0 0.0
        %5144 = vmatpush.msra.mxu0 0.0
        %5145 = vmatpush.msra.mxu0 0.0
        %5146 = vmatpush.msra.mxu0 0.0
        %5147 = vmatpush.msra.mxu0 0.0
        %5148 = vmatpush.msra.mxu0 0.0
        %5149 = vmatpush.msra.mxu0 0.0
        %5150 = vmatpush.msra.mxu0 0.0
        %v5151 = vand.u32 %v1427, 4294901760
        %5152 = vmatpush.msra.mxu0 %v5151
        %v5153 = vand.u32 %v1407, 4294901760
        %5154 = vmatpush.msra.mxu0 %v5153
        %v5155 = vand.u32 %v1387, 4294901760
        %5156 = vmatpush.msra.mxu0 %v5155
        %v5157 = vand.u32 %v1367, 4294901760
        %5158 = vmatpush.msra.mxu0 %v5157
        %v5159 = vand.u32 %v1347, 4294901760
        %5160 = vmatpush.msra.mxu0 %v5159
        %v5161 = vand.u32 %v1327, 4294901760
        %5162 = vmatpush.msra.mxu0 %v5161
        %v5163 = vand.u32 %v1552, 4294901760
        %v5164 = vsub.f32 %v1552, %v5163
        %v5165 = vand.u32 %v5164, 4294901760
        %v5166 = vsub.f32 %v5164, %v5165
        %v5167 = vand.u32 %v5166, 4294901760
        %5168 = vmatmul.f32.gmra.mxu0 %v5167
        %v5169 = vpop.f32.mrf.mxu0
        %v5170 = vadd.f32 %v1053, %v5169
        %5171 = vdwg.mxu0
        %5172 = vmatpush.msra.mxu0 0.0
        %5173 = vmatpush.msra.mxu0 0.0
        %5174 = vmatpush.msra.mxu0 0.0
        %5175 = vmatpush.msra.mxu0 0.0
        %5176 = vmatpush.msra.mxu0 0.0
        %5177 = vmatpush.msra.mxu0 0.0
        %5178 = vmatpush.msra.mxu0 0.0
        %5179 = vmatpush.msra.mxu0 0.0
        %5180 = vmatpush.msra.mxu0 0.0
        %5181 = vmatpush.msra.mxu0 0.0
        %v5182 = vand.u32 %v1427, 4294901760
        %v5183 = vsub.f32 %v1427, %v5182
        %v5184 = vand.u32 %v5183, 4294901760
        %v5185 = vsub.f32 %v5183, %v5184
        %v5186 = vand.u32 %v5185, 4294901760
        %5187 = vmatpush.msra.mxu0 %v5186
        %v5188 = vand.u32 %v1407, 4294901760
        %v5189 = vsub.f32 %v1407, %v5188
        %v5190 = vand.u32 %v5189, 4294901760
        %v5191 = vsub.f32 %v5189, %v5190
        %v5192 = vand.u32 %v5191, 4294901760
        %5193 = vmatpush.msra.mxu0 %v5192
        %v5194 = vand.u32 %v1387, 4294901760
        %v5195 = vsub.f32 %v1387, %v5194
        %v5196 = vand.u32 %v5195, 4294901760
        %v5197 = vsub.f32 %v5195, %v5196
        %v5198 = vand.u32 %v5197, 4294901760
        %5199 = vmatpush.msra.mxu0 %v5198
        %v5200 = vand.u32 %v1367, 4294901760
        %v5201 = vsub.f32 %v1367, %v5200
        %v5202 = vand.u32 %v5201, 4294901760
        %v5203 = vsub.f32 %v5201, %v5202
        %v5204 = vand.u32 %v5203, 4294901760
        %5205 = vmatpush.msra.mxu0 %v5204
        %v5206 = vand.u32 %v1347, 4294901760
        %v5207 = vsub.f32 %v1347, %v5206
        %v5208 = vand.u32 %v5207, 4294901760
        %v5209 = vsub.f32 %v5207, %v5208
        %v5210 = vand.u32 %v5209, 4294901760
        %5211 = vmatpush.msra.mxu0 %v5210
        %v5212 = vand.u32 %v1327, 4294901760
        %v5213 = vsub.f32 %v1327, %v5212
        %v5214 = vand.u32 %v5213, 4294901760
        %v5215 = vsub.f32 %v5213, %v5214
        %v5216 = vand.u32 %v5215, 4294901760
        %5217 = vmatpush.msra.mxu0 %v5216
        %v5218 = vand.u32 %v1552, 4294901760
        %5219 = vmatmul.f32.gmra.mxu0 %v5218
        %v5220 = vpop.f32.mrf.mxu0
        %v5221 = vadd.f32 %v5170, %v5220
        %5222 = vdwg.mxu0
        %5223 = vmatpush.msra.mxu0 0.0
        %5224 = vmatpush.msra.mxu0 0.0
        %5225 = vmatpush.msra.mxu0 0.0
        %5226 = vmatpush.msra.mxu0 0.0
        %5227 = vmatpush.msra.mxu0 0.0
        %5228 = vmatpush.msra.mxu0 0.0
        %5229 = vmatpush.msra.mxu0 0.0
        %5230 = vmatpush.msra.mxu0 0.0
        %5231 = vmatpush.msra.mxu0 0.0
        %5232 = vmatpush.msra.mxu0 0.0
        %v5233 = vand.u32 %v1427, 4294901760
        %v5234 = vsub.f32 %v1427, %v5233
        %5235 = vmatpush.msra.mxu0 %v5234
        %v5236 = vand.u32 %v1407, 4294901760
        %v5237 = vsub.f32 %v1407, %v5236
        %5238 = vmatpush.msra.mxu0 %v5237
        %v5239 = vand.u32 %v1387, 4294901760
        %v5240 = vsub.f32 %v1387, %v5239
        %5241 = vmatpush.msra.mxu0 %v5240
        %v5242 = vand.u32 %v1367, 4294901760
        %v5243 = vsub.f32 %v1367, %v5242
        %5244 = vmatpush.msra.mxu0 %v5243
        %v5245 = vand.u32 %v1347, 4294901760
        %v5246 = vsub.f32 %v1347, %v5245
        %5247 = vmatpush.msra.mxu0 %v5246
        %v5248 = vand.u32 %v1327, 4294901760
        %v5249 = vsub.f32 %v1327, %v5248
        %5250 = vmatpush.msra.mxu0 %v5249
        %v5251 = vand.u32 %v1552, 4294901760
        %v5252 = vsub.f32 %v1552, %v5251
        %5253 = vmatmul.f32.gmra.mxu0 %v5252
        %v5254 = vpop.f32.mrf.mxu0
        %v5255 = vadd.f32 %v5221, %v5254
        %5256 = vdwg.mxu0
        %5257 = vmatpush.msra.mxu0 0.0
        %5258 = vmatpush.msra.mxu0 0.0
        %5259 = vmatpush.msra.mxu0 0.0
        %5260 = vmatpush.msra.mxu0 0.0
        %5261 = vmatpush.msra.mxu0 0.0
        %5262 = vmatpush.msra.mxu0 0.0
        %5263 = vmatpush.msra.mxu0 0.0
        %5264 = vmatpush.msra.mxu0 0.0
        %5265 = vmatpush.msra.mxu0 0.0
        %5266 = vmatpush.msra.mxu0 0.0
        %v5267 = vand.u32 %v1427, 4294901760
        %5268 = vmatpush.msra.mxu0 %v5267
        %v5269 = vand.u32 %v1407, 4294901760
        %5270 = vmatpush.msra.mxu0 %v5269
        %v5271 = vand.u32 %v1387, 4294901760
        %5272 = vmatpush.msra.mxu0 %v5271
        %v5273 = vand.u32 %v1367, 4294901760
        %5274 = vmatpush.msra.mxu0 %v5273
        %v5275 = vand.u32 %v1347, 4294901760
        %5276 = vmatpush.msra.mxu0 %v5275
        %v5277 = vand.u32 %v1327, 4294901760
        %5278 = vmatpush.msra.mxu0 %v5277
        %v5279 = vand.u32 %v1552, 4294901760
        %v5280 = vsub.f32 %v1552, %v5279
        %v5281 = vand.u32 %v5280, 4294901760
        %5282 = vmatmul.f32.gmra.mxu0 %v5281
        %v5283 = vpop.f32.mrf.mxu0
        %v5284 = vadd.f32 %v5255, %v5283
        %5285 = vdwg.mxu0
        %5286 = vmatpush.msra.mxu0 0.0
        %5287 = vmatpush.msra.mxu0 0.0
        %5288 = vmatpush.msra.mxu0 0.0
        %5289 = vmatpush.msra.mxu0 0.0
        %5290 = vmatpush.msra.mxu0 0.0
        %5291 = vmatpush.msra.mxu0 0.0
        %5292 = vmatpush.msra.mxu0 0.0
        %5293 = vmatpush.msra.mxu0 0.0
        %5294 = vmatpush.msra.mxu0 0.0
        %5295 = vmatpush.msra.mxu0 0.0
        %v5296 = vand.u32 %v1427, 4294901760
        %v5297 = vsub.f32 %v1427, %v5296
        %v5298 = vand.u32 %v5297, 4294901760
        %5299 = vmatpush.msra.mxu0 %v5298
        %v5300 = vand.u32 %v1407, 4294901760
        %v5301 = vsub.f32 %v1407, %v5300
        %v5302 = vand.u32 %v5301, 4294901760
        %5303 = vmatpush.msra.mxu0 %v5302
        %v5304 = vand.u32 %v1387, 4294901760
        %v5305 = vsub.f32 %v1387, %v5304
        %v5306 = vand.u32 %v5305, 4294901760
        %5307 = vmatpush.msra.mxu0 %v5306
        %v5308 = vand.u32 %v1367, 4294901760
        %v5309 = vsub.f32 %v1367, %v5308
        %v5310 = vand.u32 %v5309, 4294901760
        %5311 = vmatpush.msra.mxu0 %v5310
        %v5312 = vand.u32 %v1347, 4294901760
        %v5313 = vsub.f32 %v1347, %v5312
        %v5314 = vand.u32 %v5313, 4294901760
        %5315 = vmatpush.msra.mxu0 %v5314
        %v5316 = vand.u32 %v1327, 4294901760
        %v5317 = vsub.f32 %v1327, %v5316
        %v5318 = vand.u32 %v5317, 4294901760
        %5319 = vmatpush.msra.mxu0 %v5318
        %v5320 = vand.u32 %v1552, 4294901760
        %5321 = vmatmul.f32.gmra.mxu0 %v5320
        %v5322 = vpop.f32.mrf.mxu0
        %v5323 = vadd.f32 %v5284, %v5322
        %5324 = vdwg.mxu0
        %5325 = vmatpush.msra.mxu0 0.0
        %5326 = vmatpush.msra.mxu0 0.0
        %5327 = vmatpush.msra.mxu0 0.0
        %5328 = vmatpush.msra.mxu0 0.0
        %5329 = vmatpush.msra.mxu0 0.0
        %5330 = vmatpush.msra.mxu0 0.0
        %5331 = vmatpush.msra.mxu0 0.0
        %5332 = vmatpush.msra.mxu0 0.0
        %5333 = vmatpush.msra.mxu0 0.0
        %5334 = vmatpush.msra.mxu0 0.0
        %v5335 = vand.u32 %v1427, 4294901760
        %5336 = vmatpush.msra.mxu0 %v5335
        %v5337 = vand.u32 %v1407, 4294901760
        %5338 = vmatpush.msra.mxu0 %v5337
        %v5339 = vand.u32 %v1387, 4294901760
        %5340 = vmatpush.msra.mxu0 %v5339
        %v5341 = vand.u32 %v1367, 4294901760
        %5342 = vmatpush.msra.mxu0 %v5341
        %v5343 = vand.u32 %v1347, 4294901760
        %5344 = vmatpush.msra.mxu0 %v5343
        %v5345 = vand.u32 %v1327, 4294901760
        %5346 = vmatpush.msra.mxu0 %v5345
        %v5347 = vand.u32 %v1552, 4294901760
        %5348 = vmatmul.f32.gmra.mxu0 %v5347
        %v5349 = vpop.f32.mrf.mxu0
        %v5350 = vadd.f32 %v5323, %v5349
        %5351 = vdwg.mxu0
        %5352 = vmatpush.msra.mxu0 0.0
        %5353 = vmatpush.msra.mxu0 0.0
        %5354 = vmatpush.msra.mxu0 0.0
        %5355 = vmatpush.msra.mxu0 0.0
        %5356 = vmatpush.msra.mxu0 0.0
        %5357 = vmatpush.msra.mxu0 0.0
        %5358 = vmatpush.msra.mxu0 0.0
        %5359 = vmatpush.msra.mxu0 0.0
        %5360 = vmatpush.msra.mxu0 0.0
        %5361 = vmatpush.msra.mxu0 0.0
        %v5362 = vand.u32 %v1428, 4294901760
        %5363 = vmatpush.msra.mxu0 %v5362
        %v5364 = vand.u32 %v1408, 4294901760
        %5365 = vmatpush.msra.mxu0 %v5364
        %v5366 = vand.u32 %v1388, 4294901760
        %5367 = vmatpush.msra.mxu0 %v5366
        %v5368 = vand.u32 %v1368, 4294901760
        %5369 = vmatpush.msra.mxu0 %v5368
        %v5370 = vand.u32 %v1348, 4294901760
        %5371 = vmatpush.msra.mxu0 %v5370
        %v5372 = vand.u32 %v1328, 4294901760
        %5373 = vmatpush.msra.mxu0 %v5372
        %v5374 = vand.u32 %v1552, 4294901760
        %v5375 = vsub.f32 %v1552, %v5374
        %v5376 = vand.u32 %v5375, 4294901760
        %v5377 = vsub.f32 %v5375, %v5376
        %v5378 = vand.u32 %v5377, 4294901760
        %5379 = vmatmul.f32.gmra.mxu0 %v5378
        %v5380 = vpop.f32.mrf.mxu0
        %v5381 = vadd.f32 %v1053, %v5380
        %5382 = vdwg.mxu0
        %5383 = vmatpush.msra.mxu0 0.0
        %5384 = vmatpush.msra.mxu0 0.0
        %5385 = vmatpush.msra.mxu0 0.0
        %5386 = vmatpush.msra.mxu0 0.0
        %5387 = vmatpush.msra.mxu0 0.0
        %5388 = vmatpush.msra.mxu0 0.0
        %5389 = vmatpush.msra.mxu0 0.0
        %5390 = vmatpush.msra.mxu0 0.0
        %5391 = vmatpush.msra.mxu0 0.0
        %5392 = vmatpush.msra.mxu0 0.0
        %v5393 = vand.u32 %v1428, 4294901760
        %v5394 = vsub.f32 %v1428, %v5393
        %v5395 = vand.u32 %v5394, 4294901760
        %v5396 = vsub.f32 %v5394, %v5395
        %v5397 = vand.u32 %v5396, 4294901760
        %5398 = vmatpush.msra.mxu0 %v5397
        %v5399 = vand.u32 %v1408, 4294901760
        %v5400 = vsub.f32 %v1408, %v5399
        %v5401 = vand.u32 %v5400, 4294901760
        %v5402 = vsub.f32 %v5400, %v5401
        %v5403 = vand.u32 %v5402, 4294901760
        %5404 = vmatpush.msra.mxu0 %v5403
        %v5405 = vand.u32 %v1388, 4294901760
        %v5406 = vsub.f32 %v1388, %v5405
        %v5407 = vand.u32 %v5406, 4294901760
        %v5408 = vsub.f32 %v5406, %v5407
        %v5409 = vand.u32 %v5408, 4294901760
        %5410 = vmatpush.msra.mxu0 %v5409
        %v5411 = vand.u32 %v1368, 4294901760
        %v5412 = vsub.f32 %v1368, %v5411
        %v5413 = vand.u32 %v5412, 4294901760
        %v5414 = vsub.f32 %v5412, %v5413
        %v5415 = vand.u32 %v5414, 4294901760
        %5416 = vmatpush.msra.mxu0 %v5415
        %v5417 = vand.u32 %v1348, 4294901760
        %v5418 = vsub.f32 %v1348, %v5417
        %v5419 = vand.u32 %v5418, 4294901760
        %v5420 = vsub.f32 %v5418, %v5419
        %v5421 = vand.u32 %v5420, 4294901760
        %5422 = vmatpush.msra.mxu0 %v5421
        %v5423 = vand.u32 %v1328, 4294901760
        %v5424 = vsub.f32 %v1328, %v5423
        %v5425 = vand.u32 %v5424, 4294901760
        %v5426 = vsub.f32 %v5424, %v5425
        %v5427 = vand.u32 %v5426, 4294901760
        %5428 = vmatpush.msra.mxu0 %v5427
        %v5429 = vand.u32 %v1552, 4294901760
        %5430 = vmatmul.f32.gmra.mxu0 %v5429
        %v5431 = vpop.f32.mrf.mxu0
        %v5432 = vadd.f32 %v5381, %v5431
        %5433 = vdwg.mxu0
        %5434 = vmatpush.msra.mxu0 0.0
        %5435 = vmatpush.msra.mxu0 0.0
        %5436 = vmatpush.msra.mxu0 0.0
        %5437 = vmatpush.msra.mxu0 0.0
        %5438 = vmatpush.msra.mxu0 0.0
        %5439 = vmatpush.msra.mxu0 0.0
        %5440 = vmatpush.msra.mxu0 0.0
        %5441 = vmatpush.msra.mxu0 0.0
        %5442 = vmatpush.msra.mxu0 0.0
        %5443 = vmatpush.msra.mxu0 0.0
        %v5444 = vand.u32 %v1428, 4294901760
        %v5445 = vsub.f32 %v1428, %v5444
        %5446 = vmatpush.msra.mxu0 %v5445
        %v5447 = vand.u32 %v1408, 4294901760
        %v5448 = vsub.f32 %v1408, %v5447
        %5449 = vmatpush.msra.mxu0 %v5448
        %v5450 = vand.u32 %v1388, 4294901760
        %v5451 = vsub.f32 %v1388, %v5450
        %5452 = vmatpush.msra.mxu0 %v5451
        %v5453 = vand.u32 %v1368, 4294901760
        %v5454 = vsub.f32 %v1368, %v5453
        %5455 = vmatpush.msra.mxu0 %v5454
        %v5456 = vand.u32 %v1348, 4294901760
        %v5457 = vsub.f32 %v1348, %v5456
        %5458 = vmatpush.msra.mxu0 %v5457
        %v5459 = vand.u32 %v1328, 4294901760
        %v5460 = vsub.f32 %v1328, %v5459
        %5461 = vmatpush.msra.mxu0 %v5460
        %v5462 = vand.u32 %v1552, 4294901760
        %v5463 = vsub.f32 %v1552, %v5462
        %5464 = vmatmul.f32.gmra.mxu0 %v5463
        %v5465 = vpop.f32.mrf.mxu0
        %v5466 = vadd.f32 %v5432, %v5465
        %5467 = vdwg.mxu0
        %5468 = vmatpush.msra.mxu0 0.0
        %5469 = vmatpush.msra.mxu0 0.0
        %5470 = vmatpush.msra.mxu0 0.0
        %5471 = vmatpush.msra.mxu0 0.0
        %5472 = vmatpush.msra.mxu0 0.0
        %5473 = vmatpush.msra.mxu0 0.0
        %5474 = vmatpush.msra.mxu0 0.0
        %5475 = vmatpush.msra.mxu0 0.0
        %5476 = vmatpush.msra.mxu0 0.0
        %5477 = vmatpush.msra.mxu0 0.0
        %v5478 = vand.u32 %v1428, 4294901760
        %5479 = vmatpush.msra.mxu0 %v5478
        %v5480 = vand.u32 %v1408, 4294901760
        %5481 = vmatpush.msra.mxu0 %v5480
        %v5482 = vand.u32 %v1388, 4294901760
        %5483 = vmatpush.msra.mxu0 %v5482
        %v5484 = vand.u32 %v1368, 4294901760
        %5485 = vmatpush.msra.mxu0 %v5484
        %v5486 = vand.u32 %v1348, 4294901760
        %5487 = vmatpush.msra.mxu0 %v5486
        %v5488 = vand.u32 %v1328, 4294901760
        %5489 = vmatpush.msra.mxu0 %v5488
        %v5490 = vand.u32 %v1552, 4294901760
        %v5491 = vsub.f32 %v1552, %v5490
        %v5492 = vand.u32 %v5491, 4294901760
        %5493 = vmatmul.f32.gmra.mxu0 %v5492
        %v5494 = vpop.f32.mrf.mxu0
        %v5495 = vadd.f32 %v5466, %v5494
        %5496 = vdwg.mxu0
        %5497 = vmatpush.msra.mxu0 0.0
        %5498 = vmatpush.msra.mxu0 0.0
        %5499 = vmatpush.msra.mxu0 0.0
        %5500 = vmatpush.msra.mxu0 0.0
        %5501 = vmatpush.msra.mxu0 0.0
        %5502 = vmatpush.msra.mxu0 0.0
        %5503 = vmatpush.msra.mxu0 0.0
        %5504 = vmatpush.msra.mxu0 0.0
        %5505 = vmatpush.msra.mxu0 0.0
        %5506 = vmatpush.msra.mxu0 0.0
        %v5507 = vand.u32 %v1428, 4294901760
        %v5508 = vsub.f32 %v1428, %v5507
        %v5509 = vand.u32 %v5508, 4294901760
        %5510 = vmatpush.msra.mxu0 %v5509
        %v5511 = vand.u32 %v1408, 4294901760
        %v5512 = vsub.f32 %v1408, %v5511
        %v5513 = vand.u32 %v5512, 4294901760
        %5514 = vmatpush.msra.mxu0 %v5513
        %v5515 = vand.u32 %v1388, 4294901760
        %v5516 = vsub.f32 %v1388, %v5515
        %v5517 = vand.u32 %v5516, 4294901760
        %5518 = vmatpush.msra.mxu0 %v5517
        %v5519 = vand.u32 %v1368, 4294901760
        %v5520 = vsub.f32 %v1368, %v5519
        %v5521 = vand.u32 %v5520, 4294901760
        %5522 = vmatpush.msra.mxu0 %v5521
        %v5523 = vand.u32 %v1348, 4294901760
        %v5524 = vsub.f32 %v1348, %v5523
        %v5525 = vand.u32 %v5524, 4294901760
        %5526 = vmatpush.msra.mxu0 %v5525
        %v5527 = vand.u32 %v1328, 4294901760
        %v5528 = vsub.f32 %v1328, %v5527
        %v5529 = vand.u32 %v5528, 4294901760
        %5530 = vmatpush.msra.mxu0 %v5529
        %v5531 = vand.u32 %v1552, 4294901760
        %5532 = vmatmul.f32.gmra.mxu0 %v5531
        %v5533 = vpop.f32.mrf.mxu0
        %v5534 = vadd.f32 %v5495, %v5533
        %5535 = vdwg.mxu0
        %5536 = vmatpush.msra.mxu0 0.0
        %5537 = vmatpush.msra.mxu0 0.0
        %5538 = vmatpush.msra.mxu0 0.0
        %5539 = vmatpush.msra.mxu0 0.0
        %5540 = vmatpush.msra.mxu0 0.0
        %5541 = vmatpush.msra.mxu0 0.0
        %5542 = vmatpush.msra.mxu0 0.0
        %5543 = vmatpush.msra.mxu0 0.0
        %5544 = vmatpush.msra.mxu0 0.0
        %5545 = vmatpush.msra.mxu0 0.0
        %v5546 = vand.u32 %v1428, 4294901760
        %5547 = vmatpush.msra.mxu0 %v5546
        %v5548 = vand.u32 %v1408, 4294901760
        %5549 = vmatpush.msra.mxu0 %v5548
        %v5550 = vand.u32 %v1388, 4294901760
        %5551 = vmatpush.msra.mxu0 %v5550
        %v5552 = vand.u32 %v1368, 4294901760
        %5553 = vmatpush.msra.mxu0 %v5552
        %v5554 = vand.u32 %v1348, 4294901760
        %5555 = vmatpush.msra.mxu0 %v5554
        %v5556 = vand.u32 %v1328, 4294901760
        %5557 = vmatpush.msra.mxu0 %v5556
        %v5558 = vand.u32 %v1552, 4294901760
        %5559 = vmatmul.f32.gmra.mxu0 %v5558
        %v5560 = vpop.f32.mrf.mxu0
        %v5561 = vadd.f32 %v5534, %v5560
        %5562 = vdwg.mxu0
        %5563 = vmatpush.msra.mxu0 0.0
        %5564 = vmatpush.msra.mxu0 0.0
        %5565 = vmatpush.msra.mxu0 0.0
        %5566 = vmatpush.msra.mxu0 0.0
        %5567 = vmatpush.msra.mxu0 0.0
        %5568 = vmatpush.msra.mxu0 0.0
        %5569 = vmatpush.msra.mxu0 0.0
        %5570 = vmatpush.msra.mxu0 0.0
        %5571 = vmatpush.msra.mxu0 0.0
        %5572 = vmatpush.msra.mxu0 0.0
        %v5573 = vand.u32 %v1429, 4294901760
        %5574 = vmatpush.msra.mxu0 %v5573
        %v5575 = vand.u32 %v1409, 4294901760
        %5576 = vmatpush.msra.mxu0 %v5575
        %v5577 = vand.u32 %v1389, 4294901760
        %5578 = vmatpush.msra.mxu0 %v5577
        %v5579 = vand.u32 %v1369, 4294901760
        %5580 = vmatpush.msra.mxu0 %v5579
        %v5581 = vand.u32 %v1349, 4294901760
        %5582 = vmatpush.msra.mxu0 %v5581
        %v5583 = vand.u32 %v1329, 4294901760
        %5584 = vmatpush.msra.mxu0 %v5583
        %v5585 = vand.u32 %v1552, 4294901760
        %v5586 = vsub.f32 %v1552, %v5585
        %v5587 = vand.u32 %v5586, 4294901760
        %v5588 = vsub.f32 %v5586, %v5587
        %v5589 = vand.u32 %v5588, 4294901760
        %5590 = vmatmul.f32.gmra.mxu0 %v5589
        %v5591 = vpop.f32.mrf.mxu0
        %v5592 = vadd.f32 %v1053, %v5591
        %5593 = vdwg.mxu0
        %5594 = vmatpush.msra.mxu0 0.0
        %5595 = vmatpush.msra.mxu0 0.0
        %5596 = vmatpush.msra.mxu0 0.0
        %5597 = vmatpush.msra.mxu0 0.0
        %5598 = vmatpush.msra.mxu0 0.0
        %5599 = vmatpush.msra.mxu0 0.0
        %5600 = vmatpush.msra.mxu0 0.0
        %5601 = vmatpush.msra.mxu0 0.0
        %5602 = vmatpush.msra.mxu0 0.0
        %5603 = vmatpush.msra.mxu0 0.0
        %v5604 = vand.u32 %v1429, 4294901760
        %v5605 = vsub.f32 %v1429, %v5604
        %v5606 = vand.u32 %v5605, 4294901760
        %v5607 = vsub.f32 %v5605, %v5606
        %v5608 = vand.u32 %v5607, 4294901760
        %5609 = vmatpush.msra.mxu0 %v5608
        %v5610 = vand.u32 %v1409, 4294901760
        %v5611 = vsub.f32 %v1409, %v5610
        %v5612 = vand.u32 %v5611, 4294901760
        %v5613 = vsub.f32 %v5611, %v5612
        %v5614 = vand.u32 %v5613, 4294901760
        %5615 = vmatpush.msra.mxu0 %v5614
        %v5616 = vand.u32 %v1389, 4294901760
        %v5617 = vsub.f32 %v1389, %v5616
        %v5618 = vand.u32 %v5617, 4294901760
        %v5619 = vsub.f32 %v5617, %v5618
        %v5620 = vand.u32 %v5619, 4294901760
        %5621 = vmatpush.msra.mxu0 %v5620
        %v5622 = vand.u32 %v1369, 4294901760
        %v5623 = vsub.f32 %v1369, %v5622
        %v5624 = vand.u32 %v5623, 4294901760
        %v5625 = vsub.f32 %v5623, %v5624
        %v5626 = vand.u32 %v5625, 4294901760
        %5627 = vmatpush.msra.mxu0 %v5626
        %v5628 = vand.u32 %v1349, 4294901760
        %v5629 = vsub.f32 %v1349, %v5628
        %v5630 = vand.u32 %v5629, 4294901760
        %v5631 = vsub.f32 %v5629, %v5630
        %v5632 = vand.u32 %v5631, 4294901760
        %5633 = vmatpush.msra.mxu0 %v5632
        %v5634 = vand.u32 %v1329, 4294901760
        %v5635 = vsub.f32 %v1329, %v5634
        %v5636 = vand.u32 %v5635, 4294901760
        %v5637 = vsub.f32 %v5635, %v5636
        %v5638 = vand.u32 %v5637, 4294901760
        %5639 = vmatpush.msra.mxu0 %v5638
        %v5640 = vand.u32 %v1552, 4294901760
        %5641 = vmatmul.f32.gmra.mxu0 %v5640
        %v5642 = vpop.f32.mrf.mxu0
        %v5643 = vadd.f32 %v5592, %v5642
        %5644 = vdwg.mxu0
        %5645 = vmatpush.msra.mxu0 0.0
        %5646 = vmatpush.msra.mxu0 0.0
        %5647 = vmatpush.msra.mxu0 0.0
        %5648 = vmatpush.msra.mxu0 0.0
        %5649 = vmatpush.msra.mxu0 0.0
        %5650 = vmatpush.msra.mxu0 0.0
        %5651 = vmatpush.msra.mxu0 0.0
        %5652 = vmatpush.msra.mxu0 0.0
        %5653 = vmatpush.msra.mxu0 0.0
        %5654 = vmatpush.msra.mxu0 0.0
        %v5655 = vand.u32 %v1429, 4294901760
        %v5656 = vsub.f32 %v1429, %v5655
        %5657 = vmatpush.msra.mxu0 %v5656
        %v5658 = vand.u32 %v1409, 4294901760
        %v5659 = vsub.f32 %v1409, %v5658
        %5660 = vmatpush.msra.mxu0 %v5659
        %v5661 = vand.u32 %v1389, 4294901760
        %v5662 = vsub.f32 %v1389, %v5661
        %5663 = vmatpush.msra.mxu0 %v5662
        %v5664 = vand.u32 %v1369, 4294901760
        %v5665 = vsub.f32 %v1369, %v5664
        %5666 = vmatpush.msra.mxu0 %v5665
        %v5667 = vand.u32 %v1349, 4294901760
        %v5668 = vsub.f32 %v1349, %v5667
        %5669 = vmatpush.msra.mxu0 %v5668
        %v5670 = vand.u32 %v1329, 4294901760
        %v5671 = vsub.f32 %v1329, %v5670
        %5672 = vmatpush.msra.mxu0 %v5671
        %v5673 = vand.u32 %v1552, 4294901760
        %v5674 = vsub.f32 %v1552, %v5673
        %5675 = vmatmul.f32.gmra.mxu0 %v5674
        %v5676 = vpop.f32.mrf.mxu0
        %v5677 = vadd.f32 %v5643, %v5676
        %5678 = vdwg.mxu0
        %5679 = vmatpush.msra.mxu0 0.0
        %5680 = vmatpush.msra.mxu0 0.0
        %5681 = vmatpush.msra.mxu0 0.0
        %5682 = vmatpush.msra.mxu0 0.0
        %5683 = vmatpush.msra.mxu0 0.0
        %5684 = vmatpush.msra.mxu0 0.0
        %5685 = vmatpush.msra.mxu0 0.0
        %5686 = vmatpush.msra.mxu0 0.0
        %5687 = vmatpush.msra.mxu0 0.0
        %5688 = vmatpush.msra.mxu0 0.0
        %v5689 = vand.u32 %v1429, 4294901760
        %5690 = vmatpush.msra.mxu0 %v5689
        %v5691 = vand.u32 %v1409, 4294901760
        %5692 = vmatpush.msra.mxu0 %v5691
        %v5693 = vand.u32 %v1389, 4294901760
        %5694 = vmatpush.msra.mxu0 %v5693
        %v5695 = vand.u32 %v1369, 4294901760
        %5696 = vmatpush.msra.mxu0 %v5695
        %v5697 = vand.u32 %v1349, 4294901760
        %5698 = vmatpush.msra.mxu0 %v5697
        %v5699 = vand.u32 %v1329, 4294901760
        %5700 = vmatpush.msra.mxu0 %v5699
        %v5701 = vand.u32 %v1552, 4294901760
        %v5702 = vsub.f32 %v1552, %v5701
        %v5703 = vand.u32 %v5702, 4294901760
        %5704 = vmatmul.f32.gmra.mxu0 %v5703
        %v5705 = vpop.f32.mrf.mxu0
        %v5706 = vadd.f32 %v5677, %v5705
        %5707 = vdwg.mxu0
        %5708 = vmatpush.msra.mxu0 0.0
        %5709 = vmatpush.msra.mxu0 0.0
        %5710 = vmatpush.msra.mxu0 0.0
        %5711 = vmatpush.msra.mxu0 0.0
        %5712 = vmatpush.msra.mxu0 0.0
        %5713 = vmatpush.msra.mxu0 0.0
        %5714 = vmatpush.msra.mxu0 0.0
        %5715 = vmatpush.msra.mxu0 0.0
        %5716 = vmatpush.msra.mxu0 0.0
        %5717 = vmatpush.msra.mxu0 0.0
        %v5718 = vand.u32 %v1429, 4294901760
        %v5719 = vsub.f32 %v1429, %v5718
        %v5720 = vand.u32 %v5719, 4294901760
        %5721 = vmatpush.msra.mxu0 %v5720
        %v5722 = vand.u32 %v1409, 4294901760
        %v5723 = vsub.f32 %v1409, %v5722
        %v5724 = vand.u32 %v5723, 4294901760
        %5725 = vmatpush.msra.mxu0 %v5724
        %v5726 = vand.u32 %v1389, 4294901760
        %v5727 = vsub.f32 %v1389, %v5726
        %v5728 = vand.u32 %v5727, 4294901760
        %5729 = vmatpush.msra.mxu0 %v5728
        %v5730 = vand.u32 %v1369, 4294901760
        %v5731 = vsub.f32 %v1369, %v5730
        %v5732 = vand.u32 %v5731, 4294901760
        %5733 = vmatpush.msra.mxu0 %v5732
        %v5734 = vand.u32 %v1349, 4294901760
        %v5735 = vsub.f32 %v1349, %v5734
        %v5736 = vand.u32 %v5735, 4294901760
        %5737 = vmatpush.msra.mxu0 %v5736
        %v5738 = vand.u32 %v1329, 4294901760
        %v5739 = vsub.f32 %v1329, %v5738
        %v5740 = vand.u32 %v5739, 4294901760
        %5741 = vmatpush.msra.mxu0 %v5740
        %v5742 = vand.u32 %v1552, 4294901760
        %5743 = vmatmul.f32.gmra.mxu0 %v5742
        %v5744 = vpop.f32.mrf.mxu0
        %v5745 = vadd.f32 %v5706, %v5744
        %5746 = vdwg.mxu0
        %5747 = vmatpush.msra.mxu0 0.0
        %5748 = vmatpush.msra.mxu0 0.0
        %5749 = vmatpush.msra.mxu0 0.0
        %5750 = vmatpush.msra.mxu0 0.0
        %5751 = vmatpush.msra.mxu0 0.0
        %5752 = vmatpush.msra.mxu0 0.0
        %5753 = vmatpush.msra.mxu0 0.0
        %5754 = vmatpush.msra.mxu0 0.0
        %5755 = vmatpush.msra.mxu0 0.0
        %5756 = vmatpush.msra.mxu0 0.0
        %v5757 = vand.u32 %v1429, 4294901760
        %5758 = vmatpush.msra.mxu0 %v5757
        %v5759 = vand.u32 %v1409, 4294901760
        %5760 = vmatpush.msra.mxu0 %v5759
        %v5761 = vand.u32 %v1389, 4294901760
        %5762 = vmatpush.msra.mxu0 %v5761
        %v5763 = vand.u32 %v1369, 4294901760
        %5764 = vmatpush.msra.mxu0 %v5763
        %v5765 = vand.u32 %v1349, 4294901760
        %5766 = vmatpush.msra.mxu0 %v5765
        %v5767 = vand.u32 %v1329, 4294901760
        %5768 = vmatpush.msra.mxu0 %v5767
        %v5769 = vand.u32 %v1552, 4294901760
        %5770 = vmatmul.f32.gmra.mxu0 %v5769
        %v5771 = vpop.f32.mrf.mxu0
        %v5772 = vadd.f32 %v5745, %v5771
        %5773 = vdwg.mxu0
        %5774 = vst [vmem:[%s373] sm:$0xff] %v1763
        %5775 = vst [vmem:[%s373 + $0x8] sm:$0xff] %v1974
        %5776 = vst [vmem:[%s373 + $0x10] sm:$0xff] %v2185
        %5777 = vst [vmem:[%s373 + $0x18] sm:$0xff] %v2396
        %5778 = vst [vmem:[%s373 + $0x20] sm:$0xff] %v2607
        %5779 = vst [vmem:[%s373 + $0x28] sm:$0xff] %v2818
        %5780 = vst [vmem:[%s373 + $0x30] sm:$0xff] %v3029
        %5781 = vst [vmem:[%s373 + $0x38] sm:$0xff] %v3240
        %5782 = vst [vmem:[%s373 + $0x40] sm:$0xff] %v3451
        %5783 = vst [vmem:[%s373 + $0x48] sm:$0xff] %v3662
        %5784 = vst [vmem:[%s373 + $0x50] sm:$0xff] %v3873
        %5785 = vst [vmem:[%s373 + $0x58] sm:$0xff] %v4084
        %5786 = vst [vmem:[%s373 + $0x60] sm:$0xff] %v4295
        %5787 = vst [vmem:[%s373 + $0x68] sm:$0xff] %v4506
        %5788 = vst [vmem:[%s373 + $0x70] sm:$0xff] %v4717
        %5789 = vst [vmem:[%s373 + $0x78] sm:$0xff] %v4928
        %5790 = vst [vmem:[%s373 + $0x80] sm:$0xff] %v5139
        %5791 = vst [vmem:[%s373 + $0x88] sm:$0xff] %v5350
        %5792 = vst [vmem:[%s373 + $0x90] sm:$0xff] %v5561
        %5793 = vst [vmem:[%s373 + $0x98] sm:$0xff] %v5772
        %s5794 = sand.u32 %s189, 1
        %s5795 = scalar_lea.sflag [#allocation4], %s5794
        %s5796 = sand.u32 %s189, 1
        %s5797 = smul.addr %s5796, 160
        %s5798 = scalar_lea.vmem [#allocation8], %s5797
        // Predicated region
        $region53: #{tpu_custom_call.1} parent=39 // pred_check
          %p5799 = pneg %p199
        $region54: #{tpu_custom_call.1} parent=39 // pred_check_branch
          %5801 = sbr.rel (%p5799) target = $region56
        $region55: #{tpu_custom_call.1} parent=39 // pred_region
          %s5802 = smul.u32 20, %s30
          %5804 = vsyncadd %s5795, 0
          %s5805 = smul.addr %s29, 20
          %s5806 = sadd.s32 %s5802, %s5805
          %s5807 = smul.addr %s5806, 8
          %s5808 = scalar_lea.hbm %s5, %s5807
          %s5810 = sshll.u32 %s5798, 4
          %s5811 = int_to_ptr.vmem [resolvable:$true] %s5810
          %s5812 = sshll.u32 %s5808, 4
          %s5813 = int_to_ptr.hbm [resolvable:$true] %s5812
          %5815 = dma.vmem_to_hbm [thread:$0]  %s5811, 2560, %s5813, %s5795
        $region56: #{tpu_custom_call.1} parent=39 // pred_fallthru
          _
      $region40: #{tpu_custom_call.1} parent=5 // pred_fallthru
        _
      %p5816 = scmp.le.s32.totalorder 2, %s20
      // Predicated region
      $region57: #{tpu_custom_call.1} parent=5 // pred_check
        %p5817 = pneg %p5816
      $region58: #{tpu_custom_call.1} parent=5 // pred_check_branch
        %5819 = sbr.rel (%p5817) target = $region60
      $region59: #{tpu_custom_call.1} parent=5 // pred_region
        %s5820 = ssub.s32 %s20, 2
        // Predicated region
        $region61: #{tpu_custom_call.1} parent=59 // pred_check
          %p5821 = pneg %p205
        $region62: #{tpu_custom_call.1} parent=59 // pred_check_branch
          %5823 = sbr.rel (%p5821) target = $region64
        $region63: #{tpu_custom_call.1} parent=59 // pred_region
          %s5824 = sand.u32 %s190, 1
          %s5825 = scalar_lea.sflag [#allocation4], %s5824
          %s5826 = sand.u32 %s190, 1
          %s5827 = smul.addr %s5826, 160
          %s5828 = scalar_lea.vmem [#allocation8], %s5827
          %5830 = dma.done %s5825, 2560
        $region64: #{tpu_custom_call.1} parent=59 // pred_fallthru
          _
      $region60: #{tpu_custom_call.1} parent=5 // pred_fallthru
        _
    $region6: #{tpu_custom_call.1} parent=1 // loop_footer
      %s24 = sadd.s32 1, %s20
    $region7: #{tpu_custom_call.1} parent=1 // loop_footer_branch
      %19 = sbr.rel target = $region3
    $region8: #{tpu_custom_call.1} parent=1 // loop_exit
      _
    %5831 = vsyncpa [#allocation3], 1
    %s5832 = scalar_lea.sflag [#allocation3], 1
    %5833 = vsyncpa %s5832, 1
    %5834 = vsyncpa [#allocation6], 1
    %s5835 = scalar_lea.sflag [#allocation6], 1
    %5836 = vsyncpa %s5835, 1
    %5837 = vsyncpa [#allocation4], 1
    %s5838 = scalar_lea.sflag [#allocation4], 1
    %5839 = vsyncpa %s5838, 1

</llo_original>
